<compile_context>
chip_gen: v7x
topology: tpu7x:2x2x1
jax: 0.10.0
libtpu: 0.0.40
codegen_flags: <defaults>
</compile_context>

<pallas_src>
import functools
import math

import jax
import jax.numpy as jnp
from jax.experimental import pallas as pl
from jax.experimental.pallas import tpu as pltpu


def _layernorm(v, g, b, eps=1e-5):
    mu = jnp.mean(v, axis=-1, keepdims=True)
    var = jnp.mean((v - mu) ** 2, axis=-1, keepdims=True)
    return (v - mu) * jax.lax.rsqrt(var + eps) * g + b


# ---------------------------------------------------------------------------
# Kernel: grid=(depth,). Step 0 also runs ShiftPredictor + adaptive temporal
# shift; every step applies one post-norm TransformerEncoderLayer to the
# VMEM-resident (N = B*T, D) activation slab carried in o_ref.
# ---------------------------------------------------------------------------
def fused_tsm_kernel(x_ref, pred_ref, wqkv_ref, bqkv_ref, wo_ref, vecs_ref,
                     b1_ref, w1_ref, w2_ref, o_ref,
                     *, num_heads, T, fold, n_ff_chunks):
    N, D = x_ref.shape
    dh = D // num_heads
    dff = w1_ref.shape[1]
    chunk = dff // n_ff_chunks
    scale = 1.0 / math.sqrt(dh)
    inv_T = 1.0 / T

    # -------- step 0 only: ShiftPredictor + adaptive temporal shift ----------
    @pl.when(pl.program_id(0) == 0)
    def _():
        x = x_ref[...]                                            # (N, D) f32
        # sigmoid(x @ w + b) as a VPU mul + lane reduce (avoids a 1-lane matmul)
        logit = jnp.sum(x * pred_ref[0:1, :], axis=-1, keepdims=True) \
            + pred_ref[1:2, 0:1]
        shift_n = jnp.floor(jax.nn.sigmoid(logit) * fold).astype(jnp.int32)  # (N,1)

        # time index inside each clip (float math: exact for small ints, avoids
        # integer div/mod lowering)
        rowf = jax.lax.broadcasted_iota(jnp.int32, (N, D), 0).astype(jnp.float32)
        t_in_clip = rowf - T * jnp.floor(rowf * inv_T)
        # roll on the sublane axis (XLU); zero-pad rows at t==0 / t==T-1, which
        # also kills the batch-boundary / wrap-around rows.
        x_prev = jnp.where(t_in_clip == 0.0, 0.0, pltpu.roll(x, 1, axis=0))
        x_next = jnp.where(t_in_clip == T - 1.0, 0.0, pltpu.roll(x, N - 1, axis=0))

        c_idx = jax.lax.broadcasted_iota(jnp.int32, (N, D), 1)
        o_ref[...] = jnp.where(c_idx < shift_n, x_prev,
                               jnp.where(c_idx < 2 * shift_n, x_next, x))

    # -------- every step: one TransformerEncoderLayer (post-norm, ReLU) ------
    h = o_ref[...]                                                # carry (N, D)

    # cross-batch attention mask built in-kernel (B, T static)
    rb = jax.lax.broadcasted_iota(jnp.int32, (N, N), 0).astype(jnp.float32)
    cb = jax.lax.broadcasted_iota(jnp.int32, (N, N), 1).astype(jnp.float32)
    same_clip = jnp.floor(rb * inv_T) == jnp.floor(cb * inv_T)
    attn_bias = jnp.where(same_clip, 0.0, -1e30)

    # fused Q/K/V projection: one (N,D)@(D,3D) matmul, per-head lane slices
    qkv = jnp.dot(h, wqkv_ref[...], preferred_element_type=jnp.float32) \
        + bqkv_ref[...]
    ctx_heads = []
    for hd in range(num_heads):
        q = qkv[:, hd * dh:(hd + 1) * dh]
        k = qkv[:, D + hd * dh:D + (hd + 1) * dh]
        v = qkv[:, 2 * D + hd * dh:2 * D + (hd + 1) * dh]
        s = jax.lax.dot_general(q, k, (((1,), (1,)), ((), ())),
                                preferred_element_type=jnp.float32) * scale
        s = s + attn_bias
        s = s - jnp.max(s, axis=-1, keepdims=True)
        p = jnp.exp(s)
        p = p * pl.reciprocal(jnp.sum(p, axis=-1, keepdims=True), approx=True)
        ctx_heads.append(jnp.dot(p, v, preferred_element_type=jnp.float32))
    # heads live in disjoint 8-lane slices -> cheap lane concat, one out-proj
    ctx = jnp.concatenate(ctx_heads, axis=-1)                     # (N, D)
    attn = jnp.dot(ctx, wo_ref[...], preferred_element_type=jnp.float32) \
        + vecs_ref[0:1, :]

    # residual + LayerNorm1 (dropout == identity, eval mode)
    h1 = _layernorm(h + attn, vecs_ref[1:2, :], vecs_ref[2:3, :])

    # feed-forward, chunked over dff (bf16 MXU weights, f32 accumulation)
    h1b = h1.astype(jnp.bfloat16)
    ff = jnp.zeros((N, D), jnp.float32)
    for c in range(n_ff_chunks):
        lo = c * chunk
        t1 = jnp.dot(h1b, w1_ref[:, lo:lo + chunk],
                     preferred_element_type=jnp.float32) \
            + b1_ref[0:1, lo:lo + chunk]
        t1 = jnp.maximum(t1, 0.0)
        ff = ff + jnp.dot(t1.astype(jnp.bfloat16), w2_ref[lo:lo + chunk, :],
                          preferred_element_type=jnp.float32)
    ff = ff + vecs_ref[3:4, :]

    # residual + LayerNorm2 -> new carry (written to HBM after the last step)
    o_ref[...] = _layernorm(h1 + ff, vecs_ref[4:5, :], vecs_ref[5:6, :])


# ---------------------------------------------------------------------------
# Forward wrapper: single pallas_call, grid over depth (weight pipelining).
# ---------------------------------------------------------------------------
@functools.partial(jax.jit, static_argnames=("fold_div", "num_heads"))
def global_adaptive_tsm(x, packed, *, fold_div=2, num_heads=4):
    squeeze = x.ndim == 2
    if squeeze:
        x = x[None]
    B, T, D = x.shape
    N = B * T
    depth = packed["wqkv"].shape[0]
    dff = packed["w1"].shape[2]
    fold = D // fold_div
    n_ff_chunks = 4 if dff % 4 == 0 else 1

    kernel = functools.partial(fused_tsm_kernel, num_heads=num_heads, T=T,
                               fold=fold, n_ff_chunks=n_ff_chunks)

    out_flat = pl.pallas_call(
        kernel,
        out_shape=jax.ShapeDtypeStruct((N, D), jnp.float32),
        grid=(depth,),
        in_specs=[
            pl.BlockSpec((N, D), lambda l: (0, 0)),                 # x
            pl.BlockSpec((2, D), lambda l: (0, 0)),                 # predictor w/b
            pl.BlockSpec((None, D, 3 * D), lambda l: (l, 0, 0)),    # Wqkv
            pl.BlockSpec((None, 1, 3 * D), lambda l: (l, 0, 0)),    # bqkv
            pl.BlockSpec((None, D, D), lambda l: (l, 0, 0)),        # Wo
            pl.BlockSpec((None, 8, D), lambda l: (l, 0, 0)),        # packed small vecs
            pl.BlockSpec((None, 1, dff), lambda l: (l, 0, 0)),      # b1
            pl.BlockSpec((None, D, dff), lambda l: (l, 0, 0)),      # W1 (bf16)
            pl.BlockSpec((None, dff, D), lambda l: (l, 0, 0)),      # W2 (bf16)
        ],
        out_specs=pl.BlockSpec((N, D), lambda l: (0, 0)),           # VMEM-resident carry
        compiler_params=pltpu.CompilerParams(
            dimension_semantics=("arbitrary",),
            vmem_limit_bytes=4 * 1024 * 1024),
    )(x.reshape(N, D).astype(jnp.float32), packed["pred"],
      packed["wqkv"], packed["bqkv"], packed["wo"], packed["vecs"],
      packed["b1"], packed["w1"], packed["w2"])

    out = out_flat.reshape(B, T, D)
    return out[0] if squeeze else out


# ---------------------------------------------------------------------------
# Parameters: synthetic PyTorch-layout init + packing into the kernel layout.
# PyTorch Linear/MHA store W as (out, in) and apply x @ W.T; the kernel consumes
# math-layout (in, out) weights, stacked over depth for per-layer BlockSpecs.
# ---------------------------------------------------------------------------
def init_torch_params(key, D, depth=2, dff=2048):
    ks = jax.random.split(key, 1 + depth * 4)

    def lin(k, out_dim, in_dim):
        bound = 1.0 / math.sqrt(in_dim)
        return jax.random.uniform(k, (out_dim, in_dim), jnp.float32, -bound, bound)

    params = {
        "pred_w": lin(ks[0], 1, D),                   # ShiftPredictor Linear(D, 1)
        "pred_b": jnp.zeros((1,), jnp.float32),
        "layers": [],
    }
    ki = 1
    for _ in range(depth):
        params["layers"].append({
            "in_proj_w": lin(ks[ki], 3 * D, D),       # (3D, D) torch layout
            "in_proj_b": jnp.zeros((3 * D,), jnp.float32),
            "out_proj_w": lin(ks[ki + 1], D, D),
            "out_proj_b": jnp.zeros((D,), jnp.float32),
            "ln1_w": jnp.ones((D,), jnp.float32),
            "ln1_b": jnp.zeros((D,), jnp.float32),
            "lin1_w": lin(ks[ki + 2], dff, D),        # (dff, D)
            "lin1_b": jnp.zeros((dff,), jnp.float32),
            "lin2_w": lin(ks[ki + 3], D, dff),        # (D, dff)
            "lin2_b": jnp.zeros((D,), jnp.float32),
            "ln2_w": jnp.ones((D,), jnp.float32),
            "ln2_b": jnp.zeros((D,), jnp.float32),
        })
        ki += 4
    return params


def pack_params(tp):
    layers = tp["layers"]
    D = layers[0]["in_proj_w"].shape[1]
    dff = layers[0]["lin1_w"].shape[0]

    def st(fn):                                   # stack over layers -> (L, ...)
        return jnp.stack([fn(l) for l in layers], axis=0)

    # predictor: row 0 = w (D,), row 1 = bias broadcast
    pred = jnp.stack([tp["pred_w"][0],
                      jnp.broadcast_to(tp["pred_b"][0], (D,))], axis=0)

    # small per-layer vectors packed into one (L, 8, D) slab:
    # rows: 0=out_proj_b, 1=ln1_g, 2=ln1_b, 3=lin2_b, 4=ln2_g, 5=ln2_b, 6/7=pad
    zero = jnp.zeros((D,), jnp.float32)
    vecs = st(lambda l: jnp.stack([l["out_proj_b"], l["ln1_w"], l["ln1_b"],
                                   l["lin2_b"], l["ln2_w"], l["ln2_b"],
                                   zero, zero], axis=0))

    return {
        "pred": pred,                                              # (2, D)
        "wqkv": st(lambda l: l["in_proj_w"].T),                    # (L, D, 3D)
        "bqkv": st(lambda l: l["in_proj_b"].reshape(1, 3 * D)),    # (L, 1, 3D)
        "wo":   st(lambda l: l["out_proj_w"].T),                   # (L, D, D)
        "vecs": vecs,                                              # (L, 8, D)
        "b1":   st(lambda l: l["lin1_b"].reshape(1, dff)),         # (L, 1, dff)
        "w1":   st(lambda l: l["lin1_w"].T).astype(jnp.bfloat16),  # (L, D, dff)
        "w2":   st(lambda l: l["lin2_w"].T).astype(jnp.bfloat16),  # (L, dff, D)
    }


if __name__ == "__main__":
    B, T, D = 2, 8, 32               # batch, sequence (time), feature dim
    NUM_HEADS, DEPTH, FOLD_DIV = 4, 2, 2
    DFF = 2048                       # nn.TransformerEncoderLayer default dim_feedforward

    key = jax.random.PRNGKey(0)
    kx, kp = jax.random.split(key)
    x = jax.random.normal(kx, (B, T, D), jnp.float32)

    torch_params = init_torch_params(kp, D, depth=DEPTH, dff=DFF)
    packed = pack_params(torch_params)

    out = global_adaptive_tsm(x, packed, fold_div=FOLD_DIV, num_heads=NUM_HEADS)
    jax.block_until_ready(out)
    assert out.shape == (B, T, D) and out.dtype == jnp.float32
    assert bool(jnp.all(jnp.isfinite(out)))
    print("KERNEL_OK")
</pallas_src>

<mosaic_0001>
module attributes {stable_mosaic.version = 11 : i64} {
  func.func @fused_tsm_kernel(%arg0: i32, %arg1: memref<16x32xf32, #tpu.memory_space<vmem>>, %arg2: memref<2x32xf32, #tpu.memory_space<vmem>>, %arg3: memref<1x32x96xf32, #tpu.memory_space<vmem>>, %arg4: memref<1x1x96xf32, #tpu.memory_space<vmem>>, %arg5: memref<1x32x32xf32, #tpu.memory_space<vmem>>, %arg6: memref<1x8x32xf32, #tpu.memory_space<vmem>>, %arg7: memref<1x1x2048xf32, #tpu.memory_space<vmem>>, %arg8: memref<1x32x2048xbf16, #tpu.memory_space<vmem>>, %arg9: memref<1x2048x32xbf16, #tpu.memory_space<vmem>>, %arg10: memref<16x32xf32, #tpu.memory_space<vmem>>) attributes {dimension_semantics = [#tpu.dimension_semantics<arbitrary>], iteration_bounds = array<i64: 2>, scalar_prefetch = 0 : i64, scratch_operands = 0 : i64, tpu.core_type = #tpu.core_type<tc>, window_params = [{pipeline_mode = #tpu.pipeline_mode<synchronous>, transform_indices = @transform_0, window_bounds = array<i64: 16, 32>}, {pipeline_mode = #tpu.pipeline_mode<synchronous>, transform_indices = @transform_1, window_bounds = array<i64: 2, 32>}, {transform_indices = @transform_2, window_bounds = array<i64: 1, 32, 96>}, {transform_indices = @transform_3, window_bounds = array<i64: 1, 1, 96>}, {transform_indices = @transform_4, window_bounds = array<i64: 1, 32, 32>}, {transform_indices = @transform_5, window_bounds = array<i64: 1, 8, 32>}, {transform_indices = @transform_6, window_bounds = array<i64: 1, 1, 2048>}, {transform_indices = @transform_7, window_bounds = array<i64: 1, 32, 2048>}, {transform_indices = @transform_8, window_bounds = array<i64: 1, 2048, 32>}, {pipeline_mode = #tpu.pipeline_mode<synchronous>, transform_indices = @transform_9, window_bounds = array<i64: 16, 32>}]} {
    %c0_i32 = arith.constant 0 : i32
    %0 = arith.cmpi eq, %arg0, %c0_i32 : i32
    %1 = arith.extui %0 : i1 to i32
    %c0_i32_0 = arith.constant 0 : i32
    %2 = arith.cmpi ne, %1, %c0_i32_0 : i32
    scf.if %2 {
      %c0_107 = arith.constant 0 : index
      %c0_108 = arith.constant 0 : index
      %222 = vector.load %arg1[%c0_107, %c0_108] : memref<16x32xf32, #tpu.memory_space<vmem>>, vector<16x32xf32>
      %c0_109 = arith.constant 0 : index
      %c0_110 = arith.constant 0 : index
      %223 = vector.load %arg2[%c0_109, %c0_110] : memref<2x32xf32, #tpu.memory_space<vmem>>, vector<1x32xf32>
      %224 = vector.broadcast %223 : vector<1x32xf32> to vector<16x32xf32>
      %225 = arith.mulf %222, %224 : vector<16x32xf32>
      %cst_111 = arith.constant dense<0.000000e+00> : vector<16xf32>
      %226 = vector.multi_reduction <add>, %225, %cst_111 [1] : vector<16x32xf32> to vector<16xf32>
      %227 = vector.shape_cast %226 : vector<16xf32> to vector<16x1xf32>
      %c1_112 = arith.constant 1 : index
      %c0_113 = arith.constant 0 : index
      %228 = vector.load %arg2[%c1_112, %c0_113] : memref<2x32xf32, #tpu.memory_space<vmem>>, vector<1x1xf32>
      %229 = vector.broadcast %228 : vector<1x1xf32> to vector<16x1xf32>
      %230 = arith.addf %227, %229 : vector<16x1xf32>
      %231 = arith.negf %230 : vector<16x1xf32>
      %232 = math.exp %231 : vector<16x1xf32>
      %cst_114 = arith.constant 1.000000e+00 : f32
      %233 = vector.broadcast %cst_114 : f32 to vector<16x1xf32>
      %234 = arith.addf %233, %232 : vector<16x1xf32>
      %235 = arith.divf %233, %234 : vector<16x1xf32>
      %cst_115 = arith.constant 1.600000e+01 : f32
      %236 = vector.broadcast %cst_115 : f32 to vector<16x1xf32>
      %237 = arith.mulf %235, %236 : vector<16x1xf32>
      %238 = math.floor %237 : vector<16x1xf32>
      %239 = arith.fptosi %238 : vector<16x1xf32> to vector<16x1xi32>
      %240 = tpu.iota {dimensions = array<i32: 0>} : vector<16x32xi32>
      %241 = arith.sitofp %240 : vector<16x32xi32> to vector<16x32xf32>
      %cst_116 = arith.constant 1.250000e-01 : f32
      %242 = vector.broadcast %cst_116 : f32 to vector<16x32xf32>
      %243 = arith.mulf %241, %242 : vector<16x32xf32>
      %244 = math.floor %243 : vector<16x32xf32>
      %cst_117 = arith.constant 8.000000e+00 : f32
      %245 = vector.broadcast %cst_117 : f32 to vector<16x32xf32>
      %246 = arith.mulf %245, %244 : vector<16x32xf32>
      %247 = arith.subf %241, %246 : vector<16x32xf32>
      %cst_118 = arith.constant 0.000000e+00 : f32
      %248 = vector.broadcast %cst_118 : f32 to vector<16x32xf32>
      %249 = arith.cmpf oeq, %247, %248 : vector<16x32xf32>
      %c1_i32 = arith.constant 1 : i32
      %250 = tpu.dynamic_rotate %222 by %c1_i32 dim 0 : vector<16x32xf32>, i32 -> vector<16x32xf32>
      %cst_119 = arith.constant 0.000000e+00 : f32
      %251 = vector.broadcast %cst_119 : f32 to vector<16x32xf32>
      %252 = arith.select %249, %251, %250 : vector<16x32xi1>, vector<16x32xf32>
      %cst_120 = arith.constant 7.000000e+00 : f32
      %253 = vector.broadcast %cst_120 : f32 to vector<16x32xf32>
      %254 = arith.cmpf oeq, %247, %253 : vector<16x32xf32>
      %c15_i32 = arith.constant 15 : i32
      %255 = tpu.dynamic_rotate %222 by %c15_i32 dim 0 : vector<16x32xf32>, i32 -> vector<16x32xf32>
      %cst_121 = arith.constant 0.000000e+00 : f32
      %256 = vector.broadcast %cst_121 : f32 to vector<16x32xf32>
      %257 = arith.select %254, %256, %255 : vector<16x32xi1>, vector<16x32xf32>
      %258 = tpu.iota {dimensions = array<i32: 1>} : vector<16x32xi32>
      %259 = vector.broadcast %239 : vector<16x1xi32> to vector<16x32xi32>
      %260 = arith.cmpi slt, %258, %259 : vector<16x32xi32>
      %c2_i32 = arith.constant 2 : i32
      %261 = vector.broadcast %c2_i32 : i32 to vector<16x1xi32>
      %262 = arith.muli %261, %239 : vector<16x1xi32>
      %263 = vector.broadcast %262 : vector<16x1xi32> to vector<16x32xi32>
      %264 = arith.cmpi slt, %258, %263 : vector<16x32xi32>
      %265 = arith.select %264, %257, %222 : vector<16x32xi1>, vector<16x32xf32>
      %266 = arith.select %260, %252, %265 : vector<16x32xi1>, vector<16x32xf32>
      %c0_122 = arith.constant 0 : index
      %c0_123 = arith.constant 0 : index
      %267 = vector.load %arg10[%c0_122, %c0_123] : memref<16x32xf32, #tpu.memory_space<vmem>>, vector<16x32xf32>
      tpu.vector_store %arg10[%c0_122, %c0_123], %266 {strides = array<i32>} : memref<16x32xf32, #tpu.memory_space<vmem>>, vector<16x32xf32>,
    } else {
    }
    %c0 = arith.constant 0 : index
    %c0_1 = arith.constant 0 : index
    %3 = vector.load %arg10[%c0, %c0_1] : memref<16x32xf32, #tpu.memory_space<vmem>>, vector<16x32xf32>
    %4 = tpu.iota {dimensions = array<i32: 0>} : vector<16x16xi32>
    %5 = arith.sitofp %4 : vector<16x16xi32> to vector<16x16xf32>
    %6 = tpu.iota {dimensions = array<i32: 1>} : vector<16x16xi32>
    %7 = arith.sitofp %6 : vector<16x16xi32> to vector<16x16xf32>
    %cst = arith.constant 1.250000e-01 : f32
    %8 = vector.broadcast %cst : f32 to vector<16x16xf32>
    %9 = arith.mulf %5, %8 : vector<16x16xf32>
    %10 = math.floor %9 : vector<16x16xf32>
    %cst_2 = arith.constant 1.250000e-01 : f32
    %11 = vector.broadcast %cst_2 : f32 to vector<16x16xf32>
    %12 = arith.mulf %7, %11 : vector<16x16xf32>
    %13 = math.floor %12 : vector<16x16xf32>
    %14 = arith.cmpf oeq, %10, %13 : vector<16x16xf32>
    %cst_3 = arith.constant 0.000000e+00 : f32
    %cst_4 = arith.constant -1.000000e+30 : f32
    %15 = vector.broadcast %cst_3 : f32 to vector<16x16xf32>
    %16 = vector.broadcast %cst_4 : f32 to vector<16x16xf32>
    %17 = arith.select %14, %15, %16 : vector<16x16xi1>, vector<16x16xf32>
    %c0_5 = arith.constant 0 : index
    %c0_6 = arith.constant 0 : index
    %c0_7 = arith.constant 0 : index
    %18 = vector.load %arg3[%c0_5, %c0_6, %c0_7] : memref<1x32x96xf32, #tpu.memory_space<vmem>>, vector<1x32x96xf32>
    %19 = vector.shape_cast %18 : vector<1x32x96xf32> to vector<32x96xf32>
    %cst_8 = arith.constant dense<0.000000e+00> : vector<16x96xf32>
    %20 = tpu.matmul %3, %19, %cst_8 {dimension_numbers = #tpu.dot_dimension_numbers<[1], [0], [0], [1], [0, 0, 1, 1], [], []>} : vector<16x32xf32>, vector<32x96xf32>, vector<16x96xf32> -> vector<16x96xf32>
    %c0_9 = arith.constant 0 : index
    %c0_10 = arith.constant 0 : index
    %c0_11 = arith.constant 0 : index
    %21 = vector.load %arg4[%c0_9, %c0_10, %c0_11] : memref<1x1x96xf32, #tpu.memory_space<vmem>>, vector<1x1x96xf32>
    %22 = vector.shape_cast %21 : vector<1x1x96xf32> to vector<1x96xf32>
    %23 = vector.broadcast %22 : vector<1x96xf32> to vector<16x96xf32>
    %24 = arith.addf %20, %23 : vector<16x96xf32>
    %25 = vector.extract_strided_slice %24 {offsets = [0, 0], sizes = [16, 8], strides = [1, 1]} : vector<16x96xf32> to vector<16x8xf32>
    %26 = vector.extract_strided_slice %24 {offsets = [0, 32], sizes = [16, 8], strides = [1, 1]} : vector<16x96xf32> to vector<16x8xf32>
    %27 = vector.extract_strided_slice %24 {offsets = [0, 64], sizes = [16, 8], strides = [1, 1]} : vector<16x96xf32> to vector<16x8xf32>
    %cst_12 = arith.constant dense<0.000000e+00> : vector<16x16xf32>
    %28 = tpu.matmul %25, %26, %cst_12 {dimension_numbers = #tpu.dot_dimension_numbers<[1], [1], [0], [0], [0, 0, 1, 0], [], []>} : vector<16x8xf32>, vector<16x8xf32>, vector<16x16xf32> -> vector<16x16xf32>
    %cst_13 = arith.constant 0.353553385 : f32
    %29 = vector.broadcast %cst_13 : f32 to vector<16x16xf32>
    %30 = arith.mulf %28, %29 : vector<16x16xf32>
    %31 = arith.addf %30, %17 : vector<16x16xf32>
    %cst_14 = arith.constant dense<0xFF800000> : vector<16xf32>
    %32 = vector.multi_reduction <maximumf>, %31, %cst_14 [1] : vector<16x16xf32> to vector<16xf32>
    %33 = vector.shape_cast %32 : vector<16xf32> to vector<16x1xf32>
    %34 = vector.broadcast %33 : vector<16x1xf32> to vector<16x16xf32>
    %35 = arith.subf %31, %34 : vector<16x16xf32>
    %36 = math.exp %35 : vector<16x16xf32>
    %cst_15 = arith.constant dense<0.000000e+00> : vector<16xf32>
    %37 = vector.multi_reduction <add>, %36, %cst_15 [1] : vector<16x16xf32> to vector<16xf32>
    %38 = vector.shape_cast %37 : vector<16xf32> to vector<16x1xf32>
    %39 = tpu.reciprocal %38 {approx = true} : vector<16x1xf32> -> vector<16x1xf32>
    %40 = vector.broadcast %39 : vector<16x1xf32> to vector<16x16xf32>
    %41 = arith.mulf %36, %40 : vector<16x16xf32>
    %cst_16 = arith.constant dense<0.000000e+00> : vector<16x8xf32>
    %42 = tpu.matmul %41, %27, %cst_16 {dimension_numbers = #tpu.dot_dimension_numbers<[1], [0], [0], [1], [0, 0, 1, 1], [], []>} : vector<16x16xf32>, vector<16x8xf32>, vector<16x8xf32> -> vector<16x8xf32>
    %43 = vector.extract_strided_slice %24 {offsets = [0, 8], sizes = [16, 8], strides = [1, 1]} : vector<16x96xf32> to vector<16x8xf32>
    %44 = vector.extract_strided_slice %24 {offsets = [0, 40], sizes = [16, 8], strides = [1, 1]} : vector<16x96xf32> to vector<16x8xf32>
    %45 = vector.extract_strided_slice %24 {offsets = [0, 72], sizes = [16, 8], strides = [1, 1]} : vector<16x96xf32> to vector<16x8xf32>
    %cst_17 = arith.constant dense<0.000000e+00> : vector<16x16xf32>
    %46 = tpu.matmul %43, %44, %cst_17 {dimension_numbers = #tpu.dot_dimension_numbers<[1], [1], [0], [0], [0, 0, 1, 0], [], []>} : vector<16x8xf32>, vector<16x8xf32>, vector<16x16xf32> -> vector<16x16xf32>
    %cst_18 = arith.constant 0.353553385 : f32
    %47 = vector.broadcast %cst_18 : f32 to vector<16x16xf32>
    %48 = arith.mulf %46, %47 : vector<16x16xf32>
    %49 = arith.addf %48, %17 : vector<16x16xf32>
    %cst_19 = arith.constant dense<0xFF800000> : vector<16xf32>
    %50 = vector.multi_reduction <maximumf>, %49, %cst_19 [1] : vector<16x16xf32> to vector<16xf32>
    %51 = vector.shape_cast %50 : vector<16xf32> to vector<16x1xf32>
    %52 = vector.broadcast %51 : vector<16x1xf32> to vector<16x16xf32>
    %53 = arith.subf %49, %52 : vector<16x16xf32>
    %54 = math.exp %53 : vector<16x16xf32>
    %cst_20 = arith.constant dense<0.000000e+00> : vector<16xf32>
    %55 = vector.multi_reduction <add>, %54, %cst_20 [1] : vector<16x16xf32> to vector<16xf32>
    %56 = vector.shape_cast %55 : vector<16xf32> to vector<16x1xf32>
    %57 = tpu.reciprocal %56 {approx = true} : vector<16x1xf32> -> vector<16x1xf32>
    %58 = vector.broadcast %57 : vector<16x1xf32> to vector<16x16xf32>
    %59 = arith.mulf %54, %58 : vector<16x16xf32>
    %cst_21 = arith.constant dense<0.000000e+00> : vector<16x8xf32>
    %60 = tpu.matmul %59, %45, %cst_21 {dimension_numbers = #tpu.dot_dimension_numbers<[1], [0], [0], [1], [0, 0, 1, 1], [], []>} : vector<16x16xf32>, vector<16x8xf32>, vector<16x8xf32> -> vector<16x8xf32>
    %61 = vector.extract_strided_slice %24 {offsets = [0, 16], sizes = [16, 8], strides = [1, 1]} : vector<16x96xf32> to vector<16x8xf32>
    %62 = vector.extract_strided_slice %24 {offsets = [0, 48], sizes = [16, 8], strides = [1, 1]} : vector<16x96xf32> to vector<16x8xf32>
    %63 = vector.extract_strided_slice %24 {offsets = [0, 80], sizes = [16, 8], strides = [1, 1]} : vector<16x96xf32> to vector<16x8xf32>
    %cst_22 = arith.constant dense<0.000000e+00> : vector<16x16xf32>
    %64 = tpu.matmul %61, %62, %cst_22 {dimension_numbers = #tpu.dot_dimension_numbers<[1], [1], [0], [0], [0, 0, 1, 0], [], []>} : vector<16x8xf32>, vector<16x8xf32>, vector<16x16xf32> -> vector<16x16xf32>
    %cst_23 = arith.constant 0.353553385 : f32
    %65 = vector.broadcast %cst_23 : f32 to vector<16x16xf32>
    %66 = arith.mulf %64, %65 : vector<16x16xf32>
    %67 = arith.addf %66, %17 : vector<16x16xf32>
    %cst_24 = arith.constant dense<0xFF800000> : vector<16xf32>
    %68 = vector.multi_reduction <maximumf>, %67, %cst_24 [1] : vector<16x16xf32> to vector<16xf32>
    %69 = vector.shape_cast %68 : vector<16xf32> to vector<16x1xf32>
    %70 = vector.broadcast %69 : vector<16x1xf32> to vector<16x16xf32>
    %71 = arith.subf %67, %70 : vector<16x16xf32>
    %72 = math.exp %71 : vector<16x16xf32>
    %cst_25 = arith.constant dense<0.000000e+00> : vector<16xf32>
    %73 = vector.multi_reduction <add>, %72, %cst_25 [1] : vector<16x16xf32> to vector<16xf32>
    %74 = vector.shape_cast %73 : vector<16xf32> to vector<16x1xf32>
    %75 = tpu.reciprocal %74 {approx = true} : vector<16x1xf32> -> vector<16x1xf32>
    %76 = vector.broadcast %75 : vector<16x1xf32> to vector<16x16xf32>
    %77 = arith.mulf %72, %76 : vector<16x16xf32>
    %cst_26 = arith.constant dense<0.000000e+00> : vector<16x8xf32>
    %78 = tpu.matmul %77, %63, %cst_26 {dimension_numbers = #tpu.dot_dimension_numbers<[1], [0], [0], [1], [0, 0, 1, 1], [], []>} : vector<16x16xf32>, vector<16x8xf32>, vector<16x8xf32> -> vector<16x8xf32>
    %79 = vector.extract_strided_slice %24 {offsets = [0, 24], sizes = [16, 8], strides = [1, 1]} : vector<16x96xf32> to vector<16x8xf32>
    %80 = vector.extract_strided_slice %24 {offsets = [0, 56], sizes = [16, 8], strides = [1, 1]} : vector<16x96xf32> to vector<16x8xf32>
    %81 = vector.extract_strided_slice %24 {offsets = [0, 88], sizes = [16, 8], strides = [1, 1]} : vector<16x96xf32> to vector<16x8xf32>
    %cst_27 = arith.constant dense<0.000000e+00> : vector<16x16xf32>
    %82 = tpu.matmul %79, %80, %cst_27 {dimension_numbers = #tpu.dot_dimension_numbers<[1], [1], [0], [0], [0, 0, 1, 0], [], []>} : vector<16x8xf32>, vector<16x8xf32>, vector<16x16xf32> -> vector<16x16xf32>
    %cst_28 = arith.constant 0.353553385 : f32
    %83 = vector.broadcast %cst_28 : f32 to vector<16x16xf32>
    %84 = arith.mulf %82, %83 : vector<16x16xf32>
    %85 = arith.addf %84, %17 : vector<16x16xf32>
    %cst_29 = arith.constant dense<0xFF800000> : vector<16xf32>
    %86 = vector.multi_reduction <maximumf>, %85, %cst_29 [1] : vector<16x16xf32> to vector<16xf32>
    %87 = vector.shape_cast %86 : vector<16xf32> to vector<16x1xf32>
    %88 = vector.broadcast %87 : vector<16x1xf32> to vector<16x16xf32>
    %89 = arith.subf %85, %88 : vector<16x16xf32>
    %90 = math.exp %89 : vector<16x16xf32>
    %cst_30 = arith.constant dense<0.000000e+00> : vector<16xf32>
    %91 = vector.multi_reduction <add>, %90, %cst_30 [1] : vector<16x16xf32> to vector<16xf32>
    %92 = vector.shape_cast %91 : vector<16xf32> to vector<16x1xf32>
    %93 = tpu.reciprocal %92 {approx = true} : vector<16x1xf32> -> vector<16x1xf32>
    %94 = vector.broadcast %93 : vector<16x1xf32> to vector<16x16xf32>
    %95 = arith.mulf %90, %94 : vector<16x16xf32>
    %cst_31 = arith.constant dense<0.000000e+00> : vector<16x8xf32>
    %96 = tpu.matmul %95, %81, %cst_31 {dimension_numbers = #tpu.dot_dimension_numbers<[1], [0], [0], [1], [0, 0, 1, 1], [], []>} : vector<16x16xf32>, vector<16x8xf32>, vector<16x8xf32> -> vector<16x8xf32>
    %97 = tpu.concatenate %42, %60, %78, %96 in 1 : vector<16x8xf32>, vector<16x8xf32>, vector<16x8xf32>, vector<16x8xf32> -> vector<16x32xf32>
    %c0_32 = arith.constant 0 : index
    %c0_33 = arith.constant 0 : index
    %c0_34 = arith.constant 0 : index
    %98 = vector.load %arg5[%c0_32, %c0_33, %c0_34] : memref<1x32x32xf32, #tpu.memory_space<vmem>>, vector<1x32x32xf32>
    %99 = vector.shape_cast %98 : vector<1x32x32xf32> to vector<32x32xf32>
    %cst_35 = arith.constant dense<0.000000e+00> : vector<16x32xf32>
    %100 = tpu.matmul %97, %99, %cst_35 {dimension_numbers = #tpu.dot_dimension_numbers<[1], [0], [0], [1], [0, 0, 1, 1], [], []>} : vector<16x32xf32>, vector<32x32xf32>, vector<16x32xf32> -> vector<16x32xf32>
    %c0_36 = arith.constant 0 : index
    %c0_37 = arith.constant 0 : index
    %c0_38 = arith.constant 0 : index
    %101 = vector.load %arg6[%c0_36, %c0_37, %c0_38] : memref<1x8x32xf32, #tpu.memory_space<vmem>>, vector<1x1x32xf32>
    %102 = vector.shape_cast %101 : vector<1x1x32xf32> to vector<1x32xf32>
    %103 = vector.broadcast %102 : vector<1x32xf32> to vector<16x32xf32>
    %104 = arith.addf %100, %103 : vector<16x32xf32>
    %105 = arith.addf %3, %104 : vector<16x32xf32>
    %c0_39 = arith.constant 0 : index
    %c1 = arith.constant 1 : index
    %c0_40 = arith.constant 0 : index
    %106 = vector.load %arg6[%c0_39, %c1, %c0_40] : memref<1x8x32xf32, #tpu.memory_space<vmem>>, vector<1x1x32xf32>
    %107 = vector.shape_cast %106 : vector<1x1x32xf32> to vector<1x32xf32>
    %c0_41 = arith.constant 0 : index
    %c2 = arith.constant 2 : index
    %c0_42 = arith.constant 0 : index
    %108 = vector.load %arg6[%c0_41, %c2, %c0_42] : memref<1x8x32xf32, #tpu.memory_space<vmem>>, vector<1x1x32xf32>
    %109 = vector.shape_cast %108 : vector<1x1x32xf32> to vector<1x32xf32>
    %cst_43 = arith.constant dense<0.000000e+00> : vector<16xf32>
    %110 = vector.multi_reduction <add>, %105, %cst_43 [1] : vector<16x32xf32> to vector<16xf32>
    %111 = vector.shape_cast %110 : vector<16xf32> to vector<16x1xf32>
    %cst_44 = arith.constant 3.200000e+01 : f32
    %112 = vector.broadcast %cst_44 : f32 to vector<16x1xf32>
    %113 = arith.divf %111, %112 : vector<16x1xf32>
    %114 = vector.broadcast %113 : vector<16x1xf32> to vector<16x32xf32>
    %115 = arith.subf %105, %114 : vector<16x32xf32>
    %116 = arith.mulf %115, %115 : vector<16x32xf32>
    %cst_45 = arith.constant dense<0.000000e+00> : vector<16xf32>
    %117 = vector.multi_reduction <add>, %116, %cst_45 [1] : vector<16x32xf32> to vector<16xf32>
    %118 = vector.shape_cast %117 : vector<16xf32> to vector<16x1xf32>
    %cst_46 = arith.constant 3.200000e+01 : f32
    %119 = vector.broadcast %cst_46 : f32 to vector<16x1xf32>
    %120 = arith.divf %118, %119 : vector<16x1xf32>
    %121 = vector.broadcast %113 : vector<16x1xf32> to vector<16x32xf32>
    %122 = arith.subf %105, %121 : vector<16x32xf32>
    %cst_47 = arith.constant 9.99999974E-6 : f32
    %123 = vector.broadcast %cst_47 : f32 to vector<16x1xf32>
    %124 = arith.addf %120, %123 : vector<16x1xf32>
    %125 = math.rsqrt %124 : vector<16x1xf32>
    %126 = vector.broadcast %125 : vector<16x1xf32> to vector<16x32xf32>
    %127 = arith.mulf %122, %126 : vector<16x32xf32>
    %128 = vector.broadcast %107 : vector<1x32xf32> to vector<16x32xf32>
    %129 = arith.mulf %127, %128 : vector<16x32xf32>
    %130 = vector.broadcast %109 : vector<1x32xf32> to vector<16x32xf32>
    %131 = arith.addf %129, %130 : vector<16x32xf32>
    %132 = arith.truncf %131 : vector<16x32xf32> to vector<16x32xbf16>
    %cst_48 = arith.constant 0.000000e+00 : f32
    %133 = vector.broadcast %cst_48 : f32 to vector<16x32xf32>
    %c0_49 = arith.constant 0 : index
    %c0_50 = arith.constant 0 : index
    %c0_51 = arith.constant 0 : index
    %134 = vector.load %arg8[%c0_49, %c0_50, %c0_51] : memref<1x32x2048xbf16, #tpu.memory_space<vmem>>, vector<1x32x512xbf16>
    %135 = vector.shape_cast %134 : vector<1x32x512xbf16> to vector<32x512xbf16>
    %cst_52 = arith.constant dense<0.000000e+00> : vector<16x512xf32>
    %136 = tpu.matmul %132, %135, %cst_52 {dimension_numbers = #tpu.dot_dimension_numbers<[1], [0], [0], [1], [0, 0, 1, 1], [], []>} : vector<16x32xbf16>, vector<32x512xbf16>, vector<16x512xf32> -> vector<16x512xf32>
    %c0_53 = arith.constant 0 : index
    %c0_54 = arith.constant 0 : index
    %c0_55 = arith.constant 0 : index
    %137 = vector.load %arg7[%c0_53, %c0_54, %c0_55] : memref<1x1x2048xf32, #tpu.memory_space<vmem>>, vector<1x1x512xf32>
    %138 = vector.shape_cast %137 : vector<1x1x512xf32> to vector<1x512xf32>
    %139 = vector.broadcast %138 : vector<1x512xf32> to vector<16x512xf32>
    %140 = arith.addf %136, %139 : vector<16x512xf32>
    %cst_56 = arith.constant 0.000000e+00 : f32
    %141 = vector.broadcast %cst_56 : f32 to vector<16x512xf32>
    %142 = arith.maximumf %140, %141 : vector<16x512xf32>
    %143 = arith.truncf %142 : vector<16x512xf32> to vector<16x512xbf16>
    %c0_57 = arith.constant 0 : index
    %c0_58 = arith.constant 0 : index
    %c0_59 = arith.constant 0 : index
    %144 = vector.load %arg9[%c0_57, %c0_58, %c0_59] : memref<1x2048x32xbf16, #tpu.memory_space<vmem>>, vector<1x512x32xbf16>
    %145 = vector.shape_cast %144 : vector<1x512x32xbf16> to vector<512x32xbf16>
    %cst_60 = arith.constant dense<0.000000e+00> : vector<16x32xf32>
    %146 = tpu.matmul %143, %145, %cst_60 {dimension_numbers = #tpu.dot_dimension_numbers<[1], [0], [0], [1], [0, 0, 1, 1], [], []>} : vector<16x512xbf16>, vector<512x32xbf16>, vector<16x32xf32> -> vector<16x32xf32>
    %147 = arith.addf %133, %146 : vector<16x32xf32>
    %c0_61 = arith.constant 0 : index
    %c0_62 = arith.constant 0 : index
    %c512 = arith.constant 512 : index
    %148 = vector.load %arg8[%c0_61, %c0_62, %c512] : memref<1x32x2048xbf16, #tpu.memory_space<vmem>>, vector<1x32x512xbf16>
    %149 = vector.shape_cast %148 : vector<1x32x512xbf16> to vector<32x512xbf16>
    %cst_63 = arith.constant dense<0.000000e+00> : vector<16x512xf32>
    %150 = tpu.matmul %132, %149, %cst_63 {dimension_numbers = #tpu.dot_dimension_numbers<[1], [0], [0], [1], [0, 0, 1, 1], [], []>} : vector<16x32xbf16>, vector<32x512xbf16>, vector<16x512xf32> -> vector<16x512xf32>
    %c0_64 = arith.constant 0 : index
    %c0_65 = arith.constant 0 : index
    %c512_66 = arith.constant 512 : index
    %151 = vector.load %arg7[%c0_64, %c0_65, %c512_66] : memref<1x1x2048xf32, #tpu.memory_space<vmem>>, vector<1x1x512xf32>
    %152 = vector.shape_cast %151 : vector<1x1x512xf32> to vector<1x512xf32>
    %153 = vector.broadcast %152 : vector<1x512xf32> to vector<16x512xf32>
    %154 = arith.addf %150, %153 : vector<16x512xf32>
    %cst_67 = arith.constant 0.000000e+00 : f32
    %155 = vector.broadcast %cst_67 : f32 to vector<16x512xf32>
    %156 = arith.maximumf %154, %155 : vector<16x512xf32>
    %157 = arith.truncf %156 : vector<16x512xf32> to vector<16x512xbf16>
    %c0_68 = arith.constant 0 : index
    %c512_69 = arith.constant 512 : index
    %c0_70 = arith.constant 0 : index
    %158 = vector.load %arg9[%c0_68, %c512_69, %c0_70] : memref<1x2048x32xbf16, #tpu.memory_space<vmem>>, vector<1x512x32xbf16>
    %159 = vector.shape_cast %158 : vector<1x512x32xbf16> to vector<512x32xbf16>
    %cst_71 = arith.constant dense<0.000000e+00> : vector<16x32xf32>
    %160 = tpu.matmul %157, %159, %cst_71 {dimension_numbers = #tpu.dot_dimension_numbers<[1], [0], [0], [1], [0, 0, 1, 1], [], []>} : vector<16x512xbf16>, vector<512x32xbf16>, vector<16x32xf32> -> vector<16x32xf32>
    %161 = arith.addf %147, %160 : vector<16x32xf32>
    %c0_72 = arith.constant 0 : index
    %c0_73 = arith.constant 0 : index
    %c1024 = arith.constant 1024 : index
    %162 = vector.load %arg8[%c0_72, %c0_73, %c1024] : memref<1x32x2048xbf16, #tpu.memory_space<vmem>>, vector<1x32x512xbf16>
    %163 = vector.shape_cast %162 : vector<1x32x512xbf16> to vector<32x512xbf16>
    %cst_74 = arith.constant dense<0.000000e+00> : vector<16x512xf32>
    %164 = tpu.matmul %132, %163, %cst_74 {dimension_numbers = #tpu.dot_dimension_numbers<[1], [0], [0], [1], [0, 0, 1, 1], [], []>} : vector<16x32xbf16>, vector<32x512xbf16>, vector<16x512xf32> -> vector<16x512xf32>
    %c0_75 = arith.constant 0 : index
    %c0_76 = arith.constant 0 : index
    %c1024_77 = arith.constant 1024 : index
    %165 = vector.load %arg7[%c0_75, %c0_76, %c1024_77] : memref<1x1x2048xf32, #tpu.memory_space<vmem>>, vector<1x1x512xf32>
    %166 = vector.shape_cast %165 : vector<1x1x512xf32> to vector<1x512xf32>
    %167 = vector.broadcast %166 : vector<1x512xf32> to vector<16x512xf32>
    %168 = arith.addf %164, %167 : vector<16x512xf32>
    %cst_78 = arith.constant 0.000000e+00 : f32
    %169 = vector.broadcast %cst_78 : f32 to vector<16x512xf32>
    %170 = arith.maximumf %168, %169 : vector<16x512xf32>
    %171 = arith.truncf %170 : vector<16x512xf32> to vector<16x512xbf16>
    %c0_79 = arith.constant 0 : index
    %c1024_80 = arith.constant 1024 : index
    %c0_81 = arith.constant 0 : index
    %172 = vector.load %arg9[%c0_79, %c1024_80, %c0_81] : memref<1x2048x32xbf16, #tpu.memory_space<vmem>>, vector<1x512x32xbf16>
    %173 = vector.shape_cast %172 : vector<1x512x32xbf16> to vector<512x32xbf16>
    %cst_82 = arith.constant dense<0.000000e+00> : vector<16x32xf32>
    %174 = tpu.matmul %171, %173, %cst_82 {dimension_numbers = #tpu.dot_dimension_numbers<[1], [0], [0], [1], [0, 0, 1, 1], [], []>} : vector<16x512xbf16>, vector<512x32xbf16>, vector<16x32xf32> -> vector<16x32xf32>
    %175 = arith.addf %161, %174 : vector<16x32xf32>
    %c0_83 = arith.constant 0 : index
    %c0_84 = arith.constant 0 : index
    %c1536 = arith.constant 1536 : index
    %176 = vector.load %arg8[%c0_83, %c0_84, %c1536] : memref<1x32x2048xbf16, #tpu.memory_space<vmem>>, vector<1x32x512xbf16>
    %177 = vector.shape_cast %176 : vector<1x32x512xbf16> to vector<32x512xbf16>
    %cst_85 = arith.constant dense<0.000000e+00> : vector<16x512xf32>
    %178 = tpu.matmul %132, %177, %cst_85 {dimension_numbers = #tpu.dot_dimension_numbers<[1], [0], [0], [1], [0, 0, 1, 1], [], []>} : vector<16x32xbf16>, vector<32x512xbf16>, vector<16x512xf32> -> vector<16x512xf32>
    %c0_86 = arith.constant 0 : index
    %c0_87 = arith.constant 0 : index
    %c1536_88 = arith.constant 1536 : index
    %179 = vector.load %arg7[%c0_86, %c0_87, %c1536_88] : memref<1x1x2048xf32, #tpu.memory_space<vmem>>, vector<1x1x512xf32>
    %180 = vector.shape_cast %179 : vector<1x1x512xf32> to vector<1x512xf32>
    %181 = vector.broadcast %180 : vector<1x512xf32> to vector<16x512xf32>
    %182 = arith.addf %178, %181 : vector<16x512xf32>
    %cst_89 = arith.constant 0.000000e+00 : f32
    %183 = vector.broadcast %cst_89 : f32 to vector<16x512xf32>
    %184 = arith.maximumf %182, %183 : vector<16x512xf32>
    %185 = arith.truncf %184 : vector<16x512xf32> to vector<16x512xbf16>
    %c0_90 = arith.constant 0 : index
    %c1536_91 = arith.constant 1536 : index
    %c0_92 = arith.constant 0 : index
    %186 = vector.load %arg9[%c0_90, %c1536_91, %c0_92] : memref<1x2048x32xbf16, #tpu.memory_space<vmem>>, vector<1x512x32xbf16>
    %187 = vector.shape_cast %186 : vector<1x512x32xbf16> to vector<512x32xbf16>
    %cst_93 = arith.constant dense<0.000000e+00> : vector<16x32xf32>
    %188 = tpu.matmul %185, %187, %cst_93 {dimension_numbers = #tpu.dot_dimension_numbers<[1], [0], [0], [1], [0, 0, 1, 1], [], []>} : vector<16x512xbf16>, vector<512x32xbf16>, vector<16x32xf32> -> vector<16x32xf32>
    %189 = arith.addf %175, %188 : vector<16x32xf32>
    %c0_94 = arith.constant 0 : index
    %c3 = arith.constant 3 : index
    %c0_95 = arith.constant 0 : index
    %190 = vector.load %arg6[%c0_94, %c3, %c0_95] : memref<1x8x32xf32, #tpu.memory_space<vmem>>, vector<1x1x32xf32>
    %191 = vector.shape_cast %190 : vector<1x1x32xf32> to vector<1x32xf32>
    %192 = vector.broadcast %191 : vector<1x32xf32> to vector<16x32xf32>
    %193 = arith.addf %189, %192 : vector<16x32xf32>
    %194 = arith.addf %131, %193 : vector<16x32xf32>
    %c0_96 = arith.constant 0 : index
    %c4 = arith.constant 4 : index
    %c0_97 = arith.constant 0 : index
    %195 = vector.load %arg6[%c0_96, %c4, %c0_97] : memref<1x8x32xf32, #tpu.memory_space<vmem>>, vector<1x1x32xf32>
    %196 = vector.shape_cast %195 : vector<1x1x32xf32> to vector<1x32xf32>
    %c0_98 = arith.constant 0 : index
    %c5 = arith.constant 5 : index
    %c0_99 = arith.constant 0 : index
    %197 = vector.load %arg6[%c0_98, %c5, %c0_99] : memref<1x8x32xf32, #tpu.memory_space<vmem>>, vector<1x1x32xf32>
    %198 = vector.shape_cast %197 : vector<1x1x32xf32> to vector<1x32xf32>
    %cst_100 = arith.constant dense<0.000000e+00> : vector<16xf32>
    %199 = vector.multi_reduction <add>, %194, %cst_100 [1] : vector<16x32xf32> to vector<16xf32>
    %200 = vector.shape_cast %199 : vector<16xf32> to vector<16x1xf32>
    %cst_101 = arith.constant 3.200000e+01 : f32
    %201 = vector.broadcast %cst_101 : f32 to vector<16x1xf32>
    %202 = arith.divf %200, %201 : vector<16x1xf32>
    %203 = vector.broadcast %202 : vector<16x1xf32> to vector<16x32xf32>
    %204 = arith.subf %194, %203 : vector<16x32xf32>
    %205 = arith.mulf %204, %204 : vector<16x32xf32>
    %cst_102 = arith.constant dense<0.000000e+00> : vector<16xf32>
    %206 = vector.multi_reduction <add>, %205, %cst_102 [1] : vector<16x32xf32> to vector<16xf32>
    %207 = vector.shape_cast %206 : vector<16xf32> to vector<16x1xf32>
    %cst_103 = arith.constant 3.200000e+01 : f32
    %208 = vector.broadcast %cst_103 : f32 to vector<16x1xf32>
    %209 = arith.divf %207, %208 : vector<16x1xf32>
    %210 = vector.broadcast %202 : vector<16x1xf32> to vector<16x32xf32>
    %211 = arith.subf %194, %210 : vector<16x32xf32>
    %cst_104 = arith.constant 9.99999974E-6 : f32
    %212 = vector.broadcast %cst_104 : f32 to vector<16x1xf32>
    %213 = arith.addf %209, %212 : vector<16x1xf32>
    %214 = math.rsqrt %213 : vector<16x1xf32>
    %215 = vector.broadcast %214 : vector<16x1xf32> to vector<16x32xf32>
    %216 = arith.mulf %211, %215 : vector<16x32xf32>
    %217 = vector.broadcast %196 : vector<1x32xf32> to vector<16x32xf32>
    %218 = arith.mulf %216, %217 : vector<16x32xf32>
    %219 = vector.broadcast %198 : vector<1x32xf32> to vector<16x32xf32>
    %220 = arith.addf %218, %219 : vector<16x32xf32>
    %c0_105 = arith.constant 0 : index
    %c0_106 = arith.constant 0 : index
    %221 = vector.load %arg10[%c0_105, %c0_106] : memref<16x32xf32, #tpu.memory_space<vmem>>, vector<16x32xf32>
    tpu.vector_store %arg10[%c0_105, %c0_106], %220 {strides = array<i32>} : memref<16x32xf32, #tpu.memory_space<vmem>>, vector<16x32xf32>,
    return
  }
  func.func @transform_0(%arg0: i32) -> (i32, i32) {
    %c0_i32 = arith.constant 0 : i32
    %c0_i32_0 = arith.constant 0 : i32
    %c0_i32_1 = arith.constant 0 : i32
    return %c0_i32, %c0_i32_0 : i32, i32
  }
  func.func @transform_1(%arg0: i32) -> (i32, i32) {
    %c0_i32 = arith.constant 0 : i32
    %c0_i32_0 = arith.constant 0 : i32
    %c0_i32_1 = arith.constant 0 : i32
    return %c0_i32, %c0_i32_0 : i32, i32
  }
  func.func @transform_2(%arg0: i32) -> (i32, i32, i32) {
    %c0_i32 = arith.constant 0 : i32
    %c0_i32_0 = arith.constant 0 : i32
    %c0_i32_1 = arith.constant 0 : i32
    return %arg0, %c0_i32, %c0_i32_0 : i32, i32, i32
  }
  func.func @transform_3(%arg0: i32) -> (i32, i32, i32) {
    %c0_i32 = arith.constant 0 : i32
    %c0_i32_0 = arith.constant 0 : i32
    %c0_i32_1 = arith.constant 0 : i32
    return %arg0, %c0_i32, %c0_i32_0 : i32, i32, i32
  }
  func.func @transform_4(%arg0: i32) -> (i32, i32, i32) {
    %c0_i32 = arith.constant 0 : i32
    %c0_i32_0 = arith.constant 0 : i32
    %c0_i32_1 = arith.constant 0 : i32
    return %arg0, %c0_i32, %c0_i32_0 : i32, i32, i32
  }
  func.func @transform_5(%arg0: i32) -> (i32, i32, i32) {
    %c0_i32 = arith.constant 0 : i32
    %c0_i32_0 = arith.constant 0 : i32
    %c0_i32_1 = arith.constant 0 : i32
    return %arg0, %c0_i32, %c0_i32_0 : i32, i32, i32
  }
  func.func @transform_6(%arg0: i32) -> (i32, i32, i32) {
    %c0_i32 = arith.constant 0 : i32
    %c0_i32_0 = arith.constant 0 : i32
    %c0_i32_1 = arith.constant 0 : i32
    return %arg0, %c0_i32, %c0_i32_0 : i32, i32, i32
  }
  func.func @transform_7(%arg0: i32) -> (i32, i32, i32) {
    %c0_i32 = arith.constant 0 : i32
    %c0_i32_0 = arith.constant 0 : i32
    %c0_i32_1 = arith.constant 0 : i32
    return %arg0, %c0_i32, %c0_i32_0 : i32, i32, i32
  }
  func.func @transform_8(%arg0: i32) -> (i32, i32, i32) {
    %c0_i32 = arith.constant 0 : i32
    %c0_i32_0 = arith.constant 0 : i32
    %c0_i32_1 = arith.constant 0 : i32
    return %arg0, %c0_i32, %c0_i32_0 : i32, i32, i32
  }
  func.func @transform_9(%arg0: i32) -> (i32, i32) {
    %c0_i32 = arith.constant 0 : i32
    %c0_i32_0 = arith.constant 0 : i32
    %c0_i32_1 = arith.constant 0 : i32
    return %c0_i32, %c0_i32_0 : i32, i32
  }
}

</mosaic_0001>

<llo_original>
// kernel: global_adaptive_tsm.1
$region0: #{global_adaptive_tsm.1}
  #allocation0 [shape = 'u32[]', space=smem, size = 0x4, offset = 0x4, fixed_abs, tag = 'smem constant byte address 0x4 - core index']
  #allocation1 [shape = 'u32[144,128]{1,0:T(1,128)}', space=vmem, size = 0x12000, scoped, tag = 'internal scratch']
  %s0 = inlined_call_operand.vmem [shape: f32[16,32], index: 0, kind: input, shape index: {}]
  %s1 = inlined_call_operand.vmem [shape: f32[2,32], index: 1, kind: input, shape index: {}]
  %s2 = inlined_call_operand.vmem [shape: f32[2,32,96], index: 2, kind: input, shape index: {}]
  %s3 = inlined_call_operand.vmem [shape: f32[2,1,96], index: 3, kind: input, shape index: {}]
  %s4 = inlined_call_operand.vmem [shape: f32[2,32,32], index: 4, kind: input, shape index: {}]
  %s5 = inlined_call_operand.vmem [shape: f32[2,8,32], index: 5, kind: input, shape index: {}]
  %s6 = inlined_call_operand.vmem [shape: f32[2,1,2048], index: 6, kind: input, shape index: {}]
  %s7 = inlined_call_operand.vmem [shape: bf16[2,32,2048], index: 7, kind: input, shape index: {}]
  %s8 = inlined_call_operand.vmem [shape: bf16[2,2048,32], index: 8, kind: input, shape index: {}]
  %s9 = inlined_call_operand.hbm [shape: f32[16,32], index: 9, kind: output, shape index: {}]
  %s10 = sld [smem:[#allocation0]]
  $region73: #{global_adaptive_tsm.1} parent=0
    _
  %s12 = ssub.s32 1, %s10
  %s13 = scalar_select 0, %s12, %s10
  $region1: #{global_adaptive_tsm.1} parent=0
    #allocation2 [shape = 'u8[8192]{0}', space=vmem, size = 0x2000, scoped, tag = 'output window, operand 0, single buffered']
    #allocation3 [shape = 's32[2]{0}', space=sflag, size = 0x8, scoped, tag = 'scoped memory for global_adaptive_tsm.1']
    %14 = vsyncpa [#allocation3], 0
    loop: start=0, step=1, limit=4
    $region2: #{global_adaptive_tsm.1} parent=1 // loop_pre_header
      _
    $region3: #{global_adaptive_tsm.1} parent=1 // loop_header
      %s16 = sphi 0, %s20
      %p17 = scmp.ge.s32.totalorder %s16, 4
      %s24 = sphi 0, %s24
      %s26 = sphi 0, %s24
      %s27 = sphi 0, %s26
      %s41 = sphi 0, %s27
      %s45 = sphi 0, %s45
      %s47 = sphi 0, %s45
      %s48 = sphi 0, %s47
      %s62 = sphi 0, %s48
      %s68 = sphi 0, %s70
      %s71 = sphi 0, %s68
      %s72 = sphi 0, %s71
      %s88 = sphi 0, %s72
      %s94 = sphi 0, %s96
      %s97 = sphi 0, %s94
      %s98 = sphi 0, %s97
      %s114 = sphi 0, %s98
      %s120 = sphi 0, %s122
      %s123 = sphi 0, %s120
      %s124 = sphi 0, %s123
      %s140 = sphi 0, %s124
      %s146 = sphi 0, %s148
      %s149 = sphi 0, %s146
      %s150 = sphi 0, %s149
      %s166 = sphi 0, %s150
      %s172 = sphi 0, %s174
      %s175 = sphi 0, %s172
      %s176 = sphi 0, %s175
      %s192 = sphi 0, %s176
      %s198 = sphi 0, %s200
      %s201 = sphi 0, %s198
      %s202 = sphi 0, %s201
      %s218 = sphi 0, %s202
      %s224 = sphi 0, %s226
      %s227 = sphi 0, %s224
      %s228 = sphi 0, %s227
      %s244 = sphi 0, %s228
      %s248 = sphi 0, %s248
      %s250 = sphi 0, %s248
      %s251 = sphi 0, %s250
      %s265 = sphi 0, %s251
    $region4: #{global_adaptive_tsm.1} parent=1 // loop_header_branch
      %19 = sbr.rel (%p17) target = $region8
    $region5: #{global_adaptive_tsm.1} parent=1 // loop_body
      %s21 = ssub.s32 %s16, 1
      %s22 = ssub.s32 %s16, 2
      %s23 = sadd.s32 %s16, 1
      %s25 = sadd.s32 %s24, 1
      %p28 = scmp.eq.s32.totalorder %s16, 1
      %p29 = scmp.ne.s32.totalorder %s24, %s26
      %p30 = scmp.eq.s32.totalorder %s16, 0
      %p31 = por %p29, %p30
      %p32 = scmp.ne.s32.totalorder %s24, %s26
      %p33 = scmp.eq.s32.totalorder %s21, 1
      %p34 = por %p32, %p33
      %p35 = scmp.ne.s32.totalorder %s26, %s27
      %p36 = scmp.eq.s32.totalorder %s21, 0
      %p37 = por %p35, %p36
      %p38 = scmp.ne.s32.totalorder %s26, %s27
      %p39 = scmp.eq.s32.totalorder %s22, 1
      %p40 = por %p38, %p39
      %p42 = scmp.ne.s32.totalorder %s27, %s41
      %p43 = scmp.eq.s32.totalorder %s22, 0
      %p44 = por %p42, %p43
      %s46 = sadd.s32 %s45, 1
      %p49 = scmp.eq.s32.totalorder %s16, 1
      %p50 = scmp.ne.s32.totalorder %s45, %s47
      %p51 = scmp.eq.s32.totalorder %s16, 0
      %p52 = por %p50, %p51
      %p53 = scmp.ne.s32.totalorder %s45, %s47
      %p54 = scmp.eq.s32.totalorder %s21, 1
      %p55 = por %p53, %p54
      %p56 = scmp.ne.s32.totalorder %s47, %s48
      %p57 = scmp.eq.s32.totalorder %s21, 0
      %p58 = por %p56, %p57
      %p59 = scmp.ne.s32.totalorder %s47, %s48
      %p60 = scmp.eq.s32.totalorder %s22, 1
      %p61 = por %p59, %p60
      %p63 = scmp.ne.s32.totalorder %s48, %s62
      %p64 = scmp.eq.s32.totalorder %s22, 0
      %p65 = por %p63, %p64
      %s66 = ssub.s32 %s16, %s23
      %p67 = scmp.eq.s32.totalorder %s66, 0
      %s69 = sadd.s32 %s68, 1
      %s70 = scalar_select %p67, %s68, %s69
      %p73 = pneg %p67
      %p74 = scmp.eq.s32.totalorder %s16, 1
      %p75 = por %p73, %p74
      %p76 = scmp.ne.s32.totalorder %s68, %s71
      %p77 = scmp.eq.s32.totalorder %s16, 0
      %p78 = por %p76, %p77
      %p79 = scmp.ne.s32.totalorder %s68, %s71
      %p80 = scmp.eq.s32.totalorder %s21, 1
      %p81 = por %p79, %p80
      %p82 = scmp.ne.s32.totalorder %s71, %s72
      %p83 = scmp.eq.s32.totalorder %s21, 0
      %p84 = por %p82, %p83
      %p85 = scmp.ne.s32.totalorder %s71, %s72
      %p86 = scmp.eq.s32.totalorder %s22, 1
      %p87 = por %p85, %p86
      %p89 = scmp.ne.s32.totalorder %s72, %s88
      %p90 = scmp.eq.s32.totalorder %s22, 0
      %p91 = por %p89, %p90
      %s92 = ssub.s32 %s16, %s23
      %p93 = scmp.eq.s32.totalorder %s92, 0
      %s95 = sadd.s32 %s94, 1
      %s96 = scalar_select %p93, %s94, %s95
      %p99 = pneg %p93
      %p100 = scmp.eq.s32.totalorder %s16, 1
      %p101 = por %p99, %p100
      %p102 = scmp.ne.s32.totalorder %s94, %s97
      %p103 = scmp.eq.s32.totalorder %s16, 0
      %p104 = por %p102, %p103
      %p105 = scmp.ne.s32.totalorder %s94, %s97
      %p106 = scmp.eq.s32.totalorder %s21, 1
      %p107 = por %p105, %p106
      %p108 = scmp.ne.s32.totalorder %s97, %s98
      %p109 = scmp.eq.s32.totalorder %s21, 0
      %p110 = por %p108, %p109
      %p111 = scmp.ne.s32.totalorder %s97, %s98
      %p112 = scmp.eq.s32.totalorder %s22, 1
      %p113 = por %p111, %p112
      %p115 = scmp.ne.s32.totalorder %s98, %s114
      %p116 = scmp.eq.s32.totalorder %s22, 0
      %p117 = por %p115, %p116
      %s118 = ssub.s32 %s16, %s23
      %p119 = scmp.eq.s32.totalorder %s118, 0
      %s121 = sadd.s32 %s120, 1
      %s122 = scalar_select %p119, %s120, %s121
      %p125 = pneg %p119
      %p126 = scmp.eq.s32.totalorder %s16, 1
      %p127 = por %p125, %p126
      %p128 = scmp.ne.s32.totalorder %s120, %s123
      %p129 = scmp.eq.s32.totalorder %s16, 0
      %p130 = por %p128, %p129
      %p131 = scmp.ne.s32.totalorder %s120, %s123
      %p132 = scmp.eq.s32.totalorder %s21, 1
      %p133 = por %p131, %p132
      %p134 = scmp.ne.s32.totalorder %s123, %s124
      %p135 = scmp.eq.s32.totalorder %s21, 0
      %p136 = por %p134, %p135
      %p137 = scmp.ne.s32.totalorder %s123, %s124
      %p138 = scmp.eq.s32.totalorder %s22, 1
      %p139 = por %p137, %p138
      %p141 = scmp.ne.s32.totalorder %s124, %s140
      %p142 = scmp.eq.s32.totalorder %s22, 0
      %p143 = por %p141, %p142
      %s144 = ssub.s32 %s16, %s23
      %p145 = scmp.eq.s32.totalorder %s144, 0
      %s147 = sadd.s32 %s146, 1
      %s148 = scalar_select %p145, %s146, %s147
      %p151 = pneg %p145
      %p152 = scmp.eq.s32.totalorder %s16, 1
      %p153 = por %p151, %p152
      %p154 = scmp.ne.s32.totalorder %s146, %s149
      %p155 = scmp.eq.s32.totalorder %s16, 0
      %p156 = por %p154, %p155
      %p157 = scmp.ne.s32.totalorder %s146, %s149
      %p158 = scmp.eq.s32.totalorder %s21, 1
      %p159 = por %p157, %p158
      %p160 = scmp.ne.s32.totalorder %s149, %s150
      %p161 = scmp.eq.s32.totalorder %s21, 0
      %p162 = por %p160, %p161
      %p163 = scmp.ne.s32.totalorder %s149, %s150
      %p164 = scmp.eq.s32.totalorder %s22, 1
      %p165 = por %p163, %p164
      %p167 = scmp.ne.s32.totalorder %s150, %s166
      %p168 = scmp.eq.s32.totalorder %s22, 0
      %p169 = por %p167, %p168
      %s170 = ssub.s32 %s16, %s23
      %p171 = scmp.eq.s32.totalorder %s170, 0
      %s173 = sadd.s32 %s172, 1
      %s174 = scalar_select %p171, %s172, %s173
      %p177 = pneg %p171
      %p178 = scmp.eq.s32.totalorder %s16, 1
      %p179 = por %p177, %p178
      %p180 = scmp.ne.s32.totalorder %s172, %s175
      %p181 = scmp.eq.s32.totalorder %s16, 0
      %p182 = por %p180, %p181
      %p183 = scmp.ne.s32.totalorder %s172, %s175
      %p184 = scmp.eq.s32.totalorder %s21, 1
      %p185 = por %p183, %p184
      %p186 = scmp.ne.s32.totalorder %s175, %s176
      %p187 = scmp.eq.s32.totalorder %s21, 0
      %p188 = por %p186, %p187
      %p189 = scmp.ne.s32.totalorder %s175, %s176
      %p190 = scmp.eq.s32.totalorder %s22, 1
      %p191 = por %p189, %p190
      %p193 = scmp.ne.s32.totalorder %s176, %s192
      %p194 = scmp.eq.s32.totalorder %s22, 0
      %p195 = por %p193, %p194
      %s196 = ssub.s32 %s16, %s23
      %p197 = scmp.eq.s32.totalorder %s196, 0
      %s199 = sadd.s32 %s198, 1
      %s200 = scalar_select %p197, %s198, %s199
      %p203 = pneg %p197
      %p204 = scmp.eq.s32.totalorder %s16, 1
      %p205 = por %p203, %p204
      %p206 = scmp.ne.s32.totalorder %s198, %s201
      %p207 = scmp.eq.s32.totalorder %s16, 0
      %p208 = por %p206, %p207
      %p209 = scmp.ne.s32.totalorder %s198, %s201
      %p210 = scmp.eq.s32.totalorder %s21, 1
      %p211 = por %p209, %p210
      %p212 = scmp.ne.s32.totalorder %s201, %s202
      %p213 = scmp.eq.s32.totalorder %s21, 0
      %p214 = por %p212, %p213
      %p215 = scmp.ne.s32.totalorder %s201, %s202
      %p216 = scmp.eq.s32.totalorder %s22, 1
      %p217 = por %p215, %p216
      %p219 = scmp.ne.s32.totalorder %s202, %s218
      %p220 = scmp.eq.s32.totalorder %s22, 0
      %p221 = por %p219, %p220
      %s222 = ssub.s32 %s16, %s23
      %p223 = scmp.eq.s32.totalorder %s222, 0
      %s225 = sadd.s32 %s224, 1
      %s226 = scalar_select %p223, %s224, %s225
      %p229 = pneg %p223
      %p230 = scmp.eq.s32.totalorder %s16, 1
      %p231 = por %p229, %p230
      %p232 = scmp.ne.s32.totalorder %s224, %s227
      %p233 = scmp.eq.s32.totalorder %s16, 0
      %p234 = por %p232, %p233
      %p235 = scmp.ne.s32.totalorder %s224, %s227
      %p236 = scmp.eq.s32.totalorder %s21, 1
      %p237 = por %p235, %p236
      %p238 = scmp.ne.s32.totalorder %s227, %s228
      %p239 = scmp.eq.s32.totalorder %s21, 0
      %p240 = por %p238, %p239
      %p241 = scmp.ne.s32.totalorder %s227, %s228
      %p242 = scmp.eq.s32.totalorder %s22, 1
      %p243 = por %p241, %p242
      %p245 = scmp.ne.s32.totalorder %s228, %s244
      %p246 = scmp.eq.s32.totalorder %s22, 0
      %p247 = por %p245, %p246
      %s249 = sadd.s32 %s248, 1
      %p252 = scmp.eq.s32.totalorder %s16, 1
      %p253 = scmp.ne.s32.totalorder %s248, %s250
      %p254 = scmp.eq.s32.totalorder %s16, 0
      %p255 = por %p253, %p254
      %p256 = scmp.ne.s32.totalorder %s248, %s250
      %p257 = scmp.eq.s32.totalorder %s21, 1
      %p258 = por %p256, %p257
      %p259 = scmp.ne.s32.totalorder %s250, %s251
      %p260 = scmp.eq.s32.totalorder %s21, 0
      %p261 = por %p259, %p260
      %p262 = scmp.ne.s32.totalorder %s250, %s251
      %p263 = scmp.eq.s32.totalorder %s22, 1
      %p264 = por %p262, %p263
      %p266 = scmp.ne.s32.totalorder %s251, %s265
      %p267 = scmp.eq.s32.totalorder %s22, 0
      %p268 = por %p266, %p267
      %p269 = scmp.le.s32.totalorder 1, %s16
      %p270 = scmp.lt.s32.totalorder %s16, 3
      %p271 = pnand %p269, %p270
      %p272 = pneg %p271
      // Predicated region
      $region9: #{global_adaptive_tsm.1} parent=5 // pred_check
        _
      $region10: #{global_adaptive_tsm.1} parent=5 // pred_check_branch
        %274 = sbr.rel (%p271) target = $region12
      $region11: #{global_adaptive_tsm.1} parent=5 // pred_region
        %s275 = ssub.s32 %s16, 1
        // Predicated region
        $region13: #{global_adaptive_tsm.1} parent=11 // pred_check
          %p276 = pneg %p37
        $region14: #{global_adaptive_tsm.1} parent=11 // pred_check_branch
          %278 = sbr.rel (%p276) target = $region16
        $region15: #{global_adaptive_tsm.1} parent=11 // pred_region
          _
        $region16: #{global_adaptive_tsm.1} parent=11 // pred_fallthru
          _
        // Predicated region
        $region17: #{global_adaptive_tsm.1} parent=11 // pred_check
          %p279 = pneg %p58
        $region18: #{global_adaptive_tsm.1} parent=11 // pred_check_branch
          %281 = sbr.rel (%p279) target = $region20
        $region19: #{global_adaptive_tsm.1} parent=11 // pred_region
          _
        $region20: #{global_adaptive_tsm.1} parent=11 // pred_fallthru
          _
      $region12: #{global_adaptive_tsm.1} parent=5 // pred_fallthru
        _
      %p282 = scmp.lt.s32.totalorder %s16, 2
      // Predicated region
      $region21: #{global_adaptive_tsm.1} parent=5 // pred_check
        %p283 = pneg %p282
      $region22: #{global_adaptive_tsm.1} parent=5 // pred_check_branch
        %285 = sbr.rel (%p283) target = $region24
      $region23: #{global_adaptive_tsm.1} parent=5 // pred_region
        // Predicated region
        $region25: #{global_adaptive_tsm.1} parent=23 // pred_check
          %p286 = pneg %p78
        $region26: #{global_adaptive_tsm.1} parent=23 // pred_check_branch
          %288 = sbr.rel (%p286) target = $region28
        $region27: #{global_adaptive_tsm.1} parent=23 // pred_region
          %p289 = scmp.lt.s32.totalorder %s16, 1
          %s290 = scalar_select %p289, %s16, 1
          %s291 = smul.addr %s290, 4
          %s292 = smul.addr %s291, 8
          %s293 = scalar_lea.vmem %s2, %s292
        $region28: #{global_adaptive_tsm.1} parent=23 // pred_fallthru
          _
        // Predicated region
        $region29: #{global_adaptive_tsm.1} parent=23 // pred_check
          %p294 = pneg %p104
        $region30: #{global_adaptive_tsm.1} parent=23 // pred_check_branch
          %296 = sbr.rel (%p294) target = $region32
        $region31: #{global_adaptive_tsm.1} parent=23 // pred_region
          %p297 = scmp.lt.s32.totalorder %s16, 1
          %s298 = scalar_select %p297, %s16, 1
          %s299 = scalar_lea.vmem %s3, %s298
        $region32: #{global_adaptive_tsm.1} parent=23 // pred_fallthru
          _
        // Predicated region
        $region33: #{global_adaptive_tsm.1} parent=23 // pred_check
          %p300 = pneg %p130
        $region34: #{global_adaptive_tsm.1} parent=23 // pred_check_branch
          %302 = sbr.rel (%p300) target = $region36
        $region35: #{global_adaptive_tsm.1} parent=23 // pred_region
          %p303 = scmp.lt.s32.totalorder %s16, 1
          %s304 = scalar_select %p303, %s16, 1
          %s305 = smul.addr %s304, 4
          %s306 = smul.addr %s305, 8
          %s307 = scalar_lea.vmem %s4, %s306
        $region36: #{global_adaptive_tsm.1} parent=23 // pred_fallthru
          _
        // Predicated region
        $region37: #{global_adaptive_tsm.1} parent=23 // pred_check
          %p308 = pneg %p156
        $region38: #{global_adaptive_tsm.1} parent=23 // pred_check_branch
          %310 = sbr.rel (%p308) target = $region40
        $region39: #{global_adaptive_tsm.1} parent=23 // pred_region
          %p311 = scmp.lt.s32.totalorder %s16, 1
          %s312 = scalar_select %p311, %s16, 1
          %s313 = smul.addr %s312, 8
          %s314 = scalar_lea.vmem %s5, %s313
        $region40: #{global_adaptive_tsm.1} parent=23 // pred_fallthru
          _
        // Predicated region
        $region41: #{global_adaptive_tsm.1} parent=23 // pred_check
          %p315 = pneg %p182
        $region42: #{global_adaptive_tsm.1} parent=23 // pred_check_branch
          %317 = sbr.rel (%p315) target = $region44
        $region43: #{global_adaptive_tsm.1} parent=23 // pred_region
          %p318 = scmp.lt.s32.totalorder %s16, 1
          %s319 = scalar_select %p318, %s16, 1
          %s320 = smul.addr %s319, 16
          %s321 = scalar_lea.vmem %s6, %s320
        $region44: #{global_adaptive_tsm.1} parent=23 // pred_fallthru
          _
        // Predicated region
        $region45: #{global_adaptive_tsm.1} parent=23 // pred_check
          %p322 = pneg %p208
        $region46: #{global_adaptive_tsm.1} parent=23 // pred_check_branch
          %324 = sbr.rel (%p322) target = $region48
        $region47: #{global_adaptive_tsm.1} parent=23 // pred_region
          %p325 = scmp.lt.s32.totalorder %s16, 1
          %s326 = scalar_select %p325, %s16, 1
          %s327 = smul.addr %s326, 64
          %s328 = smul.addr %s327, 4
          %s329 = scalar_lea.vmem %s7, %s328
        $region48: #{global_adaptive_tsm.1} parent=23 // pred_fallthru
          _
        // Predicated region
        $region49: #{global_adaptive_tsm.1} parent=23 // pred_check
          %p330 = pneg %p234
        $region50: #{global_adaptive_tsm.1} parent=23 // pred_check_branch
          %332 = sbr.rel (%p330) target = $region52
        $region51: #{global_adaptive_tsm.1} parent=23 // pred_region
          %p333 = scmp.lt.s32.totalorder %s16, 1
          %s334 = scalar_select %p333, %s16, 1
          %s335 = smul.addr %s334, 256
          %s336 = smul.addr %s335, 4
          %s337 = scalar_lea.vmem %s8, %s336
        $region52: #{global_adaptive_tsm.1} parent=23 // pred_fallthru
          _
      $region24: #{global_adaptive_tsm.1} parent=5 // pred_fallthru
        _
      %p338 = scmp.le.s32.totalorder 1, %s16
      %p339 = scmp.lt.s32.totalorder %s16, 3
      %p340 = pnand %p338, %p339
      %p341 = pneg %p340
      // Predicated region
      $region53: #{global_adaptive_tsm.1} parent=5 // pred_check
        _
      $region54: #{global_adaptive_tsm.1} parent=5 // pred_check_branch
        %343 = sbr.rel (%p340) target = $region56
      $region55: #{global_adaptive_tsm.1} parent=5 // pred_region
        %s344 = ssub.s32 %s16, 1
        %p345 = pneg %p37
        %p346 = pneg %p34
        %p347 = pneg %p58
        %p348 = pneg %p55
        %p349 = scmp.lt.s32.totalorder %s21, 1
        %s350 = scalar_select %p349, %s21, 1
        %s351 = smul.addr %s350, 4
        %s352 = smul.addr %s351, 8
        %s353 = scalar_lea.vmem %s2, %s352
        %p354 = pneg %p84
        %p355 = pneg %p81
        %p356 = scmp.lt.s32.totalorder %s21, 1
        %s357 = scalar_select %p356, %s21, 1
        %s358 = scalar_lea.vmem %s3, %s357
        %p359 = pneg %p110
        %p360 = pneg %p107
        %p361 = scmp.lt.s32.totalorder %s21, 1
        %s362 = scalar_select %p361, %s21, 1
        %s363 = smul.addr %s362, 4
        %s364 = smul.addr %s363, 8
        %s365 = scalar_lea.vmem %s4, %s364
        %p366 = pneg %p136
        %p367 = pneg %p133
        %p368 = scmp.lt.s32.totalorder %s21, 1
        %s369 = scalar_select %p368, %s21, 1
        %s370 = smul.addr %s369, 8
        %s371 = scalar_lea.vmem %s5, %s370
        %p372 = pneg %p162
        %p373 = pneg %p159
        %p374 = scmp.lt.s32.totalorder %s21, 1
        %s375 = scalar_select %p374, %s21, 1
        %s376 = smul.addr %s375, 16
        %s377 = scalar_lea.vmem %s6, %s376
        %p378 = pneg %p188
        %p379 = pneg %p185
        %p380 = scmp.lt.s32.totalorder %s21, 1
        %s381 = scalar_select %p380, %s21, 1
        %s382 = smul.addr %s381, 64
        %s383 = smul.addr %s382, 4
        %s384 = scalar_lea.vmem %s7, %s383
        %p385 = pneg %p214
        %p386 = pneg %p211
        %p387 = scmp.lt.s32.totalorder %s21, 1
        %s388 = scalar_select %p387, %s21, 1
        %s389 = smul.addr %s388, 256
        %s390 = smul.addr %s389, 4
        %s391 = scalar_lea.vmem %s8, %s390
        %p392 = pneg %p240
        %p393 = pneg %p237
        %p394 = pneg %p261
        %p395 = pneg %p258
        %p396 = scmp.lt.s32.totalorder %s21, 1
        %s397 = scalar_select %p396, %s21, 1
        %s398 = smul.addr %s397, 4
        %s399 = smul.addr %s398, 8
        %s400 = scalar_lea.vmem %s2, %s399
        %p401 = scmp.lt.s32.totalorder %s21, 1
        %s402 = scalar_select %p401, %s21, 1
        %s403 = scalar_lea.vmem %s3, %s402
        %p404 = scmp.lt.s32.totalorder %s21, 1
        %s405 = scalar_select %p404, %s21, 1
        %s406 = smul.addr %s405, 4
        %s407 = smul.addr %s406, 8
        %s408 = scalar_lea.vmem %s4, %s407
        %p409 = scmp.lt.s32.totalorder %s21, 1
        %s410 = scalar_select %p409, %s21, 1
        %s411 = smul.addr %s410, 8
        %s412 = scalar_lea.vmem %s5, %s411
        %p413 = scmp.lt.s32.totalorder %s21, 1
        %s414 = scalar_select %p413, %s21, 1
        %s415 = smul.addr %s414, 16
        %s416 = scalar_lea.vmem %s6, %s415
        %p417 = scmp.lt.s32.totalorder %s21, 1
        %s418 = scalar_select %p417, %s21, 1
        %s419 = smul.addr %s418, 64
        %s420 = smul.addr %s419, 4
        %s421 = scalar_lea.vmem %s7, %s420
        %p422 = scmp.lt.s32.totalorder %s21, 1
        %s423 = scalar_select %p422, %s21, 1
        %s424 = smul.addr %s423, 256
        %s425 = smul.addr %s424, 4
        %s426 = scalar_lea.vmem %s8, %s425
        %p428 = scmp.eq.s32.totalorder %s21, 0
        // Predicated region
        $region57: #{global_adaptive_tsm.1} parent=55 // pred_check
          %p429 = pneg %p428
        $region58: #{global_adaptive_tsm.1} parent=55 // pred_check_branch
          %431 = sbr.rel (%p429) target = $region60
        $region59: #{global_adaptive_tsm.1} parent=55 // pred_region
          %v432 = vld [vmem:[%s0] sm:$0xff]
          %v433 = vld [vmem:[%s0 + $0x8] sm:$0xff]
          %v434 = vld [vmem:[%s1] sm:$0x1]
          %v435 = vlaneseq
          %v436 = vshrl.u32 %v435, 7
          %v437 = vsub.s32 0, %v436
          %v438 = vrot.slane %v434, %v437
          %v439 = vmul.f32 %v432, %v438
          %v440 = vmul.f32 %v433, %v438
          %vm441 = vcmask 261120
          %v442 = vsel %vm441, %v439, 0.0
          %443 = vadd.xlane.f32.xlu0 %v442
          %v444 = vpop.xlane.xlu0 %443
          %v445 = vsel %vm441, %v440, 0.0
          %446 = vadd.xlane.f32.xlu0 %v445
          %v447 = vpop.xlane.xlu0 %446
          %v448 = vld [vmem:[%s1 + $0x1] sm:$0x1]
          %v449 = vlaneseq
          %v450 = vshrl.u32 %v449, 7
          %v451 = vsub.s32 0, %v450
          %v452 = vrot.slane %v448, %v451
          %v453 = vadd.f32 %v444, %v452
          %v454 = vadd.f32 %v447, %v452
          %v455 = vxor.u32 %v453, 2147483648
          %v456 = vxor.u32 %v454, 2147483648
          %v457 = vmul.f32 %v455, 1.442695
          %v458 = vpow.pop %v457
          %v459 = vmul.f32 %v456, 1.442695
          %v460 = vpow.pop %v459
          %v461 = vadd.f32 %v458, 1.0
          %v462 = vadd.f32 %v460, 1.0
          %v463 = vrcp.pop %v461
          %v464 = vmul.f32 1.0, %v463
          %v465 = vrcp.pop %v462
          %v466 = vmul.f32 1.0, %v465
          %v467 = vmul.f32 %v464, 16.0
          %v468 = vmul.f32 %v466, 16.0
          %v469 = vfloor.f32 %v467
          %v470 = vfloor.f32 %v468
          %v471 = vcvt.f32.s32.to.zero.pseudo %v469
          %v472 = vcvt.f32.s32.to.zero.pseudo %v470
          %v473 = vlaneseq
          %v474 = vshrl.u32 %v473, 7
          %v475 = vadd.s32 %v474, 8
          %v476 = vcvt.s32.f32 %v474
          %v477 = vcvt.s32.f32 %v475
          %v478 = vmul.f32 %v476, 0.125
          %v479 = vmul.f32 %v477, 0.125
          %v480 = vfloor.f32 %v478
          %v481 = vfloor.f32 %v479
          %v482 = vmul.f32 %v480, 8.0
          %v483 = vmul.f32 %v481, 8.0
          %v484 = vsub.f32 %v476, %v482
          %v485 = vsub.f32 %v477, %v483
          %vm486 = vcmp.eq.f32.partialorder %v484, 0.0
          %vm487 = vcmp.eq.f32.partialorder %v485, 0.0
          %v488 = vrot.slane %v432, 7
          %v489 = vrot.slane %v433, 7
          %vm490 = vcmp.lt.s32.totalorder %v474, 1
          %v491 = vsel %vm490, %v488, %v489
          %v492 = vsel %vm490, %v489, %v488
          %v493 = vsel %vm486, 0.0, %v492
          %v494 = vsel %vm487, 0.0, %v491
          %vm495 = vcmp.eq.f32.partialorder %v484, 7.0
          %vm496 = vcmp.eq.f32.partialorder %v485, 7.0
          %v497 = vrot.slane %v432, 1
          %v498 = vrot.slane %v433, 1
          %vm499 = vcmp.lt.s32.totalorder %v474, 7
          %v500 = vsel %vm499, %v497, %v498
          %v501 = vsel %vm499, %v498, %v497
          %v502 = vsel %vm495, 0.0, %v500
          %v503 = vsel %vm496, 0.0, %v501
          %v504 = vlaneseq
          %v505 = vand.u32 %v504, 127
          %506 = vset.pattern.permute.xlu0 0
          %507 = vperm.xlu0 %506, %v471
          %v508 = vpop.permute.xlu0 %507
          %509 = vset.pattern.permute.xlu0 0
          %510 = vperm.xlu0 %509, %v472
          %v511 = vpop.permute.xlu0 %510
          %vm512 = vcmp.lt.s32.totalorder %v505, %v508
          %vm513 = vcmp.lt.s32.totalorder %v505, %v511
          %v514 = vmul.u32 %v471, 2
          %v515 = vmul.u32 %v472, 2
          %516 = vset.pattern.permute.xlu0 0
          %517 = vperm.xlu0 %516, %v514
          %v518 = vpop.permute.xlu0 %517
          %519 = vset.pattern.permute.xlu0 0
          %520 = vperm.xlu0 %519, %v515
          %v521 = vpop.permute.xlu0 %520
          %vm522 = vcmp.lt.s32.totalorder %v505, %v518
          %vm523 = vcmp.lt.s32.totalorder %v505, %v521
          %v524 = vsel %vm522, %v502, %v432
          %v525 = vsel %vm523, %v503, %v433
          %v526 = vsel %vm512, %v493, %v524
          %v527 = vsel %vm513, %v494, %v525
          %528 = vst.msk [vmem:[#allocation2] sm:$0xff] %vm441, %v526
          %529 = vst.msk [vmem:[#allocation2 + $0x8] sm:$0xff] %vm441, %v527
        $region60: #{global_adaptive_tsm.1} parent=55 // pred_fallthru
          _
        %v530 = vld [vmem:[#allocation2] sm:$0xff]
        %v531 = vld [vmem:[#allocation2 + $0x8] sm:$0xff]
        %v532 = vlaneseq
        %v533 = vshrl.u32 %v532, 7
        %v534 = vadd.s32 %v533, 8
        %v535 = vcvt.s32.f32 %v533
        %v536 = vcvt.s32.f32 %v534
        %v537 = vlaneseq
        %v538 = vand.u32 %v537, 127
        %v539 = vcvt.s32.f32 %v538
        %v540 = vmul.f32 %v535, 0.125
        %v541 = vmul.f32 %v536, 0.125
        %v542 = vfloor.f32 %v540
        %v543 = vfloor.f32 %v541
        %v544 = vmul.f32 %v539, 0.125
        %v545 = vfloor.f32 %v544
        %vm546 = vcmp.eq.f32.partialorder %v542, %v545
        %vm547 = vcmp.eq.f32.partialorder %v543, %v545
        %v548 = vsel %vm546, 0.0, -1e+30
        %v549 = vsel %vm547, 0.0, -1e+30
        %v550 = vld [vmem:[%s400] sm:$0xff]
        %v551 = vld [vmem:[%s400 + $0x8] sm:$0xff]
        %v552 = vld [vmem:[%s400 + $0x10] sm:$0xff]
        %v553 = vld [vmem:[%s400 + $0x18] sm:$0xff]
        %v554 = vld [vmem:[%s403] sm:$0x1]
        %v556 = vlaneseq
        %v557 = vshrl.u32 %v556, 7
        %v558 = vsub.s32 0, %v557
        %v559 = vrot.slane %v554, %v558
        %vm561 = vcmask 261120
        %v563 = vsel %vm561, %v530, 0
        %v566 = vsel %vm561, %v531, 0
        %568 = vmatprep.subr.mxu0 0.0
        %569 = vmatpush1.msra.mxu0 %v550
        %570 = vmatprep.subr.mxu0 0.0
        %571 = vmatpush1.msra.mxu0 %v551
        %572 = vmatprep.subr.mxu0 0.0
        %573 = vmatpush1.msra.mxu0 %v552
        %574 = vmatprep.subr.mxu0 0.0
        %575 = vmatpush1.msra.mxu0 %v553
        %576 = vmatprep.subr.mxu0 0.0
        %577 = vmatpush1.msra.mxu0 0.0
        %578 = vmatprep.subr.mxu0 0.0
        %579 = vmatpush1.msra.mxu0 0.0
        %580 = vmatprep.subr.mxu0 0.0
        %581 = vmatpush1.msra.mxu0 0.0
        %582 = vmatprep.subr.mxu0 0.0
        %583 = vmatpush1.msra.mxu0 0.0
        %584 = vmatprep.subr.mxu0 0.0
        %585 = vmatpush1.msra.mxu0 0.0
        %586 = vmatprep.subr.mxu0 0.0
        %587 = vmatpush1.msra.mxu0 0.0
        %588 = vmatprep.subr.mxu0 0.0
        %589 = vmatpush1.msra.mxu0 0.0
        %590 = vmatprep.subr.mxu0 0.0
        %591 = vmatpush1.msra.mxu0 0.0
        %592 = vmatprep.subr.mxu0 0.0
        %593 = vmatpush1.msra.mxu0 0.0
        %594 = vmatprep.subr.mxu0 0.0
        %595 = vmatpush1.msra.mxu0 0.0
        %596 = vmatprep.subr.mxu0 0.0
        %597 = vmatpush1.msra.mxu0 0.0
        %598 = vmatprep.subr.mxu0 0.0
        %599 = vmatpush1.msra.mxu0 0.0
        %600 = vmatprep.subr.mxu0 0.0
        %601 = vmatpush1.msra.mxu0 0.0
        %602 = vmatprep.subr.mxu0 0.0
        %603 = vmatpush1.msra.mxu0 0.0
        %604 = vmatprep.subr.mxu0 0.0
        %605 = vmatpush1.msra.mxu0 0.0
        %606 = vmatprep.subr.mxu0 0.0
        %607 = vmatpush1.msra.mxu0 0.0
        %608 = vmatprep.subr.mxu0 0.0
        %609 = vmatpush1.msra.mxu0 0.0
        %610 = vmatprep.subr.mxu0 0.0
        %611 = vmatpush1.msra.mxu0 0.0
        %612 = vmatprep.subr.mxu0 0.0
        %613 = vmatpush1.msra.mxu0 0.0
        %614 = vmatprep.subr.mxu0 0.0
        %615 = vmatpush1.msra.mxu0 0.0
        %616 = vmatprep.subr.mxu0 0.0
        %617 = vmatpush1.msra.mxu0 0.0
        %618 = vmatprep.subr.mxu0 0.0
        %619 = vmatpush1.msra.mxu0 0.0
        %620 = vmatprep.subr.mxu0 0.0
        %621 = vmatpush1.msra.mxu0 0.0
        %622 = vmatprep.subr.mxu0 0.0
        %623 = vmatpush1.msra.mxu0 0.0
        %624 = vmatprep.subr.mxu0 0.0
        %625 = vmatpush1.msra.mxu0 0.0
        %626 = vmatprep.subr.mxu0 0.0
        %627 = vmatpush1.msra.mxu0 0.0
        %628 = vmatprep.subr.mxu0 0.0
        %629 = vmatpush1.msra.mxu0 0.0
        %630 = vmatprep.subr.mxu0 0.0
        %631 = vmatpush1.msra.mxu0 0.0
        %632 = vmatprep.mubr.f32.mxu0 0.0
        %633 = vmatmul.mubr.f32.gmra.mrb[0].mxu0 %v563
        %v634 = vpop.f32.mrb[0].mxu0
        %v635 = vadd.f32 %v559, %v634
        %v636 = vpop.f32.mrb[0].mxu0
        %637 = vmatprep.mubr.f32.mxu0 0.0
        %638 = vmatmul.mubr.f32.gmra.mrb[0].mxu0 %v566
        %v639 = vpop.f32.mrb[0].mxu0
        %v640 = vadd.f32 %v559, %v639
        %v641 = vpop.f32.mrb[0].mxu0
        %642 = vdwg.mxu0
        %645 = vrot.lane.b32.xlu0 %v635, 96
        %v646 = vpop.permute.xlu0 %645
        %647 = vrot.lane.b32.xlu0 %v640, 96
        %v648 = vpop.permute.xlu0 %647
        %vm649 = vcmask 64512
        %v650 = vsel %vm649, %v635, 0
        %v652 = vsel %vm649, %v640, 0
        %v654 = vsel %vm649, %v646, 0
        %v656 = vsel %vm649, %v648, 0
        %658 = vmatprep.subr.mxu0 0.0
        %659 = vmatpush1.xpose.msra.mxu0 %v654
        %660 = vmatprep.subr.mxu0 0.0
        %661 = vmatpush1.xpose.msra.mxu0 %v656
        %662 = vmatprep.subr.mxu0 0.0
        %663 = vmatpush1.xpose.msra.mxu0 0.0
        %664 = vmatprep.subr.mxu0 0.0
        %665 = vmatpush1.xpose.msra.mxu0 0.0
        %666 = vmatprep.subr.mxu0 0.0
        %667 = vmatpush1.xpose.msra.mxu0 0.0
        %668 = vmatprep.subr.mxu0 0.0
        %669 = vmatpush1.xpose.msra.mxu0 0.0
        %670 = vmatprep.subr.mxu0 0.0
        %671 = vmatpush1.xpose.msra.mxu0 0.0
        %672 = vmatprep.subr.mxu0 0.0
        %673 = vmatpush1.xpose.msra.mxu0 0.0
        %674 = vmatprep.subr.mxu0 0.0
        %675 = vmatpush1.xpose.msra.mxu0 0.0
        %676 = vmatprep.subr.mxu0 0.0
        %677 = vmatpush1.xpose.msra.mxu0 0.0
        %678 = vmatprep.subr.mxu0 0.0
        %679 = vmatpush1.xpose.msra.mxu0 0.0
        %680 = vmatprep.subr.mxu0 0.0
        %681 = vmatpush1.xpose.msra.mxu0 0.0
        %682 = vmatprep.subr.mxu0 0.0
        %683 = vmatpush1.xpose.msra.mxu0 0.0
        %684 = vmatprep.subr.mxu0 0.0
        %685 = vmatpush1.xpose.msra.mxu0 0.0
        %686 = vmatprep.subr.mxu0 0.0
        %687 = vmatpush1.xpose.msra.mxu0 0.0
        %688 = vmatprep.subr.mxu0 0.0
        %689 = vmatpush1.xpose.msra.mxu0 0.0
        %690 = vmatprep.subr.mxu0 0.0
        %691 = vmatpush1.xpose.msra.mxu0 0.0
        %692 = vmatprep.subr.mxu0 0.0
        %693 = vmatpush1.xpose.msra.mxu0 0.0
        %694 = vmatprep.subr.mxu0 0.0
        %695 = vmatpush1.xpose.msra.mxu0 0.0
        %696 = vmatprep.subr.mxu0 0.0
        %697 = vmatpush1.xpose.msra.mxu0 0.0
        %698 = vmatprep.subr.mxu0 0.0
        %699 = vmatpush1.xpose.msra.mxu0 0.0
        %700 = vmatprep.subr.mxu0 0.0
        %701 = vmatpush1.xpose.msra.mxu0 0.0
        %702 = vmatprep.subr.mxu0 0.0
        %703 = vmatpush1.xpose.msra.mxu0 0.0
        %704 = vmatprep.subr.mxu0 0.0
        %705 = vmatpush1.xpose.msra.mxu0 0.0
        %706 = vmatprep.subr.mxu0 0.0
        %707 = vmatpush1.xpose.msra.mxu0 0.0
        %708 = vmatprep.subr.mxu0 0.0
        %709 = vmatpush1.xpose.msra.mxu0 0.0
        %710 = vmatprep.subr.mxu0 0.0
        %711 = vmatpush1.xpose.msra.mxu0 0.0
        %712 = vmatprep.subr.mxu0 0.0
        %713 = vmatpush1.xpose.msra.mxu0 0.0
        %714 = vmatprep.subr.mxu0 0.0
        %715 = vmatpush1.xpose.msra.mxu0 0.0
        %716 = vmatprep.subr.mxu0 0.0
        %717 = vmatpush1.xpose.msra.mxu0 0.0
        %718 = vmatprep.subr.mxu0 0.0
        %719 = vmatpush1.xpose.msra.mxu0 0.0
        %720 = vmatprep.subr.mxu0 0.0
        %721 = vmatpush1.xpose.msra.mxu0 0.0
        %722 = vmatprep.mubr.f32.mxu0 0.0
        %723 = vmatmul.mubr.f32.gmra.mrb[0].mxu0 %v650
        %v724 = vpop.f32.mrb[0].mxu0
        %v725 = vadd.f32 0.0, %v724
        %v726 = vpop.f32.mrb[0].mxu0
        %727 = vmatprep.mubr.f32.mxu0 0.0
        %728 = vmatmul.mubr.f32.gmra.mrb[0].mxu0 %v652
        %v729 = vpop.f32.mrb[0].mxu0
        %v730 = vadd.f32 0.0, %v729
        %v731 = vpop.f32.mrb[0].mxu0
        %732 = vdwg.mxu0
        %v733 = vmul.f32 %v725, 0.35355338
        %v734 = vmul.f32 %v730, 0.35355338
        %v735 = vadd.f32 %v733, %v548
        %v736 = vadd.f32 %v734, %v549
        %vm737 = vcmask 130048
        %v738 = vsel %vm737, %v735, -inf
        %739 = vmax.xlane.f32.xlu0 %v738
        %v740 = vpop.xlane.xlu0 %739
        %v741 = vsel %vm737, %v736, -inf
        %742 = vmax.xlane.f32.xlu0 %v741
        %v743 = vpop.xlane.xlu0 %742
        %v744 = vsub.f32 %v735, %v740
        %v745 = vsub.f32 %v736, %v743
        %v746 = vmul.f32 %v744, 1.442695
        %v747 = vpow.pop %v746
        %v748 = vmul.f32 %v745, 1.442695
        %v749 = vpow.pop %v748
        %v750 = vsel %vm737, %v747, 0.0
        %751 = vadd.xlane.f32.xlu0 %v750
        %v752 = vpop.xlane.xlu0 %751
        %v753 = vsel %vm737, %v749, 0.0
        %754 = vadd.xlane.f32.xlu0 %v753
        %v755 = vpop.xlane.xlu0 %754
        %v756 = vrcp.pop %v752
        %v757 = vrcp.pop %v755
        %v758 = vmul.f32 %v747, %v756
        %v759 = vmul.f32 %v749, %v757
        %760 = vrot.lane.b32.xlu0 %v635, 64
        %v761 = vpop.permute.xlu0 %760
        %762 = vrot.lane.b32.xlu0 %v640, 64
        %v763 = vpop.permute.xlu0 %762
        %v767 = vsel %vm737, %v758, 0
        %v770 = vsel %vm737, %v759, 0
        %772 = vmatprep.subr.mxu0 0.0
        %773 = vmatpush1.msra.mxu0 %v761
        %774 = vmatprep.subr.mxu0 0.0
        %775 = vmatpush1.msra.mxu0 %v763
        %776 = vmatprep.subr.mxu0 0.0
        %777 = vmatpush1.msra.mxu0 0.0
        %778 = vmatprep.subr.mxu0 0.0
        %779 = vmatpush1.msra.mxu0 0.0
        %780 = vmatprep.subr.mxu0 0.0
        %781 = vmatpush1.msra.mxu0 0.0
        %782 = vmatprep.subr.mxu0 0.0
        %783 = vmatpush1.msra.mxu0 0.0
        %784 = vmatprep.subr.mxu0 0.0
        %785 = vmatpush1.msra.mxu0 0.0
        %786 = vmatprep.subr.mxu0 0.0
        %787 = vmatpush1.msra.mxu0 0.0
        %788 = vmatprep.subr.mxu0 0.0
        %789 = vmatpush1.msra.mxu0 0.0
        %790 = vmatprep.subr.mxu0 0.0
        %791 = vmatpush1.msra.mxu0 0.0
        %792 = vmatprep.subr.mxu0 0.0
        %793 = vmatpush1.msra.mxu0 0.0
        %794 = vmatprep.subr.mxu0 0.0
        %795 = vmatpush1.msra.mxu0 0.0
        %796 = vmatprep.subr.mxu0 0.0
        %797 = vmatpush1.msra.mxu0 0.0
        %798 = vmatprep.subr.mxu0 0.0
        %799 = vmatpush1.msra.mxu0 0.0
        %800 = vmatprep.subr.mxu0 0.0
        %801 = vmatpush1.msra.mxu0 0.0
        %802 = vmatprep.subr.mxu0 0.0
        %803 = vmatpush1.msra.mxu0 0.0
        %804 = vmatprep.subr.mxu0 0.0
        %805 = vmatpush1.msra.mxu0 0.0
        %806 = vmatprep.subr.mxu0 0.0
        %807 = vmatpush1.msra.mxu0 0.0
        %808 = vmatprep.subr.mxu0 0.0
        %809 = vmatpush1.msra.mxu0 0.0
        %810 = vmatprep.subr.mxu0 0.0
        %811 = vmatpush1.msra.mxu0 0.0
        %812 = vmatprep.subr.mxu0 0.0
        %813 = vmatpush1.msra.mxu0 0.0
        %814 = vmatprep.subr.mxu0 0.0
        %815 = vmatpush1.msra.mxu0 0.0
        %816 = vmatprep.subr.mxu0 0.0
        %817 = vmatpush1.msra.mxu0 0.0
        %818 = vmatprep.subr.mxu0 0.0
        %819 = vmatpush1.msra.mxu0 0.0
        %820 = vmatprep.subr.mxu0 0.0
        %821 = vmatpush1.msra.mxu0 0.0
        %822 = vmatprep.subr.mxu0 0.0
        %823 = vmatpush1.msra.mxu0 0.0
        %824 = vmatprep.subr.mxu0 0.0
        %825 = vmatpush1.msra.mxu0 0.0
        %826 = vmatprep.subr.mxu0 0.0
        %827 = vmatpush1.msra.mxu0 0.0
        %828 = vmatprep.subr.mxu0 0.0
        %829 = vmatpush1.msra.mxu0 0.0
        %830 = vmatprep.subr.mxu0 0.0
        %831 = vmatpush1.msra.mxu0 0.0
        %832 = vmatprep.subr.mxu0 0.0
        %833 = vmatpush1.msra.mxu0 0.0
        %834 = vmatprep.subr.mxu0 0.0
        %835 = vmatpush1.msra.mxu0 0.0
        %836 = vmatprep.mubr.f32.mxu0 0.0
        %837 = vmatmul.mubr.f32.gmra.mrb[0].mxu0 %v767
        %v838 = vpop.f32.mrb[0].mxu0
        %v839 = vadd.f32 0.0, %v838
        %v840 = vpop.f32.mrb[0].mxu0
        %841 = vmatprep.mubr.f32.mxu0 0.0
        %842 = vmatmul.mubr.f32.gmra.mrb[0].mxu0 %v770
        %v843 = vpop.f32.mrb[0].mxu0
        %v844 = vadd.f32 0.0, %v843
        %v845 = vpop.f32.mrb[0].mxu0
        %846 = vdwg.mxu0
        %847 = vrot.lane.b32.xlu0 %v635, 120
        %v848 = vpop.permute.xlu0 %847
        %849 = vrot.lane.b32.xlu0 %v640, 120
        %v850 = vpop.permute.xlu0 %849
        %851 = vrot.lane.b32.xlu0 %v635, 88
        %v852 = vpop.permute.xlu0 %851
        %853 = vrot.lane.b32.xlu0 %v640, 88
        %v854 = vpop.permute.xlu0 %853
        %v855 = vsel %vm649, %v848, 0
        %v857 = vsel %vm649, %v850, 0
        %v859 = vsel %vm649, %v852, 0
        %v861 = vsel %vm649, %v854, 0
        %863 = vmatprep.subr.mxu0 0.0
        %864 = vmatpush1.xpose.msra.mxu0 %v859
        %865 = vmatprep.subr.mxu0 0.0
        %866 = vmatpush1.xpose.msra.mxu0 %v861
        %867 = vmatprep.subr.mxu0 0.0
        %868 = vmatpush1.xpose.msra.mxu0 0.0
        %869 = vmatprep.subr.mxu0 0.0
        %870 = vmatpush1.xpose.msra.mxu0 0.0
        %871 = vmatprep.subr.mxu0 0.0
        %872 = vmatpush1.xpose.msra.mxu0 0.0
        %873 = vmatprep.subr.mxu0 0.0
        %874 = vmatpush1.xpose.msra.mxu0 0.0
        %875 = vmatprep.subr.mxu0 0.0
        %876 = vmatpush1.xpose.msra.mxu0 0.0
        %877 = vmatprep.subr.mxu0 0.0
        %878 = vmatpush1.xpose.msra.mxu0 0.0
        %879 = vmatprep.subr.mxu0 0.0
        %880 = vmatpush1.xpose.msra.mxu0 0.0
        %881 = vmatprep.subr.mxu0 0.0
        %882 = vmatpush1.xpose.msra.mxu0 0.0
        %883 = vmatprep.subr.mxu0 0.0
        %884 = vmatpush1.xpose.msra.mxu0 0.0
        %885 = vmatprep.subr.mxu0 0.0
        %886 = vmatpush1.xpose.msra.mxu0 0.0
        %887 = vmatprep.subr.mxu0 0.0
        %888 = vmatpush1.xpose.msra.mxu0 0.0
        %889 = vmatprep.subr.mxu0 0.0
        %890 = vmatpush1.xpose.msra.mxu0 0.0
        %891 = vmatprep.subr.mxu0 0.0
        %892 = vmatpush1.xpose.msra.mxu0 0.0
        %893 = vmatprep.subr.mxu0 0.0
        %894 = vmatpush1.xpose.msra.mxu0 0.0
        %895 = vmatprep.subr.mxu0 0.0
        %896 = vmatpush1.xpose.msra.mxu0 0.0
        %897 = vmatprep.subr.mxu0 0.0
        %898 = vmatpush1.xpose.msra.mxu0 0.0
        %899 = vmatprep.subr.mxu0 0.0
        %900 = vmatpush1.xpose.msra.mxu0 0.0
        %901 = vmatprep.subr.mxu0 0.0
        %902 = vmatpush1.xpose.msra.mxu0 0.0
        %903 = vmatprep.subr.mxu0 0.0
        %904 = vmatpush1.xpose.msra.mxu0 0.0
        %905 = vmatprep.subr.mxu0 0.0
        %906 = vmatpush1.xpose.msra.mxu0 0.0
        %907 = vmatprep.subr.mxu0 0.0
        %908 = vmatpush1.xpose.msra.mxu0 0.0
        %909 = vmatprep.subr.mxu0 0.0
        %910 = vmatpush1.xpose.msra.mxu0 0.0
        %911 = vmatprep.subr.mxu0 0.0
        %912 = vmatpush1.xpose.msra.mxu0 0.0
        %913 = vmatprep.subr.mxu0 0.0
        %914 = vmatpush1.xpose.msra.mxu0 0.0
        %915 = vmatprep.subr.mxu0 0.0
        %916 = vmatpush1.xpose.msra.mxu0 0.0
        %917 = vmatprep.subr.mxu0 0.0
        %918 = vmatpush1.xpose.msra.mxu0 0.0
        %919 = vmatprep.subr.mxu0 0.0
        %920 = vmatpush1.xpose.msra.mxu0 0.0
        %921 = vmatprep.subr.mxu0 0.0
        %922 = vmatpush1.xpose.msra.mxu0 0.0
        %923 = vmatprep.subr.mxu0 0.0
        %924 = vmatpush1.xpose.msra.mxu0 0.0
        %925 = vmatprep.subr.mxu0 0.0
        %926 = vmatpush1.xpose.msra.mxu0 0.0
        %927 = vmatprep.mubr.f32.mxu0 0.0
        %928 = vmatmul.mubr.f32.gmra.mrb[0].mxu0 %v855
        %v929 = vpop.f32.mrb[0].mxu0
        %v930 = vadd.f32 0.0, %v929
        %v931 = vpop.f32.mrb[0].mxu0
        %932 = vmatprep.mubr.f32.mxu0 0.0
        %933 = vmatmul.mubr.f32.gmra.mrb[0].mxu0 %v857
        %v934 = vpop.f32.mrb[0].mxu0
        %v935 = vadd.f32 0.0, %v934
        %v936 = vpop.f32.mrb[0].mxu0
        %937 = vdwg.mxu0
        %v938 = vmul.f32 %v930, 0.35355338
        %v939 = vmul.f32 %v935, 0.35355338
        %v940 = vadd.f32 %v938, %v548
        %v941 = vadd.f32 %v939, %v549
        %v942 = vsel %vm737, %v940, -inf
        %943 = vmax.xlane.f32.xlu0 %v942
        %v944 = vpop.xlane.xlu0 %943
        %v945 = vsel %vm737, %v941, -inf
        %946 = vmax.xlane.f32.xlu0 %v945
        %v947 = vpop.xlane.xlu0 %946
        %v948 = vsub.f32 %v940, %v944
        %v949 = vsub.f32 %v941, %v947
        %v950 = vmul.f32 %v948, 1.442695
        %v951 = vpow.pop %v950
        %v952 = vmul.f32 %v949, 1.442695
        %v953 = vpow.pop %v952
        %v954 = vsel %vm737, %v951, 0.0
        %955 = vadd.xlane.f32.xlu0 %v954
        %v956 = vpop.xlane.xlu0 %955
        %v957 = vsel %vm737, %v953, 0.0
        %958 = vadd.xlane.f32.xlu0 %v957
        %v959 = vpop.xlane.xlu0 %958
        %v960 = vrcp.pop %v956
        %v961 = vrcp.pop %v959
        %v962 = vmul.f32 %v951, %v960
        %v963 = vmul.f32 %v953, %v961
        %964 = vrot.lane.b32.xlu0 %v635, 56
        %v965 = vpop.permute.xlu0 %964
        %966 = vrot.lane.b32.xlu0 %v640, 56
        %v967 = vpop.permute.xlu0 %966
        %v971 = vsel %vm737, %v962, 0
        %v974 = vsel %vm737, %v963, 0
        %976 = vmatprep.subr.mxu0 0.0
        %977 = vmatpush1.msra.mxu0 %v965
        %978 = vmatprep.subr.mxu0 0.0
        %979 = vmatpush1.msra.mxu0 %v967
        %980 = vmatprep.subr.mxu0 0.0
        %981 = vmatpush1.msra.mxu0 0.0
        %982 = vmatprep.subr.mxu0 0.0
        %983 = vmatpush1.msra.mxu0 0.0
        %984 = vmatprep.subr.mxu0 0.0
        %985 = vmatpush1.msra.mxu0 0.0
        %986 = vmatprep.subr.mxu0 0.0
        %987 = vmatpush1.msra.mxu0 0.0
        %988 = vmatprep.subr.mxu0 0.0
        %989 = vmatpush1.msra.mxu0 0.0
        %990 = vmatprep.subr.mxu0 0.0
        %991 = vmatpush1.msra.mxu0 0.0
        %992 = vmatprep.subr.mxu0 0.0
        %993 = vmatpush1.msra.mxu0 0.0
        %994 = vmatprep.subr.mxu0 0.0
        %995 = vmatpush1.msra.mxu0 0.0
        %996 = vmatprep.subr.mxu0 0.0
        %997 = vmatpush1.msra.mxu0 0.0
        %998 = vmatprep.subr.mxu0 0.0
        %999 = vmatpush1.msra.mxu0 0.0
        %1000 = vmatprep.subr.mxu0 0.0
        %1001 = vmatpush1.msra.mxu0 0.0
        %1002 = vmatprep.subr.mxu0 0.0
        %1003 = vmatpush1.msra.mxu0 0.0
        %1004 = vmatprep.subr.mxu0 0.0
        %1005 = vmatpush1.msra.mxu0 0.0
        %1006 = vmatprep.subr.mxu0 0.0
        %1007 = vmatpush1.msra.mxu0 0.0
        %1008 = vmatprep.subr.mxu0 0.0
        %1009 = vmatpush1.msra.mxu0 0.0
        %1010 = vmatprep.subr.mxu0 0.0
        %1011 = vmatpush1.msra.mxu0 0.0
        %1012 = vmatprep.subr.mxu0 0.0
        %1013 = vmatpush1.msra.mxu0 0.0
        %1014 = vmatprep.subr.mxu0 0.0
        %1015 = vmatpush1.msra.mxu0 0.0
        %1016 = vmatprep.subr.mxu0 0.0
        %1017 = vmatpush1.msra.mxu0 0.0
        %1018 = vmatprep.subr.mxu0 0.0
        %1019 = vmatpush1.msra.mxu0 0.0
        %1020 = vmatprep.subr.mxu0 0.0
        %1021 = vmatpush1.msra.mxu0 0.0
        %1022 = vmatprep.subr.mxu0 0.0
        %1023 = vmatpush1.msra.mxu0 0.0
        %1024 = vmatprep.subr.mxu0 0.0
        %1025 = vmatpush1.msra.mxu0 0.0
        %1026 = vmatprep.subr.mxu0 0.0
        %1027 = vmatpush1.msra.mxu0 0.0
        %1028 = vmatprep.subr.mxu0 0.0
        %1029 = vmatpush1.msra.mxu0 0.0
        %1030 = vmatprep.subr.mxu0 0.0
        %1031 = vmatpush1.msra.mxu0 0.0
        %1032 = vmatprep.subr.mxu0 0.0
        %1033 = vmatpush1.msra.mxu0 0.0
        %1034 = vmatprep.subr.mxu0 0.0
        %1035 = vmatpush1.msra.mxu0 0.0
        %1036 = vmatprep.subr.mxu0 0.0
        %1037 = vmatpush1.msra.mxu0 0.0
        %1038 = vmatprep.subr.mxu0 0.0
        %1039 = vmatpush1.msra.mxu0 0.0
        %1040 = vmatprep.mubr.f32.mxu0 0.0
        %1041 = vmatmul.mubr.f32.gmra.mrb[0].mxu0 %v971
        %v1042 = vpop.f32.mrb[0].mxu0
        %v1043 = vadd.f32 0.0, %v1042
        %v1044 = vpop.f32.mrb[0].mxu0
        %1045 = vmatprep.mubr.f32.mxu0 0.0
        %1046 = vmatmul.mubr.f32.gmra.mrb[0].mxu0 %v974
        %v1047 = vpop.f32.mrb[0].mxu0
        %v1048 = vadd.f32 0.0, %v1047
        %v1049 = vpop.f32.mrb[0].mxu0
        %1050 = vdwg.mxu0
        %1051 = vrot.lane.b32.xlu0 %v635, 112
        %v1052 = vpop.permute.xlu0 %1051
        %1053 = vrot.lane.b32.xlu0 %v640, 112
        %v1054 = vpop.permute.xlu0 %1053
        %1055 = vrot.lane.b32.xlu0 %v635, 80
        %v1056 = vpop.permute.xlu0 %1055
        %1057 = vrot.lane.b32.xlu0 %v640, 80
        %v1058 = vpop.permute.xlu0 %1057
        %v1059 = vsel %vm649, %v1052, 0
        %v1061 = vsel %vm649, %v1054, 0
        %v1063 = vsel %vm649, %v1056, 0
        %v1065 = vsel %vm649, %v1058, 0
        %1067 = vmatprep.subr.mxu0 0.0
        %1068 = vmatpush1.xpose.msra.mxu0 %v1063
        %1069 = vmatprep.subr.mxu0 0.0
        %1070 = vmatpush1.xpose.msra.mxu0 %v1065
        %1071 = vmatprep.subr.mxu0 0.0
        %1072 = vmatpush1.xpose.msra.mxu0 0.0
        %1073 = vmatprep.subr.mxu0 0.0
        %1074 = vmatpush1.xpose.msra.mxu0 0.0
        %1075 = vmatprep.subr.mxu0 0.0
        %1076 = vmatpush1.xpose.msra.mxu0 0.0
        %1077 = vmatprep.subr.mxu0 0.0
        %1078 = vmatpush1.xpose.msra.mxu0 0.0
        %1079 = vmatprep.subr.mxu0 0.0
        %1080 = vmatpush1.xpose.msra.mxu0 0.0
        %1081 = vmatprep.subr.mxu0 0.0
        %1082 = vmatpush1.xpose.msra.mxu0 0.0
        %1083 = vmatprep.subr.mxu0 0.0
        %1084 = vmatpush1.xpose.msra.mxu0 0.0
        %1085 = vmatprep.subr.mxu0 0.0
        %1086 = vmatpush1.xpose.msra.mxu0 0.0
        %1087 = vmatprep.subr.mxu0 0.0
        %1088 = vmatpush1.xpose.msra.mxu0 0.0
        %1089 = vmatprep.subr.mxu0 0.0
        %1090 = vmatpush1.xpose.msra.mxu0 0.0
        %1091 = vmatprep.subr.mxu0 0.0
        %1092 = vmatpush1.xpose.msra.mxu0 0.0
        %1093 = vmatprep.subr.mxu0 0.0
        %1094 = vmatpush1.xpose.msra.mxu0 0.0
        %1095 = vmatprep.subr.mxu0 0.0
        %1096 = vmatpush1.xpose.msra.mxu0 0.0
        %1097 = vmatprep.subr.mxu0 0.0
        %1098 = vmatpush1.xpose.msra.mxu0 0.0
        %1099 = vmatprep.subr.mxu0 0.0
        %1100 = vmatpush1.xpose.msra.mxu0 0.0
        %1101 = vmatprep.subr.mxu0 0.0
        %1102 = vmatpush1.xpose.msra.mxu0 0.0
        %1103 = vmatprep.subr.mxu0 0.0
        %1104 = vmatpush1.xpose.msra.mxu0 0.0
        %1105 = vmatprep.subr.mxu0 0.0
        %1106 = vmatpush1.xpose.msra.mxu0 0.0
        %1107 = vmatprep.subr.mxu0 0.0
        %1108 = vmatpush1.xpose.msra.mxu0 0.0
        %1109 = vmatprep.subr.mxu0 0.0
        %1110 = vmatpush1.xpose.msra.mxu0 0.0
        %1111 = vmatprep.subr.mxu0 0.0
        %1112 = vmatpush1.xpose.msra.mxu0 0.0
        %1113 = vmatprep.subr.mxu0 0.0
        %1114 = vmatpush1.xpose.msra.mxu0 0.0
        %1115 = vmatprep.subr.mxu0 0.0
        %1116 = vmatpush1.xpose.msra.mxu0 0.0
        %1117 = vmatprep.subr.mxu0 0.0
        %1118 = vmatpush1.xpose.msra.mxu0 0.0
        %1119 = vmatprep.subr.mxu0 0.0
        %1120 = vmatpush1.xpose.msra.mxu0 0.0
        %1121 = vmatprep.subr.mxu0 0.0
        %1122 = vmatpush1.xpose.msra.mxu0 0.0
        %1123 = vmatprep.subr.mxu0 0.0
        %1124 = vmatpush1.xpose.msra.mxu0 0.0
        %1125 = vmatprep.subr.mxu0 0.0
        %1126 = vmatpush1.xpose.msra.mxu0 0.0
        %1127 = vmatprep.subr.mxu0 0.0
        %1128 = vmatpush1.xpose.msra.mxu0 0.0
        %1129 = vmatprep.subr.mxu0 0.0
        %1130 = vmatpush1.xpose.msra.mxu0 0.0
        %1131 = vmatprep.mubr.f32.mxu0 0.0
        %1132 = vmatmul.mubr.f32.gmra.mrb[0].mxu0 %v1059
        %v1133 = vpop.f32.mrb[0].mxu0
        %v1134 = vadd.f32 0.0, %v1133
        %v1135 = vpop.f32.mrb[0].mxu0
        %1136 = vmatprep.mubr.f32.mxu0 0.0
        %1137 = vmatmul.mubr.f32.gmra.mrb[0].mxu0 %v1061
        %v1138 = vpop.f32.mrb[0].mxu0
        %v1139 = vadd.f32 0.0, %v1138
        %v1140 = vpop.f32.mrb[0].mxu0
        %1141 = vdwg.mxu0
        %v1142 = vmul.f32 %v1134, 0.35355338
        %v1143 = vmul.f32 %v1139, 0.35355338
        %v1144 = vadd.f32 %v1142, %v548
        %v1145 = vadd.f32 %v1143, %v549
        %v1146 = vsel %vm737, %v1144, -inf
        %1147 = vmax.xlane.f32.xlu0 %v1146
        %v1148 = vpop.xlane.xlu0 %1147
        %v1149 = vsel %vm737, %v1145, -inf
        %1150 = vmax.xlane.f32.xlu0 %v1149
        %v1151 = vpop.xlane.xlu0 %1150
        %v1152 = vsub.f32 %v1144, %v1148
        %v1153 = vsub.f32 %v1145, %v1151
        %v1154 = vmul.f32 %v1152, 1.442695
        %v1155 = vpow.pop %v1154
        %v1156 = vmul.f32 %v1153, 1.442695
        %v1157 = vpow.pop %v1156
        %v1158 = vsel %vm737, %v1155, 0.0
        %1159 = vadd.xlane.f32.xlu0 %v1158
        %v1160 = vpop.xlane.xlu0 %1159
        %v1161 = vsel %vm737, %v1157, 0.0
        %1162 = vadd.xlane.f32.xlu0 %v1161
        %v1163 = vpop.xlane.xlu0 %1162
        %v1164 = vrcp.pop %v1160
        %v1165 = vrcp.pop %v1163
        %v1166 = vmul.f32 %v1155, %v1164
        %v1167 = vmul.f32 %v1157, %v1165
        %1168 = vrot.lane.b32.xlu0 %v635, 48
        %v1169 = vpop.permute.xlu0 %1168
        %1170 = vrot.lane.b32.xlu0 %v640, 48
        %v1171 = vpop.permute.xlu0 %1170
        %v1175 = vsel %vm737, %v1166, 0
        %v1178 = vsel %vm737, %v1167, 0
        %1180 = vmatprep.subr.mxu0 0.0
        %1181 = vmatpush1.msra.mxu0 %v1169
        %1182 = vmatprep.subr.mxu0 0.0
        %1183 = vmatpush1.msra.mxu0 %v1171
        %1184 = vmatprep.subr.mxu0 0.0
        %1185 = vmatpush1.msra.mxu0 0.0
        %1186 = vmatprep.subr.mxu0 0.0
        %1187 = vmatpush1.msra.mxu0 0.0
        %1188 = vmatprep.subr.mxu0 0.0
        %1189 = vmatpush1.msra.mxu0 0.0
        %1190 = vmatprep.subr.mxu0 0.0
        %1191 = vmatpush1.msra.mxu0 0.0
        %1192 = vmatprep.subr.mxu0 0.0
        %1193 = vmatpush1.msra.mxu0 0.0
        %1194 = vmatprep.subr.mxu0 0.0
        %1195 = vmatpush1.msra.mxu0 0.0
        %1196 = vmatprep.subr.mxu0 0.0
        %1197 = vmatpush1.msra.mxu0 0.0
        %1198 = vmatprep.subr.mxu0 0.0
        %1199 = vmatpush1.msra.mxu0 0.0
        %1200 = vmatprep.subr.mxu0 0.0
        %1201 = vmatpush1.msra.mxu0 0.0
        %1202 = vmatprep.subr.mxu0 0.0
        %1203 = vmatpush1.msra.mxu0 0.0
        %1204 = vmatprep.subr.mxu0 0.0
        %1205 = vmatpush1.msra.mxu0 0.0
        %1206 = vmatprep.subr.mxu0 0.0
        %1207 = vmatpush1.msra.mxu0 0.0
        %1208 = vmatprep.subr.mxu0 0.0
        %1209 = vmatpush1.msra.mxu0 0.0
        %1210 = vmatprep.subr.mxu0 0.0
        %1211 = vmatpush1.msra.mxu0 0.0
        %1212 = vmatprep.subr.mxu0 0.0
        %1213 = vmatpush1.msra.mxu0 0.0
        %1214 = vmatprep.subr.mxu0 0.0
        %1215 = vmatpush1.msra.mxu0 0.0
        %1216 = vmatprep.subr.mxu0 0.0
        %1217 = vmatpush1.msra.mxu0 0.0
        %1218 = vmatprep.subr.mxu0 0.0
        %1219 = vmatpush1.msra.mxu0 0.0
        %1220 = vmatprep.subr.mxu0 0.0
        %1221 = vmatpush1.msra.mxu0 0.0
        %1222 = vmatprep.subr.mxu0 0.0
        %1223 = vmatpush1.msra.mxu0 0.0
        %1224 = vmatprep.subr.mxu0 0.0
        %1225 = vmatpush1.msra.mxu0 0.0
        %1226 = vmatprep.subr.mxu0 0.0
        %1227 = vmatpush1.msra.mxu0 0.0
        %1228 = vmatprep.subr.mxu0 0.0
        %1229 = vmatpush1.msra.mxu0 0.0
        %1230 = vmatprep.subr.mxu0 0.0
        %1231 = vmatpush1.msra.mxu0 0.0
        %1232 = vmatprep.subr.mxu0 0.0
        %1233 = vmatpush1.msra.mxu0 0.0
        %1234 = vmatprep.subr.mxu0 0.0
        %1235 = vmatpush1.msra.mxu0 0.0
        %1236 = vmatprep.subr.mxu0 0.0
        %1237 = vmatpush1.msra.mxu0 0.0
        %1238 = vmatprep.subr.mxu0 0.0
        %1239 = vmatpush1.msra.mxu0 0.0
        %1240 = vmatprep.subr.mxu0 0.0
        %1241 = vmatpush1.msra.mxu0 0.0
        %1242 = vmatprep.subr.mxu0 0.0
        %1243 = vmatpush1.msra.mxu0 0.0
        %1244 = vmatprep.mubr.f32.mxu0 0.0
        %1245 = vmatmul.mubr.f32.gmra.mrb[0].mxu0 %v1175
        %v1246 = vpop.f32.mrb[0].mxu0
        %v1247 = vadd.f32 0.0, %v1246
        %v1248 = vpop.f32.mrb[0].mxu0
        %1249 = vmatprep.mubr.f32.mxu0 0.0
        %1250 = vmatmul.mubr.f32.gmra.mrb[0].mxu0 %v1178
        %v1251 = vpop.f32.mrb[0].mxu0
        %v1252 = vadd.f32 0.0, %v1251
        %v1253 = vpop.f32.mrb[0].mxu0
        %1254 = vdwg.mxu0
        %1255 = vrot.lane.b32.xlu0 %v635, 104
        %v1256 = vpop.permute.xlu0 %1255
        %1257 = vrot.lane.b32.xlu0 %v640, 104
        %v1258 = vpop.permute.xlu0 %1257
        %1259 = vrot.lane.b32.xlu0 %v635, 72
        %v1260 = vpop.permute.xlu0 %1259
        %1261 = vrot.lane.b32.xlu0 %v640, 72
        %v1262 = vpop.permute.xlu0 %1261
        %v1263 = vsel %vm649, %v1256, 0
        %v1265 = vsel %vm649, %v1258, 0
        %v1267 = vsel %vm649, %v1260, 0
        %v1269 = vsel %vm649, %v1262, 0
        %1271 = vmatprep.subr.mxu0 0.0
        %1272 = vmatpush1.xpose.msra.mxu0 %v1267
        %1273 = vmatprep.subr.mxu0 0.0
        %1274 = vmatpush1.xpose.msra.mxu0 %v1269
        %1275 = vmatprep.subr.mxu0 0.0
        %1276 = vmatpush1.xpose.msra.mxu0 0.0
        %1277 = vmatprep.subr.mxu0 0.0
        %1278 = vmatpush1.xpose.msra.mxu0 0.0
        %1279 = vmatprep.subr.mxu0 0.0
        %1280 = vmatpush1.xpose.msra.mxu0 0.0
        %1281 = vmatprep.subr.mxu0 0.0
        %1282 = vmatpush1.xpose.msra.mxu0 0.0
        %1283 = vmatprep.subr.mxu0 0.0
        %1284 = vmatpush1.xpose.msra.mxu0 0.0
        %1285 = vmatprep.subr.mxu0 0.0
        %1286 = vmatpush1.xpose.msra.mxu0 0.0
        %1287 = vmatprep.subr.mxu0 0.0
        %1288 = vmatpush1.xpose.msra.mxu0 0.0
        %1289 = vmatprep.subr.mxu0 0.0
        %1290 = vmatpush1.xpose.msra.mxu0 0.0
        %1291 = vmatprep.subr.mxu0 0.0
        %1292 = vmatpush1.xpose.msra.mxu0 0.0
        %1293 = vmatprep.subr.mxu0 0.0
        %1294 = vmatpush1.xpose.msra.mxu0 0.0
        %1295 = vmatprep.subr.mxu0 0.0
        %1296 = vmatpush1.xpose.msra.mxu0 0.0
        %1297 = vmatprep.subr.mxu0 0.0
        %1298 = vmatpush1.xpose.msra.mxu0 0.0
        %1299 = vmatprep.subr.mxu0 0.0
        %1300 = vmatpush1.xpose.msra.mxu0 0.0
        %1301 = vmatprep.subr.mxu0 0.0
        %1302 = vmatpush1.xpose.msra.mxu0 0.0
        %1303 = vmatprep.subr.mxu0 0.0
        %1304 = vmatpush1.xpose.msra.mxu0 0.0
        %1305 = vmatprep.subr.mxu0 0.0
        %1306 = vmatpush1.xpose.msra.mxu0 0.0
        %1307 = vmatprep.subr.mxu0 0.0
        %1308 = vmatpush1.xpose.msra.mxu0 0.0
        %1309 = vmatprep.subr.mxu0 0.0
        %1310 = vmatpush1.xpose.msra.mxu0 0.0
        %1311 = vmatprep.subr.mxu0 0.0
        %1312 = vmatpush1.xpose.msra.mxu0 0.0
        %1313 = vmatprep.subr.mxu0 0.0
        %1314 = vmatpush1.xpose.msra.mxu0 0.0
        %1315 = vmatprep.subr.mxu0 0.0
        %1316 = vmatpush1.xpose.msra.mxu0 0.0
        %1317 = vmatprep.subr.mxu0 0.0
        %1318 = vmatpush1.xpose.msra.mxu0 0.0
        %1319 = vmatprep.subr.mxu0 0.0
        %1320 = vmatpush1.xpose.msra.mxu0 0.0
        %1321 = vmatprep.subr.mxu0 0.0
        %1322 = vmatpush1.xpose.msra.mxu0 0.0
        %1323 = vmatprep.subr.mxu0 0.0
        %1324 = vmatpush1.xpose.msra.mxu0 0.0
        %1325 = vmatprep.subr.mxu0 0.0
        %1326 = vmatpush1.xpose.msra.mxu0 0.0
        %1327 = vmatprep.subr.mxu0 0.0
        %1328 = vmatpush1.xpose.msra.mxu0 0.0
        %1329 = vmatprep.subr.mxu0 0.0
        %1330 = vmatpush1.xpose.msra.mxu0 0.0
        %1331 = vmatprep.subr.mxu0 0.0
        %1332 = vmatpush1.xpose.msra.mxu0 0.0
        %1333 = vmatprep.subr.mxu0 0.0
        %1334 = vmatpush1.xpose.msra.mxu0 0.0
        %1335 = vmatprep.mubr.f32.mxu0 0.0
        %1336 = vmatmul.mubr.f32.gmra.mrb[0].mxu0 %v1263
        %v1337 = vpop.f32.mrb[0].mxu0
        %v1338 = vadd.f32 0.0, %v1337
        %v1339 = vpop.f32.mrb[0].mxu0
        %1340 = vmatprep.mubr.f32.mxu0 0.0
        %1341 = vmatmul.mubr.f32.gmra.mrb[0].mxu0 %v1265
        %v1342 = vpop.f32.mrb[0].mxu0
        %v1343 = vadd.f32 0.0, %v1342
        %v1344 = vpop.f32.mrb[0].mxu0
        %1345 = vdwg.mxu0
        %v1346 = vmul.f32 %v1338, 0.35355338
        %v1347 = vmul.f32 %v1343, 0.35355338
        %v1348 = vadd.f32 %v1346, %v548
        %v1349 = vadd.f32 %v1347, %v549
        %v1350 = vsel %vm737, %v1348, -inf
        %1351 = vmax.xlane.f32.xlu0 %v1350
        %v1352 = vpop.xlane.xlu0 %1351
        %v1353 = vsel %vm737, %v1349, -inf
        %1354 = vmax.xlane.f32.xlu0 %v1353
        %v1355 = vpop.xlane.xlu0 %1354
        %v1356 = vsub.f32 %v1348, %v1352
        %v1357 = vsub.f32 %v1349, %v1355
        %v1358 = vmul.f32 %v1356, 1.442695
        %v1359 = vpow.pop %v1358
        %v1360 = vmul.f32 %v1357, 1.442695
        %v1361 = vpow.pop %v1360
        %v1362 = vsel %vm737, %v1359, 0.0
        %1363 = vadd.xlane.f32.xlu0 %v1362
        %v1364 = vpop.xlane.xlu0 %1363
        %v1365 = vsel %vm737, %v1361, 0.0
        %1366 = vadd.xlane.f32.xlu0 %v1365
        %v1367 = vpop.xlane.xlu0 %1366
        %v1368 = vrcp.pop %v1364
        %v1369 = vrcp.pop %v1367
        %v1370 = vmul.f32 %v1359, %v1368
        %v1371 = vmul.f32 %v1361, %v1369
        %1372 = vrot.lane.b32.xlu0 %v635, 40
        %v1373 = vpop.permute.xlu0 %1372
        %1374 = vrot.lane.b32.xlu0 %v640, 40
        %v1375 = vpop.permute.xlu0 %1374
        %v1379 = vsel %vm737, %v1370, 0
        %v1382 = vsel %vm737, %v1371, 0
        %1384 = vmatprep.subr.mxu0 0.0
        %1385 = vmatpush1.msra.mxu0 %v1373
        %1386 = vmatprep.subr.mxu0 0.0
        %1387 = vmatpush1.msra.mxu0 %v1375
        %1388 = vmatprep.subr.mxu0 0.0
        %1389 = vmatpush1.msra.mxu0 0.0
        %1390 = vmatprep.subr.mxu0 0.0
        %1391 = vmatpush1.msra.mxu0 0.0
        %1392 = vmatprep.subr.mxu0 0.0
        %1393 = vmatpush1.msra.mxu0 0.0
        %1394 = vmatprep.subr.mxu0 0.0
        %1395 = vmatpush1.msra.mxu0 0.0
        %1396 = vmatprep.subr.mxu0 0.0
        %1397 = vmatpush1.msra.mxu0 0.0
        %1398 = vmatprep.subr.mxu0 0.0
        %1399 = vmatpush1.msra.mxu0 0.0
        %1400 = vmatprep.subr.mxu0 0.0
        %1401 = vmatpush1.msra.mxu0 0.0
        %1402 = vmatprep.subr.mxu0 0.0
        %1403 = vmatpush1.msra.mxu0 0.0
        %1404 = vmatprep.subr.mxu0 0.0
        %1405 = vmatpush1.msra.mxu0 0.0
        %1406 = vmatprep.subr.mxu0 0.0
        %1407 = vmatpush1.msra.mxu0 0.0
        %1408 = vmatprep.subr.mxu0 0.0
        %1409 = vmatpush1.msra.mxu0 0.0
        %1410 = vmatprep.subr.mxu0 0.0
        %1411 = vmatpush1.msra.mxu0 0.0
        %1412 = vmatprep.subr.mxu0 0.0
        %1413 = vmatpush1.msra.mxu0 0.0
        %1414 = vmatprep.subr.mxu0 0.0
        %1415 = vmatpush1.msra.mxu0 0.0
        %1416 = vmatprep.subr.mxu0 0.0
        %1417 = vmatpush1.msra.mxu0 0.0
        %1418 = vmatprep.subr.mxu0 0.0
        %1419 = vmatpush1.msra.mxu0 0.0
        %1420 = vmatprep.subr.mxu0 0.0
        %1421 = vmatpush1.msra.mxu0 0.0
        %1422 = vmatprep.subr.mxu0 0.0
        %1423 = vmatpush1.msra.mxu0 0.0
        %1424 = vmatprep.subr.mxu0 0.0
        %1425 = vmatpush1.msra.mxu0 0.0
        %1426 = vmatprep.subr.mxu0 0.0
        %1427 = vmatpush1.msra.mxu0 0.0
        %1428 = vmatprep.subr.mxu0 0.0
        %1429 = vmatpush1.msra.mxu0 0.0
        %1430 = vmatprep.subr.mxu0 0.0
        %1431 = vmatpush1.msra.mxu0 0.0
        %1432 = vmatprep.subr.mxu0 0.0
        %1433 = vmatpush1.msra.mxu0 0.0
        %1434 = vmatprep.subr.mxu0 0.0
        %1435 = vmatpush1.msra.mxu0 0.0
        %1436 = vmatprep.subr.mxu0 0.0
        %1437 = vmatpush1.msra.mxu0 0.0
        %1438 = vmatprep.subr.mxu0 0.0
        %1439 = vmatpush1.msra.mxu0 0.0
        %1440 = vmatprep.subr.mxu0 0.0
        %1441 = vmatpush1.msra.mxu0 0.0
        %1442 = vmatprep.subr.mxu0 0.0
        %1443 = vmatpush1.msra.mxu0 0.0
        %1444 = vmatprep.subr.mxu0 0.0
        %1445 = vmatpush1.msra.mxu0 0.0
        %1446 = vmatprep.subr.mxu0 0.0
        %1447 = vmatpush1.msra.mxu0 0.0
        %1448 = vmatprep.mubr.f32.mxu0 0.0
        %1449 = vmatmul.mubr.f32.gmra.mrb[0].mxu0 %v1379
        %v1450 = vpop.f32.mrb[0].mxu0
        %v1451 = vadd.f32 0.0, %v1450
        %v1452 = vpop.f32.mrb[0].mxu0
        %1453 = vmatprep.mubr.f32.mxu0 0.0
        %1454 = vmatmul.mubr.f32.gmra.mrb[0].mxu0 %v1382
        %v1455 = vpop.f32.mrb[0].mxu0
        %v1456 = vadd.f32 0.0, %v1455
        %v1457 = vpop.f32.mrb[0].mxu0
        %1458 = vdwg.mxu0
        %1461 = vrot.lane.b32.xlu0 %v1043, 8
        %v1462 = vpop.permute.xlu0 %1461
        %1463 = vrot.lane.b32.xlu0 %v1048, 8
        %v1464 = vpop.permute.xlu0 %1463
        %1469 = vrot.lane.b32.xlu0 %v1247, 16
        %v1470 = vpop.permute.xlu0 %1469
        %1471 = vrot.lane.b32.xlu0 %v1252, 16
        %v1472 = vpop.permute.xlu0 %1471
        %1477 = vrot.lane.b32.xlu0 %v1451, 24
        %v1478 = vpop.permute.xlu0 %1477
        %1479 = vrot.lane.b32.xlu0 %v1456, 24
        %v1480 = vpop.permute.xlu0 %1479
        %v1483 = vsel %vm649, %v839, %v1462
        %v1484 = vsel %vm649, %v844, %v1464
        %v1485 = vsel %vm737, %v1483, %v1470
        %v1486 = vsel %vm737, %v1484, %v1472
        %vm1487 = vcmask 195584
        %v1488 = vsel %vm1487, %v1485, %v1478
        %v1489 = vsel %vm1487, %v1486, %v1480
        %v1490 = vld [vmem:[%s408] sm:$0xff]
        %v1491 = vld [vmem:[%s408 + $0x8] sm:$0xff]
        %v1492 = vld [vmem:[%s408 + $0x10] sm:$0xff]
        %v1493 = vld [vmem:[%s408 + $0x18] sm:$0xff]
        %v1494 = vld [vmem:[%s412] sm:$0x1]
        %v1495 = vlaneseq
        %v1496 = vshrl.u32 %v1495, 7
        %v1497 = vsub.s32 0, %v1496
        %v1498 = vrot.slane %v1494, %v1497
        %v1500 = vsel %vm561, %v1488, 0
        %v1503 = vsel %vm561, %v1489, 0
        %1505 = vmatprep.subr.mxu0 0.0
        %1506 = vmatpush1.msra.mxu0 %v1490
        %1507 = vmatprep.subr.mxu0 0.0
        %1508 = vmatpush1.msra.mxu0 %v1491
        %1509 = vmatprep.subr.mxu0 0.0
        %1510 = vmatpush1.msra.mxu0 %v1492
        %1511 = vmatprep.subr.mxu0 0.0
        %1512 = vmatpush1.msra.mxu0 %v1493
        %1513 = vmatprep.subr.mxu0 0.0
        %1514 = vmatpush1.msra.mxu0 0.0
        %1515 = vmatprep.subr.mxu0 0.0
        %1516 = vmatpush1.msra.mxu0 0.0
        %1517 = vmatprep.subr.mxu0 0.0
        %1518 = vmatpush1.msra.mxu0 0.0
        %1519 = vmatprep.subr.mxu0 0.0
        %1520 = vmatpush1.msra.mxu0 0.0
        %1521 = vmatprep.subr.mxu0 0.0
        %1522 = vmatpush1.msra.mxu0 0.0
        %1523 = vmatprep.subr.mxu0 0.0
        %1524 = vmatpush1.msra.mxu0 0.0
        %1525 = vmatprep.subr.mxu0 0.0
        %1526 = vmatpush1.msra.mxu0 0.0
        %1527 = vmatprep.subr.mxu0 0.0
        %1528 = vmatpush1.msra.mxu0 0.0
        %1529 = vmatprep.subr.mxu0 0.0
        %1530 = vmatpush1.msra.mxu0 0.0
        %1531 = vmatprep.subr.mxu0 0.0
        %1532 = vmatpush1.msra.mxu0 0.0
        %1533 = vmatprep.subr.mxu0 0.0
        %1534 = vmatpush1.msra.mxu0 0.0
        %1535 = vmatprep.subr.mxu0 0.0
        %1536 = vmatpush1.msra.mxu0 0.0
        %1537 = vmatprep.subr.mxu0 0.0
        %1538 = vmatpush1.msra.mxu0 0.0
        %1539 = vmatprep.subr.mxu0 0.0
        %1540 = vmatpush1.msra.mxu0 0.0
        %1541 = vmatprep.subr.mxu0 0.0
        %1542 = vmatpush1.msra.mxu0 0.0
        %1543 = vmatprep.subr.mxu0 0.0
        %1544 = vmatpush1.msra.mxu0 0.0
        %1545 = vmatprep.subr.mxu0 0.0
        %1546 = vmatpush1.msra.mxu0 0.0
        %1547 = vmatprep.subr.mxu0 0.0
        %1548 = vmatpush1.msra.mxu0 0.0
        %1549 = vmatprep.subr.mxu0 0.0
        %1550 = vmatpush1.msra.mxu0 0.0
        %1551 = vmatprep.subr.mxu0 0.0
        %1552 = vmatpush1.msra.mxu0 0.0
        %1553 = vmatprep.subr.mxu0 0.0
        %1554 = vmatpush1.msra.mxu0 0.0
        %1555 = vmatprep.subr.mxu0 0.0
        %1556 = vmatpush1.msra.mxu0 0.0
        %1557 = vmatprep.subr.mxu0 0.0
        %1558 = vmatpush1.msra.mxu0 0.0
        %1559 = vmatprep.subr.mxu0 0.0
        %1560 = vmatpush1.msra.mxu0 0.0
        %1561 = vmatprep.subr.mxu0 0.0
        %1562 = vmatpush1.msra.mxu0 0.0
        %1563 = vmatprep.subr.mxu0 0.0
        %1564 = vmatpush1.msra.mxu0 0.0
        %1565 = vmatprep.subr.mxu0 0.0
        %1566 = vmatpush1.msra.mxu0 0.0
        %1567 = vmatprep.subr.mxu0 0.0
        %1568 = vmatpush1.msra.mxu0 0.0
        %1569 = vmatprep.mubr.f32.mxu0 0.0
        %1570 = vmatmul.mubr.f32.gmra.mrb[0].mxu0 %v1500
        %v1571 = vpop.f32.mrb[0].mxu0
        %v1572 = vadd.f32 %v1498, %v1571
        %v1573 = vpop.f32.mrb[0].mxu0
        %1574 = vmatprep.mubr.f32.mxu0 0.0
        %1575 = vmatmul.mubr.f32.gmra.mrb[0].mxu0 %v1503
        %v1576 = vpop.f32.mrb[0].mxu0
        %v1577 = vadd.f32 %v1498, %v1576
        %v1578 = vpop.f32.mrb[0].mxu0
        %1579 = vdwg.mxu0
        %v1580 = vadd.f32 %v530, %v1572
        %v1581 = vadd.f32 %v531, %v1577
        %v1582 = vld [vmem:[%s412 + $0x1] sm:$0x1]
        %v1583 = vld [vmem:[%s412 + $0x2] sm:$0x1]
        %v1584 = vsel %vm561, %v1580, 0.0
        %1585 = vadd.xlane.f32.xlu0 %v1584
        %v1586 = vpop.xlane.xlu0 %1585
        %v1587 = vsel %vm561, %v1581, 0.0
        %1588 = vadd.xlane.f32.xlu0 %v1587
        %v1589 = vpop.xlane.xlu0 %1588
        %v1590 = vrcp.pop 32.0
        %v1591 = vmul.f32 %v1586, %v1590
        %v1592 = vmul.f32 %v1589, %v1590
        %v1593 = vsub.f32 %v1580, %v1591
        %v1594 = vsub.f32 %v1581, %v1592
        %v1595 = vmul.f32 %v1593, %v1593
        %v1596 = vmul.f32 %v1594, %v1594
        %v1597 = vsel %vm561, %v1595, 0.0
        %1598 = vadd.xlane.f32.xlu0 %v1597
        %v1599 = vpop.xlane.xlu0 %1598
        %v1600 = vsel %vm561, %v1596, 0.0
        %1601 = vadd.xlane.f32.xlu0 %v1600
        %v1602 = vpop.xlane.xlu0 %1601
        %v1603 = vmul.f32 %v1599, %v1590
        %v1604 = vmul.f32 %v1602, %v1590
        %v1605 = vadd.f32 %v1603, 1e-05
        %v1606 = vadd.f32 %v1604, 1e-05
        %v1607 = vrsqrt.pop %v1605
        %v1608 = vrsqrt.pop %v1606
        %v1609 = vmul.f32 %v1593, %v1607
        %v1610 = vmul.f32 %v1594, %v1608
        %v1611 = vlaneseq
        %v1612 = vshrl.u32 %v1611, 7
        %v1613 = vsub.s32 0, %v1612
        %v1614 = vrot.slane %v1582, %v1613
        %v1615 = vmul.f32 %v1609, %v1614
        %v1616 = vmul.f32 %v1610, %v1614
        %v1617 = vlaneseq
        %v1618 = vshrl.u32 %v1617, 7
        %v1619 = vsub.s32 0, %v1618
        %v1620 = vrot.slane %v1583, %v1619
        %v1621 = vadd.f32 %v1615, %v1620
        %v1622 = vadd.f32 %v1616, %v1620
        %v1623 = vpack.c.bf16 %v1622, %v1621
        %v1624 = vld [vmem:[%s421] sm:$0xff]
        %v1625 = vld [vmem:[%s421 + $0x8] sm:$0xff]
        %v1626 = vld [vmem:[%s421 + $0x40] sm:$0xff]
        %v1627 = vld [vmem:[%s421 + $0x48] sm:$0xff]
        %v1628 = vld [vmem:[%s421 + $0x80] sm:$0xff]
        %v1629 = vld [vmem:[%s421 + $0x88] sm:$0xff]
        %v1630 = vld [vmem:[%s421 + $0xc0] sm:$0xff]
        %v1631 = vld [vmem:[%s421 + $0xc8] sm:$0xff]
        %v1632 = vld [vmem:[%s416] sm:$0xf]
        %v1634 = vlaneseq
        %v1635 = vshrl.u32 %v1634, 7
        %v1636 = vsub.s32 0, %v1635
        %v1637 = vrot.slane %v1632, %v1636
        %v1638 = vlaneseq
        %v1639 = vshrl.u32 %v1638, 7
        %v1640 = vsub.s32 1, %v1639
        %v1641 = vrot.slane %v1632, %v1640
        %v1642 = vlaneseq
        %v1643 = vshrl.u32 %v1642, 7
        %v1644 = vsub.s32 2, %v1643
        %v1645 = vrot.slane %v1632, %v1644
        %v1646 = vlaneseq
        %v1647 = vshrl.u32 %v1646, 7
        %v1648 = vsub.s32 3, %v1647
        %v1649 = vrot.slane %v1632, %v1648
        %v1662 = vunpack.c.l.b16 %v1624
        %v1663 = vunpack.c.h.b16 %v1624
        %v1664 = vunpack.c.l.b16 %v1625
        %v1665 = vunpack.c.h.b16 %v1625
        %v1666 = vunpack.c.l.b16 %v1626
        %v1667 = vunpack.c.h.b16 %v1626
        %v1668 = vunpack.c.l.b16 %v1627
        %v1669 = vunpack.c.h.b16 %v1627
        %v1670 = vunpack.c.l.b16 %v1628
        %v1671 = vunpack.c.h.b16 %v1628
        %v1672 = vunpack.c.l.b16 %v1629
        %v1673 = vunpack.c.h.b16 %v1629
        %v1674 = vunpack.c.l.b16 %v1630
        %v1675 = vunpack.c.h.b16 %v1630
        %v1676 = vunpack.c.l.b16 %v1631
        %v1677 = vunpack.c.h.b16 %v1631
        %v1678 = vpack.c.b16 %v1666, %v1662
        %v1679 = vpack.c.b16 %v1667, %v1663
        %v1680 = vpack.c.b16 %v1668, %v1664
        %v1681 = vpack.c.b16 %v1669, %v1665
        %v1682 = vpack.c.b16 %v1674, %v1670
        %v1683 = vpack.c.b16 %v1675, %v1671
        %v1684 = vpack.c.b16 %v1676, %v1672
        %v1685 = vpack.c.b16 %v1677, %v1673
        %v1695 = vsel %vm561, %v1623, 0
        %1697 = vmatprep.subr.bf16.mxu0 %v1679
        %1698 = vmatpush1.bf16.msra.mxu0 %v1678
        %1699 = vmatprep.subr.bf16.mxu0 %v1683
        %1700 = vmatpush1.bf16.msra.mxu0 %v1682
        %1701 = vmatprep.subr.bf16.mxu0 0
        %1702 = vmatpush1.bf16.msra.mxu0 0
        %1703 = vmatprep.subr.bf16.mxu0 0
        %1704 = vmatpush1.bf16.msra.mxu0 0
        %1705 = vmatprep.subr.bf16.mxu0 0
        %1706 = vmatpush1.bf16.msra.mxu0 0
        %1707 = vmatprep.subr.bf16.mxu0 0
        %1708 = vmatpush1.bf16.msra.mxu0 0
        %1709 = vmatprep.subr.bf16.mxu0 0
        %1710 = vmatpush1.bf16.msra.mxu0 0
        %1711 = vmatprep.subr.bf16.mxu0 0
        %1712 = vmatpush1.bf16.msra.mxu0 0
        %1713 = vmatprep.subr.bf16.mxu0 0
        %1714 = vmatpush1.bf16.msra.mxu0 0
        %1715 = vmatprep.subr.bf16.mxu0 0
        %1716 = vmatpush1.bf16.msra.mxu0 0
        %1717 = vmatprep.subr.bf16.mxu0 0
        %1718 = vmatpush1.bf16.msra.mxu0 0
        %1719 = vmatprep.subr.bf16.mxu0 0
        %1720 = vmatpush1.bf16.msra.mxu0 0
        %1721 = vmatprep.subr.bf16.mxu0 0
        %1722 = vmatpush1.bf16.msra.mxu0 0
        %1723 = vmatprep.subr.bf16.mxu0 0
        %1724 = vmatpush1.bf16.msra.mxu0 0
        %1725 = vmatprep.subr.bf16.mxu0 0
        %1726 = vmatpush1.bf16.msra.mxu0 0
        %1727 = vmatprep.subr.bf16.mxu0 0
        %1728 = vmatpush1.bf16.msra.mxu0 0
        %1729 = vmatprep.mubr.bf16.mxu0 0
        %1730 = vmatmul.mubr.bf16.gmra.mrb[0].mxu0 %v1695
        %v1731 = vpop.f32.mrb[0].mxu0
        %v1732 = vadd.f32 %v1637, %v1731
        %v1733 = vpop.f32.mrb[0].mxu0
        %v1734 = vadd.f32 %v1641, %v1733
        %v1735 = vpop.f32.mrb[0].mxu0
        %v1736 = vadd.f32 %v1637, %v1735
        %v1737 = vpop.f32.mrb[0].mxu0
        %v1738 = vadd.f32 %v1641, %v1737
        %1739 = vdwg.mxu0
        %1740 = vmatprep.subr.bf16.mxu0 %v1681
        %1741 = vmatpush1.bf16.msra.mxu0 %v1680
        %1742 = vmatprep.subr.bf16.mxu0 %v1685
        %1743 = vmatpush1.bf16.msra.mxu0 %v1684
        %1744 = vmatprep.subr.bf16.mxu0 0
        %1745 = vmatpush1.bf16.msra.mxu0 0
        %1746 = vmatprep.subr.bf16.mxu0 0
        %1747 = vmatpush1.bf16.msra.mxu0 0
        %1748 = vmatprep.subr.bf16.mxu0 0
        %1749 = vmatpush1.bf16.msra.mxu0 0
        %1750 = vmatprep.subr.bf16.mxu0 0
        %1751 = vmatpush1.bf16.msra.mxu0 0
        %1752 = vmatprep.subr.bf16.mxu0 0
        %1753 = vmatpush1.bf16.msra.mxu0 0
        %1754 = vmatprep.subr.bf16.mxu0 0
        %1755 = vmatpush1.bf16.msra.mxu0 0
        %1756 = vmatprep.subr.bf16.mxu0 0
        %1757 = vmatpush1.bf16.msra.mxu0 0
        %1758 = vmatprep.subr.bf16.mxu0 0
        %1759 = vmatpush1.bf16.msra.mxu0 0
        %1760 = vmatprep.subr.bf16.mxu0 0
        %1761 = vmatpush1.bf16.msra.mxu0 0
        %1762 = vmatprep.subr.bf16.mxu0 0
        %1763 = vmatpush1.bf16.msra.mxu0 0
        %1764 = vmatprep.subr.bf16.mxu0 0
        %1765 = vmatpush1.bf16.msra.mxu0 0
        %1766 = vmatprep.subr.bf16.mxu0 0
        %1767 = vmatpush1.bf16.msra.mxu0 0
        %1768 = vmatprep.subr.bf16.mxu0 0
        %1769 = vmatpush1.bf16.msra.mxu0 0
        %1770 = vmatprep.subr.bf16.mxu0 0
        %1771 = vmatpush1.bf16.msra.mxu0 0
        %1772 = vmatprep.mubr.bf16.mxu0 0
        %1773 = vmatmul.mubr.bf16.gmra.mrb[0].mxu0 %v1695
        %v1774 = vpop.f32.mrb[0].mxu0
        %v1775 = vadd.f32 %v1645, %v1774
        %v1776 = vpop.f32.mrb[0].mxu0
        %v1777 = vadd.f32 %v1649, %v1776
        %v1778 = vpop.f32.mrb[0].mxu0
        %v1779 = vadd.f32 %v1645, %v1778
        %v1780 = vpop.f32.mrb[0].mxu0
        %v1781 = vadd.f32 %v1649, %v1780
        %1782 = vdwg.mxu0
        %v1783 = vmax.f32 %v1732, 0.0
        %v1784 = vmax.f32 %v1734, 0.0
        %v1785 = vmax.f32 %v1775, 0.0
        %v1786 = vmax.f32 %v1777, 0.0
        %v1787 = vmax.f32 %v1736, 0.0
        %v1788 = vmax.f32 %v1738, 0.0
        %v1789 = vmax.f32 %v1779, 0.0
        %v1790 = vmax.f32 %v1781, 0.0
        %v1791 = vpack.c.bf16 %v1787, %v1783
        %v1792 = vpack.c.bf16 %v1788, %v1784
        %v1793 = vpack.c.bf16 %v1789, %v1785
        %v1794 = vpack.c.bf16 %v1790, %v1786
        %v1795 = vld [vmem:[%s426] sm:$0xf]
        %v1796 = vld [vmem:[%s426 + $0x4] sm:$0xf]
        %v1797 = vld [vmem:[%s426 + $0x8] sm:$0xf]
        %v1798 = vld [vmem:[%s426 + $0xc] sm:$0xf]
        %v1799 = vld [vmem:[%s426 + $0x10] sm:$0xf]
        %v1800 = vld [vmem:[%s426 + $0x14] sm:$0xf]
        %v1801 = vld [vmem:[%s426 + $0x18] sm:$0xf]
        %v1802 = vld [vmem:[%s426 + $0x1c] sm:$0xf]
        %v1803 = vld [vmem:[%s426 + $0x20] sm:$0xf]
        %v1804 = vld [vmem:[%s426 + $0x24] sm:$0xf]
        %v1805 = vld [vmem:[%s426 + $0x28] sm:$0xf]
        %v1806 = vld [vmem:[%s426 + $0x2c] sm:$0xf]
        %v1807 = vld [vmem:[%s426 + $0x30] sm:$0xf]
        %v1808 = vld [vmem:[%s426 + $0x34] sm:$0xf]
        %v1809 = vld [vmem:[%s426 + $0x38] sm:$0xf]
        %v1810 = vld [vmem:[%s426 + $0x3c] sm:$0xf]
        %v1811 = vld [vmem:[%s426 + $0x40] sm:$0xf]
        %v1812 = vld [vmem:[%s426 + $0x44] sm:$0xf]
        %v1813 = vld [vmem:[%s426 + $0x48] sm:$0xf]
        %v1814 = vld [vmem:[%s426 + $0x4c] sm:$0xf]
        %v1815 = vld [vmem:[%s426 + $0x50] sm:$0xf]
        %v1816 = vld [vmem:[%s426 + $0x54] sm:$0xf]
        %v1817 = vld [vmem:[%s426 + $0x58] sm:$0xf]
        %v1818 = vld [vmem:[%s426 + $0x5c] sm:$0xf]
        %v1819 = vld [vmem:[%s426 + $0x60] sm:$0xf]
        %v1820 = vld [vmem:[%s426 + $0x64] sm:$0xf]
        %v1821 = vld [vmem:[%s426 + $0x68] sm:$0xf]
        %v1822 = vld [vmem:[%s426 + $0x6c] sm:$0xf]
        %v1823 = vld [vmem:[%s426 + $0x70] sm:$0xf]
        %v1824 = vld [vmem:[%s426 + $0x74] sm:$0xf]
        %v1825 = vld [vmem:[%s426 + $0x78] sm:$0xf]
        %v1826 = vld [vmem:[%s426 + $0x7c] sm:$0xf]
        %v1827 = vld [vmem:[%s426 + $0x80] sm:$0xf]
        %v1828 = vld [vmem:[%s426 + $0x84] sm:$0xf]
        %v1829 = vld [vmem:[%s426 + $0x88] sm:$0xf]
        %v1830 = vld [vmem:[%s426 + $0x8c] sm:$0xf]
        %v1831 = vld [vmem:[%s426 + $0x90] sm:$0xf]
        %v1832 = vld [vmem:[%s426 + $0x94] sm:$0xf]
        %v1833 = vld [vmem:[%s426 + $0x98] sm:$0xf]
        %v1834 = vld [vmem:[%s426 + $0x9c] sm:$0xf]
        %v1835 = vld [vmem:[%s426 + $0xa0] sm:$0xf]
        %v1836 = vld [vmem:[%s426 + $0xa4] sm:$0xf]
        %v1837 = vld [vmem:[%s426 + $0xa8] sm:$0xf]
        %v1838 = vld [vmem:[%s426 + $0xac] sm:$0xf]
        %v1839 = vld [vmem:[%s426 + $0xb0] sm:$0xf]
        %v1840 = vld [vmem:[%s426 + $0xb4] sm:$0xf]
        %v1841 = vld [vmem:[%s426 + $0xb8] sm:$0xf]
        %v1842 = vld [vmem:[%s426 + $0xbc] sm:$0xf]
        %v1843 = vld [vmem:[%s426 + $0xc0] sm:$0xf]
        %v1844 = vld [vmem:[%s426 + $0xc4] sm:$0xf]
        %v1845 = vld [vmem:[%s426 + $0xc8] sm:$0xf]
        %v1846 = vld [vmem:[%s426 + $0xcc] sm:$0xf]
        %v1847 = vld [vmem:[%s426 + $0xd0] sm:$0xf]
        %v1848 = vld [vmem:[%s426 + $0xd4] sm:$0xf]
        %v1849 = vld [vmem:[%s426 + $0xd8] sm:$0xf]
        %v1850 = vld [vmem:[%s426 + $0xdc] sm:$0xf]
        %v1851 = vld [vmem:[%s426 + $0xe0] sm:$0xf]
        %v1852 = vld [vmem:[%s426 + $0xe4] sm:$0xf]
        %v1853 = vld [vmem:[%s426 + $0xe8] sm:$0xf]
        %v1854 = vld [vmem:[%s426 + $0xec] sm:$0xf]
        %v1855 = vld [vmem:[%s426 + $0xf0] sm:$0xf]
        %v1856 = vld [vmem:[%s426 + $0xf4] sm:$0xf]
        %v1857 = vld [vmem:[%s426 + $0xf8] sm:$0xf]
        %v1858 = vld [vmem:[%s426 + $0xfc] sm:$0xf]
        %v1859 = vld [vmem:[%s421 + $0x10] sm:$0xff]
        %v1860 = vld [vmem:[%s421 + $0x18] sm:$0xff]
        %v1861 = vld [vmem:[%s421 + $0x50] sm:$0xff]
        %v1862 = vld [vmem:[%s421 + $0x58] sm:$0xff]
        %v1863 = vld [vmem:[%s421 + $0x90] sm:$0xff]
        %v1864 = vld [vmem:[%s421 + $0x98] sm:$0xff]
        %v1865 = vld [vmem:[%s421 + $0xd0] sm:$0xff]
        %v1866 = vld [vmem:[%s421 + $0xd8] sm:$0xff]
        %v1867 = vld [vmem:[%s416 + $0x4] sm:$0xf]
        %v1869 = vlaneseq
        %v1870 = vshrl.u32 %v1869, 7
        %v1871 = vsub.s32 0, %v1870
        %v1872 = vrot.slane %v1867, %v1871
        %v1873 = vlaneseq
        %v1874 = vshrl.u32 %v1873, 7
        %v1875 = vsub.s32 1, %v1874
        %v1876 = vrot.slane %v1867, %v1875
        %v1877 = vlaneseq
        %v1878 = vshrl.u32 %v1877, 7
        %v1879 = vsub.s32 2, %v1878
        %v1880 = vrot.slane %v1867, %v1879
        %v1881 = vlaneseq
        %v1882 = vshrl.u32 %v1881, 7
        %v1883 = vsub.s32 3, %v1882
        %v1884 = vrot.slane %v1867, %v1883
        %v1897 = vunpack.c.l.b16 %v1859
        %v1898 = vunpack.c.h.b16 %v1859
        %v1899 = vunpack.c.l.b16 %v1860
        %v1900 = vunpack.c.h.b16 %v1860
        %v1901 = vunpack.c.l.b16 %v1861
        %v1902 = vunpack.c.h.b16 %v1861
        %v1903 = vunpack.c.l.b16 %v1862
        %v1904 = vunpack.c.h.b16 %v1862
        %v1905 = vunpack.c.l.b16 %v1863
        %v1906 = vunpack.c.h.b16 %v1863
        %v1907 = vunpack.c.l.b16 %v1864
        %v1908 = vunpack.c.h.b16 %v1864
        %v1909 = vunpack.c.l.b16 %v1865
        %v1910 = vunpack.c.h.b16 %v1865
        %v1911 = vunpack.c.l.b16 %v1866
        %v1912 = vunpack.c.h.b16 %v1866
        %v1913 = vpack.c.b16 %v1901, %v1897
        %v1914 = vpack.c.b16 %v1902, %v1898
        %v1915 = vpack.c.b16 %v1903, %v1899
        %v1916 = vpack.c.b16 %v1904, %v1900
        %v1917 = vpack.c.b16 %v1909, %v1905
        %v1918 = vpack.c.b16 %v1910, %v1906
        %v1919 = vpack.c.b16 %v1911, %v1907
        %v1920 = vpack.c.b16 %v1912, %v1908
        %1929 = vmatprep.subr.bf16.mxu0 %v1914
        %1930 = vmatpush1.bf16.msra.mxu0 %v1913
        %1931 = vmatprep.subr.bf16.mxu0 %v1918
        %1932 = vmatpush1.bf16.msra.mxu0 %v1917
        %1933 = vmatprep.subr.bf16.mxu0 0
        %1934 = vmatpush1.bf16.msra.mxu0 0
        %1935 = vmatprep.subr.bf16.mxu0 0
        %1936 = vmatpush1.bf16.msra.mxu0 0
        %1937 = vmatprep.subr.bf16.mxu0 0
        %1938 = vmatpush1.bf16.msra.mxu0 0
        %1939 = vmatprep.subr.bf16.mxu0 0
        %1940 = vmatpush1.bf16.msra.mxu0 0
        %1941 = vmatprep.subr.bf16.mxu0 0
        %1942 = vmatpush1.bf16.msra.mxu0 0
        %1943 = vmatprep.subr.bf16.mxu0 0
        %1944 = vmatpush1.bf16.msra.mxu0 0
        %1945 = vmatprep.subr.bf16.mxu0 0
        %1946 = vmatpush1.bf16.msra.mxu0 0
        %1947 = vmatprep.subr.bf16.mxu0 0
        %1948 = vmatpush1.bf16.msra.mxu0 0
        %1949 = vmatprep.subr.bf16.mxu0 0
        %1950 = vmatpush1.bf16.msra.mxu0 0
        %1951 = vmatprep.subr.bf16.mxu0 0
        %1952 = vmatpush1.bf16.msra.mxu0 0
        %1953 = vmatprep.subr.bf16.mxu0 0
        %1954 = vmatpush1.bf16.msra.mxu0 0
        %1955 = vmatprep.subr.bf16.mxu0 0
        %1956 = vmatpush1.bf16.msra.mxu0 0
        %1957 = vmatprep.subr.bf16.mxu0 0
        %1958 = vmatpush1.bf16.msra.mxu0 0
        %1959 = vmatprep.subr.bf16.mxu0 0
        %1960 = vmatpush1.bf16.msra.mxu0 0
        %1961 = vmatprep.mubr.bf16.mxu0 0
        %1962 = vmatmul.mubr.bf16.gmra.mrb[0].mxu0 %v1695
        %v1963 = vpop.f32.mrb[0].mxu0
        %v1964 = vadd.f32 %v1872, %v1963
        %v1965 = vpop.f32.mrb[0].mxu0
        %v1966 = vadd.f32 %v1876, %v1965
        %v1967 = vpop.f32.mrb[0].mxu0
        %v1968 = vadd.f32 %v1872, %v1967
        %v1969 = vpop.f32.mrb[0].mxu0
        %v1970 = vadd.f32 %v1876, %v1969
        %1971 = vdwg.mxu0
        %1972 = vmatprep.subr.bf16.mxu0 %v1916
        %1973 = vmatpush1.bf16.msra.mxu0 %v1915
        %1974 = vmatprep.subr.bf16.mxu0 %v1920
        %1975 = vmatpush1.bf16.msra.mxu0 %v1919
        %1976 = vmatprep.subr.bf16.mxu0 0
        %1977 = vmatpush1.bf16.msra.mxu0 0
        %1978 = vmatprep.subr.bf16.mxu0 0
        %1979 = vmatpush1.bf16.msra.mxu0 0
        %1980 = vmatprep.subr.bf16.mxu0 0
        %1981 = vmatpush1.bf16.msra.mxu0 0
        %1982 = vmatprep.subr.bf16.mxu0 0
        %1983 = vmatpush1.bf16.msra.mxu0 0
        %1984 = vmatprep.subr.bf16.mxu0 0
        %1985 = vmatpush1.bf16.msra.mxu0 0
        %1986 = vmatprep.subr.bf16.mxu0 0
        %1987 = vmatpush1.bf16.msra.mxu0 0
        %1988 = vmatprep.subr.bf16.mxu0 0
        %1989 = vmatpush1.bf16.msra.mxu0 0
        %1990 = vmatprep.subr.bf16.mxu0 0
        %1991 = vmatpush1.bf16.msra.mxu0 0
        %1992 = vmatprep.subr.bf16.mxu0 0
        %1993 = vmatpush1.bf16.msra.mxu0 0
        %1994 = vmatprep.subr.bf16.mxu0 0
        %1995 = vmatpush1.bf16.msra.mxu0 0
        %1996 = vmatprep.subr.bf16.mxu0 0
        %1997 = vmatpush1.bf16.msra.mxu0 0
        %1998 = vmatprep.subr.bf16.mxu0 0
        %1999 = vmatpush1.bf16.msra.mxu0 0
        %2000 = vmatprep.subr.bf16.mxu0 0
        %2001 = vmatpush1.bf16.msra.mxu0 0
        %2002 = vmatprep.subr.bf16.mxu0 0
        %2003 = vmatpush1.bf16.msra.mxu0 0
        %2004 = vmatprep.mubr.bf16.mxu0 0
        %2005 = vmatmul.mubr.bf16.gmra.mrb[0].mxu0 %v1695
        %v2006 = vpop.f32.mrb[0].mxu0
        %v2007 = vadd.f32 %v1880, %v2006
        %v2008 = vpop.f32.mrb[0].mxu0
        %v2009 = vadd.f32 %v1884, %v2008
        %v2010 = vpop.f32.mrb[0].mxu0
        %v2011 = vadd.f32 %v1880, %v2010
        %v2012 = vpop.f32.mrb[0].mxu0
        %v2013 = vadd.f32 %v1884, %v2012
        %2014 = vdwg.mxu0
        %v2015 = vmax.f32 %v1964, 0.0
        %v2016 = vmax.f32 %v1966, 0.0
        %v2017 = vmax.f32 %v2007, 0.0
        %v2018 = vmax.f32 %v2009, 0.0
        %v2019 = vmax.f32 %v1968, 0.0
        %v2020 = vmax.f32 %v1970, 0.0
        %v2021 = vmax.f32 %v2011, 0.0
        %v2022 = vmax.f32 %v2013, 0.0
        %v2023 = vpack.c.bf16 %v2019, %v2015
        %v2024 = vpack.c.bf16 %v2020, %v2016
        %v2025 = vpack.c.bf16 %v2021, %v2017
        %v2026 = vpack.c.bf16 %v2022, %v2018
        %v2027 = vld [vmem:[%s426 + $0x100] sm:$0xf]
        %v2028 = vld [vmem:[%s426 + $0x104] sm:$0xf]
        %v2029 = vld [vmem:[%s426 + $0x108] sm:$0xf]
        %v2030 = vld [vmem:[%s426 + $0x10c] sm:$0xf]
        %v2031 = vld [vmem:[%s426 + $0x110] sm:$0xf]
        %v2032 = vld [vmem:[%s426 + $0x114] sm:$0xf]
        %v2033 = vld [vmem:[%s426 + $0x118] sm:$0xf]
        %v2034 = vld [vmem:[%s426 + $0x11c] sm:$0xf]
        %v2035 = vld [vmem:[%s426 + $0x120] sm:$0xf]
        %v2036 = vld [vmem:[%s426 + $0x124] sm:$0xf]
        %v2037 = vld [vmem:[%s426 + $0x128] sm:$0xf]
        %v2038 = vld [vmem:[%s426 + $0x12c] sm:$0xf]
        %v2039 = vld [vmem:[%s426 + $0x130] sm:$0xf]
        %v2040 = vld [vmem:[%s426 + $0x134] sm:$0xf]
        %v2041 = vld [vmem:[%s426 + $0x138] sm:$0xf]
        %v2042 = vld [vmem:[%s426 + $0x13c] sm:$0xf]
        %v2043 = vld [vmem:[%s426 + $0x140] sm:$0xf]
        %v2044 = vld [vmem:[%s426 + $0x144] sm:$0xf]
        %v2045 = vld [vmem:[%s426 + $0x148] sm:$0xf]
        %v2046 = vld [vmem:[%s426 + $0x14c] sm:$0xf]
        %v2047 = vld [vmem:[%s426 + $0x150] sm:$0xf]
        %v2048 = vld [vmem:[%s426 + $0x154] sm:$0xf]
        %v2049 = vld [vmem:[%s426 + $0x158] sm:$0xf]
        %v2050 = vld [vmem:[%s426 + $0x15c] sm:$0xf]
        %v2051 = vld [vmem:[%s426 + $0x160] sm:$0xf]
        %v2052 = vld [vmem:[%s426 + $0x164] sm:$0xf]
        %v2053 = vld [vmem:[%s426 + $0x168] sm:$0xf]
        %v2054 = vld [vmem:[%s426 + $0x16c] sm:$0xf]
        %v2055 = vld [vmem:[%s426 + $0x170] sm:$0xf]
        %v2056 = vld [vmem:[%s426 + $0x174] sm:$0xf]
        %v2057 = vld [vmem:[%s426 + $0x178] sm:$0xf]
        %v2058 = vld [vmem:[%s426 + $0x17c] sm:$0xf]
        %v2059 = vld [vmem:[%s426 + $0x180] sm:$0xf]
        %v2060 = vld [vmem:[%s426 + $0x184] sm:$0xf]
        %v2061 = vld [vmem:[%s426 + $0x188] sm:$0xf]
        %v2062 = vld [vmem:[%s426 + $0x18c] sm:$0xf]
        %v2063 = vld [vmem:[%s426 + $0x190] sm:$0xf]
        %v2064 = vld [vmem:[%s426 + $0x194] sm:$0xf]
        %v2065 = vld [vmem:[%s426 + $0x198] sm:$0xf]
        %v2066 = vld [vmem:[%s426 + $0x19c] sm:$0xf]
        %v2067 = vld [vmem:[%s426 + $0x1a0] sm:$0xf]
        %v2068 = vld [vmem:[%s426 + $0x1a4] sm:$0xf]
        %v2069 = vld [vmem:[%s426 + $0x1a8] sm:$0xf]
        %v2070 = vld [vmem:[%s426 + $0x1ac] sm:$0xf]
        %v2071 = vld [vmem:[%s426 + $0x1b0] sm:$0xf]
        %v2072 = vld [vmem:[%s426 + $0x1b4] sm:$0xf]
        %v2073 = vld [vmem:[%s426 + $0x1b8] sm:$0xf]
        %v2074 = vld [vmem:[%s426 + $0x1bc] sm:$0xf]
        %v2075 = vld [vmem:[%s426 + $0x1c0] sm:$0xf]
        %v2076 = vld [vmem:[%s426 + $0x1c4] sm:$0xf]
        %v2077 = vld [vmem:[%s426 + $0x1c8] sm:$0xf]
        %v2078 = vld [vmem:[%s426 + $0x1cc] sm:$0xf]
        %v2079 = vld [vmem:[%s426 + $0x1d0] sm:$0xf]
        %v2080 = vld [vmem:[%s426 + $0x1d4] sm:$0xf]
        %v2081 = vld [vmem:[%s426 + $0x1d8] sm:$0xf]
        %v2082 = vld [vmem:[%s426 + $0x1dc] sm:$0xf]
        %v2083 = vld [vmem:[%s426 + $0x1e0] sm:$0xf]
        %v2084 = vld [vmem:[%s426 + $0x1e4] sm:$0xf]
        %v2085 = vld [vmem:[%s426 + $0x1e8] sm:$0xf]
        %v2086 = vld [vmem:[%s426 + $0x1ec] sm:$0xf]
        %v2087 = vld [vmem:[%s426 + $0x1f0] sm:$0xf]
        %v2088 = vld [vmem:[%s426 + $0x1f4] sm:$0xf]
        %v2089 = vld [vmem:[%s426 + $0x1f8] sm:$0xf]
        %v2090 = vld [vmem:[%s426 + $0x1fc] sm:$0xf]
        %v2155 = vunpack.c.l.b16 %v2027
        %v2156 = vunpack.c.l.b16 %v2028
        %v2157 = vunpack.c.l.b16 %v2029
        %v2158 = vunpack.c.l.b16 %v2030
        %v2159 = vunpack.c.l.b16 %v2031
        %v2160 = vunpack.c.l.b16 %v2032
        %v2161 = vunpack.c.l.b16 %v2033
        %v2162 = vunpack.c.l.b16 %v2034
        %v2163 = vunpack.c.l.b16 %v2035
        %v2164 = vunpack.c.l.b16 %v2036
        %v2165 = vunpack.c.l.b16 %v2037
        %v2166 = vunpack.c.l.b16 %v2038
        %v2167 = vunpack.c.l.b16 %v2039
        %v2168 = vunpack.c.l.b16 %v2040
        %v2169 = vunpack.c.l.b16 %v2041
        %v2170 = vunpack.c.l.b16 %v2042
        %v2171 = vunpack.c.l.b16 %v2043
        %v2172 = vunpack.c.l.b16 %v2044
        %v2173 = vunpack.c.l.b16 %v2045
        %v2174 = vunpack.c.l.b16 %v2046
        %v2175 = vunpack.c.l.b16 %v2047
        %v2176 = vunpack.c.l.b16 %v2048
        %v2177 = vunpack.c.l.b16 %v2049
        %v2178 = vunpack.c.l.b16 %v2050
        %v2179 = vunpack.c.l.b16 %v2051
        %v2180 = vunpack.c.l.b16 %v2052
        %v2181 = vunpack.c.l.b16 %v2053
        %v2182 = vunpack.c.l.b16 %v2054
        %v2183 = vunpack.c.l.b16 %v2055
        %v2184 = vunpack.c.l.b16 %v2056
        %v2185 = vunpack.c.l.b16 %v2057
        %v2186 = vunpack.c.l.b16 %v2058
        %v2187 = vunpack.c.l.b16 %v2059
        %v2188 = vunpack.c.l.b16 %v2060
        %v2189 = vunpack.c.l.b16 %v2061
        %v2190 = vunpack.c.l.b16 %v2062
        %v2191 = vunpack.c.l.b16 %v2063
        %v2192 = vunpack.c.l.b16 %v2064
        %v2193 = vunpack.c.l.b16 %v2065
        %v2194 = vunpack.c.l.b16 %v2066
        %v2195 = vunpack.c.l.b16 %v2067
        %v2196 = vunpack.c.l.b16 %v2068
        %v2197 = vunpack.c.l.b16 %v2069
        %v2198 = vunpack.c.l.b16 %v2070
        %v2199 = vunpack.c.l.b16 %v2071
        %v2200 = vunpack.c.l.b16 %v2072
        %v2201 = vunpack.c.l.b16 %v2073
        %v2202 = vunpack.c.l.b16 %v2074
        %v2203 = vunpack.c.l.b16 %v2075
        %v2204 = vunpack.c.l.b16 %v2076
        %v2205 = vunpack.c.l.b16 %v2077
        %v2206 = vunpack.c.l.b16 %v2078
        %v2207 = vunpack.c.l.b16 %v2079
        %v2208 = vunpack.c.l.b16 %v2080
        %v2209 = vunpack.c.l.b16 %v2081
        %v2210 = vunpack.c.l.b16 %v2082
        %v2211 = vunpack.c.l.b16 %v2083
        %v2212 = vunpack.c.l.b16 %v2084
        %v2213 = vunpack.c.l.b16 %v2085
        %v2214 = vunpack.c.l.b16 %v2086
        %v2215 = vunpack.c.l.b16 %v2087
        %v2216 = vunpack.c.l.b16 %v2088
        %v2217 = vunpack.c.l.b16 %v2089
        %v2218 = vunpack.c.l.b16 %v2090
        %v2219 = vpack.c.b16 %v2156, %v2155
        %v2220 = vpack.c.b16 %v2158, %v2157
        %v2221 = vpack.c.b16 %v2160, %v2159
        %v2222 = vpack.c.b16 %v2162, %v2161
        %v2223 = vpack.c.b16 %v2164, %v2163
        %v2224 = vpack.c.b16 %v2166, %v2165
        %v2225 = vpack.c.b16 %v2168, %v2167
        %v2226 = vpack.c.b16 %v2170, %v2169
        %v2227 = vpack.c.b16 %v2172, %v2171
        %v2228 = vpack.c.b16 %v2174, %v2173
        %v2229 = vpack.c.b16 %v2176, %v2175
        %v2230 = vpack.c.b16 %v2178, %v2177
        %v2231 = vpack.c.b16 %v2180, %v2179
        %v2232 = vpack.c.b16 %v2182, %v2181
        %v2233 = vpack.c.b16 %v2184, %v2183
        %v2234 = vpack.c.b16 %v2186, %v2185
        %v2235 = vpack.c.b16 %v2188, %v2187
        %v2236 = vpack.c.b16 %v2190, %v2189
        %v2237 = vpack.c.b16 %v2192, %v2191
        %v2238 = vpack.c.b16 %v2194, %v2193
        %v2239 = vpack.c.b16 %v2196, %v2195
        %v2240 = vpack.c.b16 %v2198, %v2197
        %v2241 = vpack.c.b16 %v2200, %v2199
        %v2242 = vpack.c.b16 %v2202, %v2201
        %v2243 = vpack.c.b16 %v2204, %v2203
        %v2244 = vpack.c.b16 %v2206, %v2205
        %v2245 = vpack.c.b16 %v2208, %v2207
        %v2246 = vpack.c.b16 %v2210, %v2209
        %v2247 = vpack.c.b16 %v2212, %v2211
        %v2248 = vpack.c.b16 %v2214, %v2213
        %v2249 = vpack.c.b16 %v2216, %v2215
        %v2250 = vpack.c.b16 %v2218, %v2217
        %2283 = vmatprep.subr.bf16.mxu0 0
        %2284 = vmatpush1.bf16.msra.mxu0 %v2219
        %2285 = vmatprep.subr.bf16.mxu0 0
        %2286 = vmatpush1.bf16.msra.mxu0 %v2220
        %2287 = vmatprep.subr.bf16.mxu0 0
        %2288 = vmatpush1.bf16.msra.mxu0 %v2221
        %2289 = vmatprep.subr.bf16.mxu0 0
        %2290 = vmatpush1.bf16.msra.mxu0 %v2222
        %2291 = vmatprep.subr.bf16.mxu0 0
        %2292 = vmatpush1.bf16.msra.mxu0 %v2223
        %2293 = vmatprep.subr.bf16.mxu0 0
        %2294 = vmatpush1.bf16.msra.mxu0 %v2224
        %2295 = vmatprep.subr.bf16.mxu0 0
        %2296 = vmatpush1.bf16.msra.mxu0 %v2225
        %2297 = vmatprep.subr.bf16.mxu0 0
        %2298 = vmatpush1.bf16.msra.mxu0 %v2226
        %2299 = vmatprep.subr.bf16.mxu0 0
        %2300 = vmatpush1.bf16.msra.mxu0 %v2227
        %2301 = vmatprep.subr.bf16.mxu0 0
        %2302 = vmatpush1.bf16.msra.mxu0 %v2228
        %2303 = vmatprep.subr.bf16.mxu0 0
        %2304 = vmatpush1.bf16.msra.mxu0 %v2229
        %2305 = vmatprep.subr.bf16.mxu0 0
        %2306 = vmatpush1.bf16.msra.mxu0 %v2230
        %2307 = vmatprep.subr.bf16.mxu0 0
        %2308 = vmatpush1.bf16.msra.mxu0 %v2231
        %2309 = vmatprep.subr.bf16.mxu0 0
        %2310 = vmatpush1.bf16.msra.mxu0 %v2232
        %2311 = vmatprep.subr.bf16.mxu0 0
        %2312 = vmatpush1.bf16.msra.mxu0 %v2233
        %2313 = vmatprep.subr.bf16.mxu0 0
        %2314 = vmatpush1.bf16.msra.mxu0 %v2234
        %2315 = vmatprep.mubr.bf16.mxu0 %v2024
        %2316 = vmatmul.mubr.bf16.gmra.mrb[0].mxu0 %v2023
        %v2317 = vpop.f32.mrb[0].mxu0
        %v2318 = vadd.f32 0.0, %v2317
        %v2319 = vpop.f32.mrb[0].mxu0
        %v2320 = vpop.f32.mrb[0].mxu0
        %v2321 = vadd.f32 0.0, %v2320
        %v2322 = vpop.f32.mrb[0].mxu0
        %2323 = vdwg.mxu0
        %2324 = vmatprep.subr.bf16.mxu0 0
        %2325 = vmatpush1.bf16.msra.mxu0 %v2235
        %2326 = vmatprep.subr.bf16.mxu0 0
        %2327 = vmatpush1.bf16.msra.mxu0 %v2236
        %2328 = vmatprep.subr.bf16.mxu0 0
        %2329 = vmatpush1.bf16.msra.mxu0 %v2237
        %2330 = vmatprep.subr.bf16.mxu0 0
        %2331 = vmatpush1.bf16.msra.mxu0 %v2238
        %2332 = vmatprep.subr.bf16.mxu0 0
        %2333 = vmatpush1.bf16.msra.mxu0 %v2239
        %2334 = vmatprep.subr.bf16.mxu0 0
        %2335 = vmatpush1.bf16.msra.mxu0 %v2240
        %2336 = vmatprep.subr.bf16.mxu0 0
        %2337 = vmatpush1.bf16.msra.mxu0 %v2241
        %2338 = vmatprep.subr.bf16.mxu0 0
        %2339 = vmatpush1.bf16.msra.mxu0 %v2242
        %2340 = vmatprep.subr.bf16.mxu0 0
        %2341 = vmatpush1.bf16.msra.mxu0 %v2243
        %2342 = vmatprep.subr.bf16.mxu0 0
        %2343 = vmatpush1.bf16.msra.mxu0 %v2244
        %2344 = vmatprep.subr.bf16.mxu0 0
        %2345 = vmatpush1.bf16.msra.mxu0 %v2245
        %2346 = vmatprep.subr.bf16.mxu0 0
        %2347 = vmatpush1.bf16.msra.mxu0 %v2246
        %2348 = vmatprep.subr.bf16.mxu0 0
        %2349 = vmatpush1.bf16.msra.mxu0 %v2247
        %2350 = vmatprep.subr.bf16.mxu0 0
        %2351 = vmatpush1.bf16.msra.mxu0 %v2248
        %2352 = vmatprep.subr.bf16.mxu0 0
        %2353 = vmatpush1.bf16.msra.mxu0 %v2249
        %2354 = vmatprep.subr.bf16.mxu0 0
        %2355 = vmatpush1.bf16.msra.mxu0 %v2250
        %2356 = vmatprep.mubr.bf16.mxu0 %v2026
        %2357 = vmatmul.mubr.bf16.gmra.mrb[0].mxu0 %v2025
        %v2358 = vpop.f32.mrb[0].mxu0
        %v2359 = vadd.f32 %v2318, %v2358
        %v2360 = vpop.f32.mrb[0].mxu0
        %v2361 = vpop.f32.mrb[0].mxu0
        %v2362 = vadd.f32 %v2321, %v2361
        %v2363 = vpop.f32.mrb[0].mxu0
        %2364 = vdwg.mxu0
        %v2429 = vunpack.c.l.b16 %v1795
        %v2430 = vunpack.c.l.b16 %v1796
        %v2431 = vunpack.c.l.b16 %v1797
        %v2432 = vunpack.c.l.b16 %v1798
        %v2433 = vunpack.c.l.b16 %v1799
        %v2434 = vunpack.c.l.b16 %v1800
        %v2435 = vunpack.c.l.b16 %v1801
        %v2436 = vunpack.c.l.b16 %v1802
        %v2437 = vunpack.c.l.b16 %v1803
        %v2438 = vunpack.c.l.b16 %v1804
        %v2439 = vunpack.c.l.b16 %v1805
        %v2440 = vunpack.c.l.b16 %v1806
        %v2441 = vunpack.c.l.b16 %v1807
        %v2442 = vunpack.c.l.b16 %v1808
        %v2443 = vunpack.c.l.b16 %v1809
        %v2444 = vunpack.c.l.b16 %v1810
        %v2445 = vunpack.c.l.b16 %v1811
        %v2446 = vunpack.c.l.b16 %v1812
        %v2447 = vunpack.c.l.b16 %v1813
        %v2448 = vunpack.c.l.b16 %v1814
        %v2449 = vunpack.c.l.b16 %v1815
        %v2450 = vunpack.c.l.b16 %v1816
        %v2451 = vunpack.c.l.b16 %v1817
        %v2452 = vunpack.c.l.b16 %v1818
        %v2453 = vunpack.c.l.b16 %v1819
        %v2454 = vunpack.c.l.b16 %v1820
        %v2455 = vunpack.c.l.b16 %v1821
        %v2456 = vunpack.c.l.b16 %v1822
        %v2457 = vunpack.c.l.b16 %v1823
        %v2458 = vunpack.c.l.b16 %v1824
        %v2459 = vunpack.c.l.b16 %v1825
        %v2460 = vunpack.c.l.b16 %v1826
        %v2461 = vunpack.c.l.b16 %v1827
        %v2462 = vunpack.c.l.b16 %v1828
        %v2463 = vunpack.c.l.b16 %v1829
        %v2464 = vunpack.c.l.b16 %v1830
        %v2465 = vunpack.c.l.b16 %v1831
        %v2466 = vunpack.c.l.b16 %v1832
        %v2467 = vunpack.c.l.b16 %v1833
        %v2468 = vunpack.c.l.b16 %v1834
        %v2469 = vunpack.c.l.b16 %v1835
        %v2470 = vunpack.c.l.b16 %v1836
        %v2471 = vunpack.c.l.b16 %v1837
        %v2472 = vunpack.c.l.b16 %v1838
        %v2473 = vunpack.c.l.b16 %v1839
        %v2474 = vunpack.c.l.b16 %v1840
        %v2475 = vunpack.c.l.b16 %v1841
        %v2476 = vunpack.c.l.b16 %v1842
        %v2477 = vunpack.c.l.b16 %v1843
        %v2478 = vunpack.c.l.b16 %v1844
        %v2479 = vunpack.c.l.b16 %v1845
        %v2480 = vunpack.c.l.b16 %v1846
        %v2481 = vunpack.c.l.b16 %v1847
        %v2482 = vunpack.c.l.b16 %v1848
        %v2483 = vunpack.c.l.b16 %v1849
        %v2484 = vunpack.c.l.b16 %v1850
        %v2485 = vunpack.c.l.b16 %v1851
        %v2486 = vunpack.c.l.b16 %v1852
        %v2487 = vunpack.c.l.b16 %v1853
        %v2488 = vunpack.c.l.b16 %v1854
        %v2489 = vunpack.c.l.b16 %v1855
        %v2490 = vunpack.c.l.b16 %v1856
        %v2491 = vunpack.c.l.b16 %v1857
        %v2492 = vunpack.c.l.b16 %v1858
        %v2493 = vpack.c.b16 %v2430, %v2429
        %v2494 = vpack.c.b16 %v2432, %v2431
        %v2495 = vpack.c.b16 %v2434, %v2433
        %v2496 = vpack.c.b16 %v2436, %v2435
        %v2497 = vpack.c.b16 %v2438, %v2437
        %v2498 = vpack.c.b16 %v2440, %v2439
        %v2499 = vpack.c.b16 %v2442, %v2441
        %v2500 = vpack.c.b16 %v2444, %v2443
        %v2501 = vpack.c.b16 %v2446, %v2445
        %v2502 = vpack.c.b16 %v2448, %v2447
        %v2503 = vpack.c.b16 %v2450, %v2449
        %v2504 = vpack.c.b16 %v2452, %v2451
        %v2505 = vpack.c.b16 %v2454, %v2453
        %v2506 = vpack.c.b16 %v2456, %v2455
        %v2507 = vpack.c.b16 %v2458, %v2457
        %v2508 = vpack.c.b16 %v2460, %v2459
        %v2509 = vpack.c.b16 %v2462, %v2461
        %v2510 = vpack.c.b16 %v2464, %v2463
        %v2511 = vpack.c.b16 %v2466, %v2465
        %v2512 = vpack.c.b16 %v2468, %v2467
        %v2513 = vpack.c.b16 %v2470, %v2469
        %v2514 = vpack.c.b16 %v2472, %v2471
        %v2515 = vpack.c.b16 %v2474, %v2473
        %v2516 = vpack.c.b16 %v2476, %v2475
        %v2517 = vpack.c.b16 %v2478, %v2477
        %v2518 = vpack.c.b16 %v2480, %v2479
        %v2519 = vpack.c.b16 %v2482, %v2481
        %v2520 = vpack.c.b16 %v2484, %v2483
        %v2521 = vpack.c.b16 %v2486, %v2485
        %v2522 = vpack.c.b16 %v2488, %v2487
        %v2523 = vpack.c.b16 %v2490, %v2489
        %v2524 = vpack.c.b16 %v2492, %v2491
        %2557 = vmatprep.subr.bf16.mxu0 0
        %2558 = vmatpush1.bf16.msra.mxu0 %v2493
        %2559 = vmatprep.subr.bf16.mxu0 0
        %2560 = vmatpush1.bf16.msra.mxu0 %v2494
        %2561 = vmatprep.subr.bf16.mxu0 0
        %2562 = vmatpush1.bf16.msra.mxu0 %v2495
        %2563 = vmatprep.subr.bf16.mxu0 0
        %2564 = vmatpush1.bf16.msra.mxu0 %v2496
        %2565 = vmatprep.subr.bf16.mxu0 0
        %2566 = vmatpush1.bf16.msra.mxu0 %v2497
        %2567 = vmatprep.subr.bf16.mxu0 0
        %2568 = vmatpush1.bf16.msra.mxu0 %v2498
        %2569 = vmatprep.subr.bf16.mxu0 0
        %2570 = vmatpush1.bf16.msra.mxu0 %v2499
        %2571 = vmatprep.subr.bf16.mxu0 0
        %2572 = vmatpush1.bf16.msra.mxu0 %v2500
        %2573 = vmatprep.subr.bf16.mxu0 0
        %2574 = vmatpush1.bf16.msra.mxu0 %v2501
        %2575 = vmatprep.subr.bf16.mxu0 0
        %2576 = vmatpush1.bf16.msra.mxu0 %v2502
        %2577 = vmatprep.subr.bf16.mxu0 0
        %2578 = vmatpush1.bf16.msra.mxu0 %v2503
        %2579 = vmatprep.subr.bf16.mxu0 0
        %2580 = vmatpush1.bf16.msra.mxu0 %v2504
        %2581 = vmatprep.subr.bf16.mxu0 0
        %2582 = vmatpush1.bf16.msra.mxu0 %v2505
        %2583 = vmatprep.subr.bf16.mxu0 0
        %2584 = vmatpush1.bf16.msra.mxu0 %v2506
        %2585 = vmatprep.subr.bf16.mxu0 0
        %2586 = vmatpush1.bf16.msra.mxu0 %v2507
        %2587 = vmatprep.subr.bf16.mxu0 0
        %2588 = vmatpush1.bf16.msra.mxu0 %v2508
        %2589 = vmatprep.mubr.bf16.mxu0 %v1792
        %2590 = vmatmul.mubr.bf16.gmra.mrb[0].mxu0 %v1791
        %v2591 = vpop.f32.mrb[0].mxu0
        %v2592 = vadd.f32 %v2359, %v2591
        %v2593 = vpop.f32.mrb[0].mxu0
        %v2594 = vpop.f32.mrb[0].mxu0
        %v2595 = vadd.f32 %v2362, %v2594
        %v2596 = vpop.f32.mrb[0].mxu0
        %2597 = vdwg.mxu0
        %2598 = vmatprep.subr.bf16.mxu0 0
        %2599 = vmatpush1.bf16.msra.mxu0 %v2509
        %2600 = vmatprep.subr.bf16.mxu0 0
        %2601 = vmatpush1.bf16.msra.mxu0 %v2510
        %2602 = vmatprep.subr.bf16.mxu0 0
        %2603 = vmatpush1.bf16.msra.mxu0 %v2511
        %2604 = vmatprep.subr.bf16.mxu0 0
        %2605 = vmatpush1.bf16.msra.mxu0 %v2512
        %2606 = vmatprep.subr.bf16.mxu0 0
        %2607 = vmatpush1.bf16.msra.mxu0 %v2513
        %2608 = vmatprep.subr.bf16.mxu0 0
        %2609 = vmatpush1.bf16.msra.mxu0 %v2514
        %2610 = vmatprep.subr.bf16.mxu0 0
        %2611 = vmatpush1.bf16.msra.mxu0 %v2515
        %2612 = vmatprep.subr.bf16.mxu0 0
        %2613 = vmatpush1.bf16.msra.mxu0 %v2516
        %2614 = vmatprep.subr.bf16.mxu0 0
        %2615 = vmatpush1.bf16.msra.mxu0 %v2517
        %2616 = vmatprep.subr.bf16.mxu0 0
        %2617 = vmatpush1.bf16.msra.mxu0 %v2518
        %2618 = vmatprep.subr.bf16.mxu0 0
        %2619 = vmatpush1.bf16.msra.mxu0 %v2519
        %2620 = vmatprep.subr.bf16.mxu0 0
        %2621 = vmatpush1.bf16.msra.mxu0 %v2520
        %2622 = vmatprep.subr.bf16.mxu0 0
        %2623 = vmatpush1.bf16.msra.mxu0 %v2521
        %2624 = vmatprep.subr.bf16.mxu0 0
        %2625 = vmatpush1.bf16.msra.mxu0 %v2522
        %2626 = vmatprep.subr.bf16.mxu0 0
        %2627 = vmatpush1.bf16.msra.mxu0 %v2523
        %2628 = vmatprep.subr.bf16.mxu0 0
        %2629 = vmatpush1.bf16.msra.mxu0 %v2524
        %2630 = vmatprep.mubr.bf16.mxu0 %v1794
        %2631 = vmatmul.mubr.bf16.gmra.mrb[0].mxu0 %v1793
        %v2632 = vpop.f32.mrb[0].mxu0
        %v2633 = vadd.f32 %v2592, %v2632
        %v2634 = vpop.f32.mrb[0].mxu0
        %v2635 = vpop.f32.mrb[0].mxu0
        %v2636 = vadd.f32 %v2595, %v2635
        %v2637 = vpop.f32.mrb[0].mxu0
        %2638 = vdwg.mxu0
        %v2639 = vld [vmem:[%s421 + $0x20] sm:$0xff]
        %v2640 = vld [vmem:[%s421 + $0x28] sm:$0xff]
        %v2641 = vld [vmem:[%s421 + $0x60] sm:$0xff]
        %v2642 = vld [vmem:[%s421 + $0x68] sm:$0xff]
        %v2643 = vld [vmem:[%s421 + $0xa0] sm:$0xff]
        %v2644 = vld [vmem:[%s421 + $0xa8] sm:$0xff]
        %v2645 = vld [vmem:[%s421 + $0xe0] sm:$0xff]
        %v2646 = vld [vmem:[%s421 + $0xe8] sm:$0xff]
        %v2647 = vld [vmem:[%s416 + $0x8] sm:$0xf]
        %v2649 = vlaneseq
        %v2650 = vshrl.u32 %v2649, 7
        %v2651 = vsub.s32 0, %v2650
        %v2652 = vrot.slane %v2647, %v2651
        %v2653 = vlaneseq
        %v2654 = vshrl.u32 %v2653, 7
        %v2655 = vsub.s32 1, %v2654
        %v2656 = vrot.slane %v2647, %v2655
        %v2657 = vlaneseq
        %v2658 = vshrl.u32 %v2657, 7
        %v2659 = vsub.s32 2, %v2658
        %v2660 = vrot.slane %v2647, %v2659
        %v2661 = vlaneseq
        %v2662 = vshrl.u32 %v2661, 7
        %v2663 = vsub.s32 3, %v2662
        %v2664 = vrot.slane %v2647, %v2663
        %v2677 = vunpack.c.l.b16 %v2639
        %v2678 = vunpack.c.h.b16 %v2639
        %v2679 = vunpack.c.l.b16 %v2640
        %v2680 = vunpack.c.h.b16 %v2640
        %v2681 = vunpack.c.l.b16 %v2641
        %v2682 = vunpack.c.h.b16 %v2641
        %v2683 = vunpack.c.l.b16 %v2642
        %v2684 = vunpack.c.h.b16 %v2642
        %v2685 = vunpack.c.l.b16 %v2643
        %v2686 = vunpack.c.h.b16 %v2643
        %v2687 = vunpack.c.l.b16 %v2644
        %v2688 = vunpack.c.h.b16 %v2644
        %v2689 = vunpack.c.l.b16 %v2645
        %v2690 = vunpack.c.h.b16 %v2645
        %v2691 = vunpack.c.l.b16 %v2646
        %v2692 = vunpack.c.h.b16 %v2646
        %v2693 = vpack.c.b16 %v2681, %v2677
        %v2694 = vpack.c.b16 %v2682, %v2678
        %v2695 = vpack.c.b16 %v2683, %v2679
        %v2696 = vpack.c.b16 %v2684, %v2680
        %v2697 = vpack.c.b16 %v2689, %v2685
        %v2698 = vpack.c.b16 %v2690, %v2686
        %v2699 = vpack.c.b16 %v2691, %v2687
        %v2700 = vpack.c.b16 %v2692, %v2688
        %2709 = vmatprep.subr.bf16.mxu0 %v2694
        %2710 = vmatpush1.bf16.msra.mxu0 %v2693
        %2711 = vmatprep.subr.bf16.mxu0 %v2698
        %2712 = vmatpush1.bf16.msra.mxu0 %v2697
        %2713 = vmatprep.subr.bf16.mxu0 0
        %2714 = vmatpush1.bf16.msra.mxu0 0
        %2715 = vmatprep.subr.bf16.mxu0 0
        %2716 = vmatpush1.bf16.msra.mxu0 0
        %2717 = vmatprep.subr.bf16.mxu0 0
        %2718 = vmatpush1.bf16.msra.mxu0 0
        %2719 = vmatprep.subr.bf16.mxu0 0
        %2720 = vmatpush1.bf16.msra.mxu0 0
        %2721 = vmatprep.subr.bf16.mxu0 0
        %2722 = vmatpush1.bf16.msra.mxu0 0
        %2723 = vmatprep.subr.bf16.mxu0 0
        %2724 = vmatpush1.bf16.msra.mxu0 0
        %2725 = vmatprep.subr.bf16.mxu0 0
        %2726 = vmatpush1.bf16.msra.mxu0 0
        %2727 = vmatprep.subr.bf16.mxu0 0
        %2728 = vmatpush1.bf16.msra.mxu0 0
        %2729 = vmatprep.subr.bf16.mxu0 0
        %2730 = vmatpush1.bf16.msra.mxu0 0
        %2731 = vmatprep.subr.bf16.mxu0 0
        %2732 = vmatpush1.bf16.msra.mxu0 0
        %2733 = vmatprep.subr.bf16.mxu0 0
        %2734 = vmatpush1.bf16.msra.mxu0 0
        %2735 = vmatprep.subr.bf16.mxu0 0
        %2736 = vmatpush1.bf16.msra.mxu0 0
        %2737 = vmatprep.subr.bf16.mxu0 0
        %2738 = vmatpush1.bf16.msra.mxu0 0
        %2739 = vmatprep.subr.bf16.mxu0 0
        %2740 = vmatpush1.bf16.msra.mxu0 0
        %2741 = vmatprep.mubr.bf16.mxu0 0
        %2742 = vmatmul.mubr.bf16.gmra.mrb[0].mxu0 %v1695
        %v2743 = vpop.f32.mrb[0].mxu0
        %v2744 = vadd.f32 %v2652, %v2743
        %v2745 = vpop.f32.mrb[0].mxu0
        %v2746 = vadd.f32 %v2656, %v2745
        %v2747 = vpop.f32.mrb[0].mxu0
        %v2748 = vadd.f32 %v2652, %v2747
        %v2749 = vpop.f32.mrb[0].mxu0
        %v2750 = vadd.f32 %v2656, %v2749
        %2751 = vdwg.mxu0
        %2752 = vmatprep.subr.bf16.mxu0 %v2696
        %2753 = vmatpush1.bf16.msra.mxu0 %v2695
        %2754 = vmatprep.subr.bf16.mxu0 %v2700
        %2755 = vmatpush1.bf16.msra.mxu0 %v2699
        %2756 = vmatprep.subr.bf16.mxu0 0
        %2757 = vmatpush1.bf16.msra.mxu0 0
        %2758 = vmatprep.subr.bf16.mxu0 0
        %2759 = vmatpush1.bf16.msra.mxu0 0
        %2760 = vmatprep.subr.bf16.mxu0 0
        %2761 = vmatpush1.bf16.msra.mxu0 0
        %2762 = vmatprep.subr.bf16.mxu0 0
        %2763 = vmatpush1.bf16.msra.mxu0 0
        %2764 = vmatprep.subr.bf16.mxu0 0
        %2765 = vmatpush1.bf16.msra.mxu0 0
        %2766 = vmatprep.subr.bf16.mxu0 0
        %2767 = vmatpush1.bf16.msra.mxu0 0
        %2768 = vmatprep.subr.bf16.mxu0 0
        %2769 = vmatpush1.bf16.msra.mxu0 0
        %2770 = vmatprep.subr.bf16.mxu0 0
        %2771 = vmatpush1.bf16.msra.mxu0 0
        %2772 = vmatprep.subr.bf16.mxu0 0
        %2773 = vmatpush1.bf16.msra.mxu0 0
        %2774 = vmatprep.subr.bf16.mxu0 0
        %2775 = vmatpush1.bf16.msra.mxu0 0
        %2776 = vmatprep.subr.bf16.mxu0 0
        %2777 = vmatpush1.bf16.msra.mxu0 0
        %2778 = vmatprep.subr.bf16.mxu0 0
        %2779 = vmatpush1.bf16.msra.mxu0 0
        %2780 = vmatprep.subr.bf16.mxu0 0
        %2781 = vmatpush1.bf16.msra.mxu0 0
        %2782 = vmatprep.subr.bf16.mxu0 0
        %2783 = vmatpush1.bf16.msra.mxu0 0
        %2784 = vmatprep.mubr.bf16.mxu0 0
        %2785 = vmatmul.mubr.bf16.gmra.mrb[0].mxu0 %v1695
        %v2786 = vpop.f32.mrb[0].mxu0
        %v2787 = vadd.f32 %v2660, %v2786
        %v2788 = vpop.f32.mrb[0].mxu0
        %v2789 = vadd.f32 %v2664, %v2788
        %v2790 = vpop.f32.mrb[0].mxu0
        %v2791 = vadd.f32 %v2660, %v2790
        %v2792 = vpop.f32.mrb[0].mxu0
        %v2793 = vadd.f32 %v2664, %v2792
        %2794 = vdwg.mxu0
        %v2795 = vmax.f32 %v2744, 0.0
        %v2796 = vmax.f32 %v2746, 0.0
        %v2797 = vmax.f32 %v2787, 0.0
        %v2798 = vmax.f32 %v2789, 0.0
        %v2799 = vmax.f32 %v2748, 0.0
        %v2800 = vmax.f32 %v2750, 0.0
        %v2801 = vmax.f32 %v2791, 0.0
        %v2802 = vmax.f32 %v2793, 0.0
        %v2803 = vpack.c.bf16 %v2799, %v2795
        %v2804 = vpack.c.bf16 %v2800, %v2796
        %v2805 = vpack.c.bf16 %v2801, %v2797
        %v2806 = vpack.c.bf16 %v2802, %v2798
        %v2807 = vld [vmem:[%s426 + $0x200] sm:$0xf]
        %v2808 = vld [vmem:[%s426 + $0x204] sm:$0xf]
        %v2809 = vld [vmem:[%s426 + $0x208] sm:$0xf]
        %v2810 = vld [vmem:[%s426 + $0x20c] sm:$0xf]
        %v2811 = vld [vmem:[%s426 + $0x210] sm:$0xf]
        %v2812 = vld [vmem:[%s426 + $0x214] sm:$0xf]
        %v2813 = vld [vmem:[%s426 + $0x218] sm:$0xf]
        %v2814 = vld [vmem:[%s426 + $0x21c] sm:$0xf]
        %v2815 = vld [vmem:[%s426 + $0x220] sm:$0xf]
        %v2816 = vld [vmem:[%s426 + $0x224] sm:$0xf]
        %v2817 = vld [vmem:[%s426 + $0x228] sm:$0xf]
        %v2818 = vld [vmem:[%s426 + $0x22c] sm:$0xf]
        %v2819 = vld [vmem:[%s426 + $0x230] sm:$0xf]
        %v2820 = vld [vmem:[%s426 + $0x234] sm:$0xf]
        %v2821 = vld [vmem:[%s426 + $0x238] sm:$0xf]
        %v2822 = vld [vmem:[%s426 + $0x23c] sm:$0xf]
        %v2823 = vld [vmem:[%s426 + $0x240] sm:$0xf]
        %v2824 = vld [vmem:[%s426 + $0x244] sm:$0xf]
        %v2825 = vld [vmem:[%s426 + $0x248] sm:$0xf]
        %v2826 = vld [vmem:[%s426 + $0x24c] sm:$0xf]
        %v2827 = vld [vmem:[%s426 + $0x250] sm:$0xf]
        %v2828 = vld [vmem:[%s426 + $0x254] sm:$0xf]
        %v2829 = vld [vmem:[%s426 + $0x258] sm:$0xf]
        %v2830 = vld [vmem:[%s426 + $0x25c] sm:$0xf]
        %v2831 = vld [vmem:[%s426 + $0x260] sm:$0xf]
        %v2832 = vld [vmem:[%s426 + $0x264] sm:$0xf]
        %v2833 = vld [vmem:[%s426 + $0x268] sm:$0xf]
        %v2834 = vld [vmem:[%s426 + $0x26c] sm:$0xf]
        %v2835 = vld [vmem:[%s426 + $0x270] sm:$0xf]
        %v2836 = vld [vmem:[%s426 + $0x274] sm:$0xf]
        %v2837 = vld [vmem:[%s426 + $0x278] sm:$0xf]
        %v2838 = vld [vmem:[%s426 + $0x27c] sm:$0xf]
        %v2839 = vld [vmem:[%s426 + $0x280] sm:$0xf]
        %v2840 = vld [vmem:[%s426 + $0x284] sm:$0xf]
        %v2841 = vld [vmem:[%s426 + $0x288] sm:$0xf]
        %v2842 = vld [vmem:[%s426 + $0x28c] sm:$0xf]
        %v2843 = vld [vmem:[%s426 + $0x290] sm:$0xf]
        %v2844 = vld [vmem:[%s426 + $0x294] sm:$0xf]
        %v2845 = vld [vmem:[%s426 + $0x298] sm:$0xf]
        %v2846 = vld [vmem:[%s426 + $0x29c] sm:$0xf]
        %v2847 = vld [vmem:[%s426 + $0x2a0] sm:$0xf]
        %v2848 = vld [vmem:[%s426 + $0x2a4] sm:$0xf]
        %v2849 = vld [vmem:[%s426 + $0x2a8] sm:$0xf]
        %v2850 = vld [vmem:[%s426 + $0x2ac] sm:$0xf]
        %v2851 = vld [vmem:[%s426 + $0x2b0] sm:$0xf]
        %v2852 = vld [vmem:[%s426 + $0x2b4] sm:$0xf]
        %v2853 = vld [vmem:[%s426 + $0x2b8] sm:$0xf]
        %v2854 = vld [vmem:[%s426 + $0x2bc] sm:$0xf]
        %v2855 = vld [vmem:[%s426 + $0x2c0] sm:$0xf]
        %v2856 = vld [vmem:[%s426 + $0x2c4] sm:$0xf]
        %v2857 = vld [vmem:[%s426 + $0x2c8] sm:$0xf]
        %v2858 = vld [vmem:[%s426 + $0x2cc] sm:$0xf]
        %v2859 = vld [vmem:[%s426 + $0x2d0] sm:$0xf]
        %v2860 = vld [vmem:[%s426 + $0x2d4] sm:$0xf]
        %v2861 = vld [vmem:[%s426 + $0x2d8] sm:$0xf]
        %v2862 = vld [vmem:[%s426 + $0x2dc] sm:$0xf]
        %v2863 = vld [vmem:[%s426 + $0x2e0] sm:$0xf]
        %v2864 = vld [vmem:[%s426 + $0x2e4] sm:$0xf]
        %v2865 = vld [vmem:[%s426 + $0x2e8] sm:$0xf]
        %v2866 = vld [vmem:[%s426 + $0x2ec] sm:$0xf]
        %v2867 = vld [vmem:[%s426 + $0x2f0] sm:$0xf]
        %v2868 = vld [vmem:[%s426 + $0x2f4] sm:$0xf]
        %v2869 = vld [vmem:[%s426 + $0x2f8] sm:$0xf]
        %v2870 = vld [vmem:[%s426 + $0x2fc] sm:$0xf]
        %v2935 = vunpack.c.l.b16 %v2807
        %v2936 = vunpack.c.l.b16 %v2808
        %v2937 = vunpack.c.l.b16 %v2809
        %v2938 = vunpack.c.l.b16 %v2810
        %v2939 = vunpack.c.l.b16 %v2811
        %v2940 = vunpack.c.l.b16 %v2812
        %v2941 = vunpack.c.l.b16 %v2813
        %v2942 = vunpack.c.l.b16 %v2814
        %v2943 = vunpack.c.l.b16 %v2815
        %v2944 = vunpack.c.l.b16 %v2816
        %v2945 = vunpack.c.l.b16 %v2817
        %v2946 = vunpack.c.l.b16 %v2818
        %v2947 = vunpack.c.l.b16 %v2819
        %v2948 = vunpack.c.l.b16 %v2820
        %v2949 = vunpack.c.l.b16 %v2821
        %v2950 = vunpack.c.l.b16 %v2822
        %v2951 = vunpack.c.l.b16 %v2823
        %v2952 = vunpack.c.l.b16 %v2824
        %v2953 = vunpack.c.l.b16 %v2825
        %v2954 = vunpack.c.l.b16 %v2826
        %v2955 = vunpack.c.l.b16 %v2827
        %v2956 = vunpack.c.l.b16 %v2828
        %v2957 = vunpack.c.l.b16 %v2829
        %v2958 = vunpack.c.l.b16 %v2830
        %v2959 = vunpack.c.l.b16 %v2831
        %v2960 = vunpack.c.l.b16 %v2832
        %v2961 = vunpack.c.l.b16 %v2833
        %v2962 = vunpack.c.l.b16 %v2834
        %v2963 = vunpack.c.l.b16 %v2835
        %v2964 = vunpack.c.l.b16 %v2836
        %v2965 = vunpack.c.l.b16 %v2837
        %v2966 = vunpack.c.l.b16 %v2838
        %v2967 = vunpack.c.l.b16 %v2839
        %v2968 = vunpack.c.l.b16 %v2840
        %v2969 = vunpack.c.l.b16 %v2841
        %v2970 = vunpack.c.l.b16 %v2842
        %v2971 = vunpack.c.l.b16 %v2843
        %v2972 = vunpack.c.l.b16 %v2844
        %v2973 = vunpack.c.l.b16 %v2845
        %v2974 = vunpack.c.l.b16 %v2846
        %v2975 = vunpack.c.l.b16 %v2847
        %v2976 = vunpack.c.l.b16 %v2848
        %v2977 = vunpack.c.l.b16 %v2849
        %v2978 = vunpack.c.l.b16 %v2850
        %v2979 = vunpack.c.l.b16 %v2851
        %v2980 = vunpack.c.l.b16 %v2852
        %v2981 = vunpack.c.l.b16 %v2853
        %v2982 = vunpack.c.l.b16 %v2854
        %v2983 = vunpack.c.l.b16 %v2855
        %v2984 = vunpack.c.l.b16 %v2856
        %v2985 = vunpack.c.l.b16 %v2857
        %v2986 = vunpack.c.l.b16 %v2858
        %v2987 = vunpack.c.l.b16 %v2859
        %v2988 = vunpack.c.l.b16 %v2860
        %v2989 = vunpack.c.l.b16 %v2861
        %v2990 = vunpack.c.l.b16 %v2862
        %v2991 = vunpack.c.l.b16 %v2863
        %v2992 = vunpack.c.l.b16 %v2864
        %v2993 = vunpack.c.l.b16 %v2865
        %v2994 = vunpack.c.l.b16 %v2866
        %v2995 = vunpack.c.l.b16 %v2867
        %v2996 = vunpack.c.l.b16 %v2868
        %v2997 = vunpack.c.l.b16 %v2869
        %v2998 = vunpack.c.l.b16 %v2870
        %v2999 = vpack.c.b16 %v2936, %v2935
        %v3000 = vpack.c.b16 %v2938, %v2937
        %v3001 = vpack.c.b16 %v2940, %v2939
        %v3002 = vpack.c.b16 %v2942, %v2941
        %v3003 = vpack.c.b16 %v2944, %v2943
        %v3004 = vpack.c.b16 %v2946, %v2945
        %v3005 = vpack.c.b16 %v2948, %v2947
        %v3006 = vpack.c.b16 %v2950, %v2949
        %v3007 = vpack.c.b16 %v2952, %v2951
        %v3008 = vpack.c.b16 %v2954, %v2953
        %v3009 = vpack.c.b16 %v2956, %v2955
        %v3010 = vpack.c.b16 %v2958, %v2957
        %v3011 = vpack.c.b16 %v2960, %v2959
        %v3012 = vpack.c.b16 %v2962, %v2961
        %v3013 = vpack.c.b16 %v2964, %v2963
        %v3014 = vpack.c.b16 %v2966, %v2965
        %v3015 = vpack.c.b16 %v2968, %v2967
        %v3016 = vpack.c.b16 %v2970, %v2969
        %v3017 = vpack.c.b16 %v2972, %v2971
        %v3018 = vpack.c.b16 %v2974, %v2973
        %v3019 = vpack.c.b16 %v2976, %v2975
        %v3020 = vpack.c.b16 %v2978, %v2977
        %v3021 = vpack.c.b16 %v2980, %v2979
        %v3022 = vpack.c.b16 %v2982, %v2981
        %v3023 = vpack.c.b16 %v2984, %v2983
        %v3024 = vpack.c.b16 %v2986, %v2985
        %v3025 = vpack.c.b16 %v2988, %v2987
        %v3026 = vpack.c.b16 %v2990, %v2989
        %v3027 = vpack.c.b16 %v2992, %v2991
        %v3028 = vpack.c.b16 %v2994, %v2993
        %v3029 = vpack.c.b16 %v2996, %v2995
        %v3030 = vpack.c.b16 %v2998, %v2997
        %3063 = vmatprep.subr.bf16.mxu0 0
        %3064 = vmatpush1.bf16.msra.mxu0 %v2999
        %3065 = vmatprep.subr.bf16.mxu0 0
        %3066 = vmatpush1.bf16.msra.mxu0 %v3000
        %3067 = vmatprep.subr.bf16.mxu0 0
        %3068 = vmatpush1.bf16.msra.mxu0 %v3001
        %3069 = vmatprep.subr.bf16.mxu0 0
        %3070 = vmatpush1.bf16.msra.mxu0 %v3002
        %3071 = vmatprep.subr.bf16.mxu0 0
        %3072 = vmatpush1.bf16.msra.mxu0 %v3003
        %3073 = vmatprep.subr.bf16.mxu0 0
        %3074 = vmatpush1.bf16.msra.mxu0 %v3004
        %3075 = vmatprep.subr.bf16.mxu0 0
        %3076 = vmatpush1.bf16.msra.mxu0 %v3005
        %3077 = vmatprep.subr.bf16.mxu0 0
        %3078 = vmatpush1.bf16.msra.mxu0 %v3006
        %3079 = vmatprep.subr.bf16.mxu0 0
        %3080 = vmatpush1.bf16.msra.mxu0 %v3007
        %3081 = vmatprep.subr.bf16.mxu0 0
        %3082 = vmatpush1.bf16.msra.mxu0 %v3008
        %3083 = vmatprep.subr.bf16.mxu0 0
        %3084 = vmatpush1.bf16.msra.mxu0 %v3009
        %3085 = vmatprep.subr.bf16.mxu0 0
        %3086 = vmatpush1.bf16.msra.mxu0 %v3010
        %3087 = vmatprep.subr.bf16.mxu0 0
        %3088 = vmatpush1.bf16.msra.mxu0 %v3011
        %3089 = vmatprep.subr.bf16.mxu0 0
        %3090 = vmatpush1.bf16.msra.mxu0 %v3012
        %3091 = vmatprep.subr.bf16.mxu0 0
        %3092 = vmatpush1.bf16.msra.mxu0 %v3013
        %3093 = vmatprep.subr.bf16.mxu0 0
        %3094 = vmatpush1.bf16.msra.mxu0 %v3014
        %3095 = vmatprep.mubr.bf16.mxu0 %v2804
        %3096 = vmatmul.mubr.bf16.gmra.mrb[0].mxu0 %v2803
        %v3097 = vpop.f32.mrb[0].mxu0
        %v3098 = vadd.f32 0.0, %v3097
        %v3099 = vpop.f32.mrb[0].mxu0
        %v3100 = vpop.f32.mrb[0].mxu0
        %v3101 = vadd.f32 0.0, %v3100
        %v3102 = vpop.f32.mrb[0].mxu0
        %3103 = vdwg.mxu0
        %3104 = vmatprep.subr.bf16.mxu0 0
        %3105 = vmatpush1.bf16.msra.mxu0 %v3015
        %3106 = vmatprep.subr.bf16.mxu0 0
        %3107 = vmatpush1.bf16.msra.mxu0 %v3016
        %3108 = vmatprep.subr.bf16.mxu0 0
        %3109 = vmatpush1.bf16.msra.mxu0 %v3017
        %3110 = vmatprep.subr.bf16.mxu0 0
        %3111 = vmatpush1.bf16.msra.mxu0 %v3018
        %3112 = vmatprep.subr.bf16.mxu0 0
        %3113 = vmatpush1.bf16.msra.mxu0 %v3019
        %3114 = vmatprep.subr.bf16.mxu0 0
        %3115 = vmatpush1.bf16.msra.mxu0 %v3020
        %3116 = vmatprep.subr.bf16.mxu0 0
        %3117 = vmatpush1.bf16.msra.mxu0 %v3021
        %3118 = vmatprep.subr.bf16.mxu0 0
        %3119 = vmatpush1.bf16.msra.mxu0 %v3022
        %3120 = vmatprep.subr.bf16.mxu0 0
        %3121 = vmatpush1.bf16.msra.mxu0 %v3023
        %3122 = vmatprep.subr.bf16.mxu0 0
        %3123 = vmatpush1.bf16.msra.mxu0 %v3024
        %3124 = vmatprep.subr.bf16.mxu0 0
        %3125 = vmatpush1.bf16.msra.mxu0 %v3025
        %3126 = vmatprep.subr.bf16.mxu0 0
        %3127 = vmatpush1.bf16.msra.mxu0 %v3026
        %3128 = vmatprep.subr.bf16.mxu0 0
        %3129 = vmatpush1.bf16.msra.mxu0 %v3027
        %3130 = vmatprep.subr.bf16.mxu0 0
        %3131 = vmatpush1.bf16.msra.mxu0 %v3028
        %3132 = vmatprep.subr.bf16.mxu0 0
        %3133 = vmatpush1.bf16.msra.mxu0 %v3029
        %3134 = vmatprep.subr.bf16.mxu0 0
        %3135 = vmatpush1.bf16.msra.mxu0 %v3030
        %3136 = vmatprep.mubr.bf16.mxu0 %v2806
        %3137 = vmatmul.mubr.bf16.gmra.mrb[0].mxu0 %v2805
        %v3138 = vpop.f32.mrb[0].mxu0
        %v3139 = vadd.f32 %v3098, %v3138
        %v3140 = vpop.f32.mrb[0].mxu0
        %v3141 = vpop.f32.mrb[0].mxu0
        %v3142 = vadd.f32 %v3101, %v3141
        %v3143 = vpop.f32.mrb[0].mxu0
        %3144 = vdwg.mxu0
        %v3145 = vadd.f32 %v2633, %v3139
        %v3146 = vadd.f32 %v2636, %v3142
        %v3147 = vld [vmem:[%s421 + $0x30] sm:$0xff]
        %v3148 = vld [vmem:[%s421 + $0x38] sm:$0xff]
        %v3149 = vld [vmem:[%s421 + $0x70] sm:$0xff]
        %v3150 = vld [vmem:[%s421 + $0x78] sm:$0xff]
        %v3151 = vld [vmem:[%s421 + $0xb0] sm:$0xff]
        %v3152 = vld [vmem:[%s421 + $0xb8] sm:$0xff]
        %v3153 = vld [vmem:[%s421 + $0xf0] sm:$0xff]
        %v3154 = vld [vmem:[%s421 + $0xf8] sm:$0xff]
        %v3155 = vld [vmem:[%s416 + $0xc] sm:$0xf]
        %v3157 = vlaneseq
        %v3158 = vshrl.u32 %v3157, 7
        %v3159 = vsub.s32 0, %v3158
        %v3160 = vrot.slane %v3155, %v3159
        %v3161 = vlaneseq
        %v3162 = vshrl.u32 %v3161, 7
        %v3163 = vsub.s32 1, %v3162
        %v3164 = vrot.slane %v3155, %v3163
        %v3165 = vlaneseq
        %v3166 = vshrl.u32 %v3165, 7
        %v3167 = vsub.s32 2, %v3166
        %v3168 = vrot.slane %v3155, %v3167
        %v3169 = vlaneseq
        %v3170 = vshrl.u32 %v3169, 7
        %v3171 = vsub.s32 3, %v3170
        %v3172 = vrot.slane %v3155, %v3171
        %v3185 = vunpack.c.l.b16 %v3147
        %v3186 = vunpack.c.h.b16 %v3147
        %v3187 = vunpack.c.l.b16 %v3148
        %v3188 = vunpack.c.h.b16 %v3148
        %v3189 = vunpack.c.l.b16 %v3149
        %v3190 = vunpack.c.h.b16 %v3149
        %v3191 = vunpack.c.l.b16 %v3150
        %v3192 = vunpack.c.h.b16 %v3150
        %v3193 = vunpack.c.l.b16 %v3151
        %v3194 = vunpack.c.h.b16 %v3151
        %v3195 = vunpack.c.l.b16 %v3152
        %v3196 = vunpack.c.h.b16 %v3152
        %v3197 = vunpack.c.l.b16 %v3153
        %v3198 = vunpack.c.h.b16 %v3153
        %v3199 = vunpack.c.l.b16 %v3154
        %v3200 = vunpack.c.h.b16 %v3154
        %v3201 = vpack.c.b16 %v3189, %v3185
        %v3202 = vpack.c.b16 %v3190, %v3186
        %v3203 = vpack.c.b16 %v3191, %v3187
        %v3204 = vpack.c.b16 %v3192, %v3188
        %v3205 = vpack.c.b16 %v3197, %v3193
        %v3206 = vpack.c.b16 %v3198, %v3194
        %v3207 = vpack.c.b16 %v3199, %v3195
        %v3208 = vpack.c.b16 %v3200, %v3196
        %3217 = vmatprep.subr.bf16.mxu0 %v3202
        %3218 = vmatpush1.bf16.msra.mxu0 %v3201
        %3219 = vmatprep.subr.bf16.mxu0 %v3206
        %3220 = vmatpush1.bf16.msra.mxu0 %v3205
        %3221 = vmatprep.subr.bf16.mxu0 0
        %3222 = vmatpush1.bf16.msra.mxu0 0
        %3223 = vmatprep.subr.bf16.mxu0 0
        %3224 = vmatpush1.bf16.msra.mxu0 0
        %3225 = vmatprep.subr.bf16.mxu0 0
        %3226 = vmatpush1.bf16.msra.mxu0 0
        %3227 = vmatprep.subr.bf16.mxu0 0
        %3228 = vmatpush1.bf16.msra.mxu0 0
        %3229 = vmatprep.subr.bf16.mxu0 0
        %3230 = vmatpush1.bf16.msra.mxu0 0
        %3231 = vmatprep.subr.bf16.mxu0 0
        %3232 = vmatpush1.bf16.msra.mxu0 0
        %3233 = vmatprep.subr.bf16.mxu0 0
        %3234 = vmatpush1.bf16.msra.mxu0 0
        %3235 = vmatprep.subr.bf16.mxu0 0
        %3236 = vmatpush1.bf16.msra.mxu0 0
        %3237 = vmatprep.subr.bf16.mxu0 0
        %3238 = vmatpush1.bf16.msra.mxu0 0
        %3239 = vmatprep.subr.bf16.mxu0 0
        %3240 = vmatpush1.bf16.msra.mxu0 0
        %3241 = vmatprep.subr.bf16.mxu0 0
        %3242 = vmatpush1.bf16.msra.mxu0 0
        %3243 = vmatprep.subr.bf16.mxu0 0
        %3244 = vmatpush1.bf16.msra.mxu0 0
        %3245 = vmatprep.subr.bf16.mxu0 0
        %3246 = vmatpush1.bf16.msra.mxu0 0
        %3247 = vmatprep.subr.bf16.mxu0 0
        %3248 = vmatpush1.bf16.msra.mxu0 0
        %3249 = vmatprep.mubr.bf16.mxu0 0
        %3250 = vmatmul.mubr.bf16.gmra.mrb[0].mxu0 %v1695
        %v3251 = vpop.f32.mrb[0].mxu0
        %v3252 = vadd.f32 %v3160, %v3251
        %v3253 = vpop.f32.mrb[0].mxu0
        %v3254 = vadd.f32 %v3164, %v3253
        %v3255 = vpop.f32.mrb[0].mxu0
        %v3256 = vadd.f32 %v3160, %v3255
        %v3257 = vpop.f32.mrb[0].mxu0
        %v3258 = vadd.f32 %v3164, %v3257
        %3259 = vdwg.mxu0
        %3260 = vmatprep.subr.bf16.mxu0 %v3204
        %3261 = vmatpush1.bf16.msra.mxu0 %v3203
        %3262 = vmatprep.subr.bf16.mxu0 %v3208
        %3263 = vmatpush1.bf16.msra.mxu0 %v3207
        %3264 = vmatprep.subr.bf16.mxu0 0
        %3265 = vmatpush1.bf16.msra.mxu0 0
        %3266 = vmatprep.subr.bf16.mxu0 0
        %3267 = vmatpush1.bf16.msra.mxu0 0
        %3268 = vmatprep.subr.bf16.mxu0 0
        %3269 = vmatpush1.bf16.msra.mxu0 0
        %3270 = vmatprep.subr.bf16.mxu0 0
        %3271 = vmatpush1.bf16.msra.mxu0 0
        %3272 = vmatprep.subr.bf16.mxu0 0
        %3273 = vmatpush1.bf16.msra.mxu0 0
        %3274 = vmatprep.subr.bf16.mxu0 0
        %3275 = vmatpush1.bf16.msra.mxu0 0
        %3276 = vmatprep.subr.bf16.mxu0 0
        %3277 = vmatpush1.bf16.msra.mxu0 0
        %3278 = vmatprep.subr.bf16.mxu0 0
        %3279 = vmatpush1.bf16.msra.mxu0 0
        %3280 = vmatprep.subr.bf16.mxu0 0
        %3281 = vmatpush1.bf16.msra.mxu0 0
        %3282 = vmatprep.subr.bf16.mxu0 0
        %3283 = vmatpush1.bf16.msra.mxu0 0
        %3284 = vmatprep.subr.bf16.mxu0 0
        %3285 = vmatpush1.bf16.msra.mxu0 0
        %3286 = vmatprep.subr.bf16.mxu0 0
        %3287 = vmatpush1.bf16.msra.mxu0 0
        %3288 = vmatprep.subr.bf16.mxu0 0
        %3289 = vmatpush1.bf16.msra.mxu0 0
        %3290 = vmatprep.subr.bf16.mxu0 0
        %3291 = vmatpush1.bf16.msra.mxu0 0
        %3292 = vmatprep.mubr.bf16.mxu0 0
        %3293 = vmatmul.mubr.bf16.gmra.mrb[0].mxu0 %v1695
        %v3294 = vpop.f32.mrb[0].mxu0
        %v3295 = vadd.f32 %v3168, %v3294
        %v3296 = vpop.f32.mrb[0].mxu0
        %v3297 = vadd.f32 %v3172, %v3296
        %v3298 = vpop.f32.mrb[0].mxu0
        %v3299 = vadd.f32 %v3168, %v3298
        %v3300 = vpop.f32.mrb[0].mxu0
        %v3301 = vadd.f32 %v3172, %v3300
        %3302 = vdwg.mxu0
        %v3303 = vmax.f32 %v3252, 0.0
        %v3304 = vmax.f32 %v3254, 0.0
        %v3305 = vmax.f32 %v3295, 0.0
        %v3306 = vmax.f32 %v3297, 0.0
        %v3307 = vmax.f32 %v3256, 0.0
        %v3308 = vmax.f32 %v3258, 0.0
        %v3309 = vmax.f32 %v3299, 0.0
        %v3310 = vmax.f32 %v3301, 0.0
        %v3311 = vpack.c.bf16 %v3307, %v3303
        %v3312 = vpack.c.bf16 %v3308, %v3304
        %v3313 = vpack.c.bf16 %v3309, %v3305
        %v3314 = vpack.c.bf16 %v3310, %v3306
        %v3315 = vld [vmem:[%s426 + $0x300] sm:$0xf]
        %v3316 = vld [vmem:[%s426 + $0x304] sm:$0xf]
        %v3317 = vld [vmem:[%s426 + $0x308] sm:$0xf]
        %v3318 = vld [vmem:[%s426 + $0x30c] sm:$0xf]
        %v3319 = vld [vmem:[%s426 + $0x310] sm:$0xf]
        %v3320 = vld [vmem:[%s426 + $0x314] sm:$0xf]
        %v3321 = vld [vmem:[%s426 + $0x318] sm:$0xf]
        %v3322 = vld [vmem:[%s426 + $0x31c] sm:$0xf]
        %v3323 = vld [vmem:[%s426 + $0x320] sm:$0xf]
        %v3324 = vld [vmem:[%s426 + $0x324] sm:$0xf]
        %v3325 = vld [vmem:[%s426 + $0x328] sm:$0xf]
        %v3326 = vld [vmem:[%s426 + $0x32c] sm:$0xf]
        %v3327 = vld [vmem:[%s426 + $0x330] sm:$0xf]
        %v3328 = vld [vmem:[%s426 + $0x334] sm:$0xf]
        %v3329 = vld [vmem:[%s426 + $0x338] sm:$0xf]
        %v3330 = vld [vmem:[%s426 + $0x33c] sm:$0xf]
        %v3331 = vld [vmem:[%s426 + $0x340] sm:$0xf]
        %v3332 = vld [vmem:[%s426 + $0x344] sm:$0xf]
        %v3333 = vld [vmem:[%s426 + $0x348] sm:$0xf]
        %v3334 = vld [vmem:[%s426 + $0x34c] sm:$0xf]
        %v3335 = vld [vmem:[%s426 + $0x350] sm:$0xf]
        %v3336 = vld [vmem:[%s426 + $0x354] sm:$0xf]
        %v3337 = vld [vmem:[%s426 + $0x358] sm:$0xf]
        %v3338 = vld [vmem:[%s426 + $0x35c] sm:$0xf]
        %v3339 = vld [vmem:[%s426 + $0x360] sm:$0xf]
        %v3340 = vld [vmem:[%s426 + $0x364] sm:$0xf]
        %v3341 = vld [vmem:[%s426 + $0x368] sm:$0xf]
        %v3342 = vld [vmem:[%s426 + $0x36c] sm:$0xf]
        %v3343 = vld [vmem:[%s426 + $0x370] sm:$0xf]
        %v3344 = vld [vmem:[%s426 + $0x374] sm:$0xf]
        %v3345 = vld [vmem:[%s426 + $0x378] sm:$0xf]
        %v3346 = vld [vmem:[%s426 + $0x37c] sm:$0xf]
        %v3347 = vld [vmem:[%s426 + $0x380] sm:$0xf]
        %v3348 = vld [vmem:[%s426 + $0x384] sm:$0xf]
        %v3349 = vld [vmem:[%s426 + $0x388] sm:$0xf]
        %v3350 = vld [vmem:[%s426 + $0x38c] sm:$0xf]
        %v3351 = vld [vmem:[%s426 + $0x390] sm:$0xf]
        %v3352 = vld [vmem:[%s426 + $0x394] sm:$0xf]
        %v3353 = vld [vmem:[%s426 + $0x398] sm:$0xf]
        %v3354 = vld [vmem:[%s426 + $0x39c] sm:$0xf]
        %v3355 = vld [vmem:[%s426 + $0x3a0] sm:$0xf]
        %v3356 = vld [vmem:[%s426 + $0x3a4] sm:$0xf]
        %v3357 = vld [vmem:[%s426 + $0x3a8] sm:$0xf]
        %v3358 = vld [vmem:[%s426 + $0x3ac] sm:$0xf]
        %v3359 = vld [vmem:[%s426 + $0x3b0] sm:$0xf]
        %v3360 = vld [vmem:[%s426 + $0x3b4] sm:$0xf]
        %v3361 = vld [vmem:[%s426 + $0x3b8] sm:$0xf]
        %v3362 = vld [vmem:[%s426 + $0x3bc] sm:$0xf]
        %v3363 = vld [vmem:[%s426 + $0x3c0] sm:$0xf]
        %v3364 = vld [vmem:[%s426 + $0x3c4] sm:$0xf]
        %v3365 = vld [vmem:[%s426 + $0x3c8] sm:$0xf]
        %v3366 = vld [vmem:[%s426 + $0x3cc] sm:$0xf]
        %v3367 = vld [vmem:[%s426 + $0x3d0] sm:$0xf]
        %v3368 = vld [vmem:[%s426 + $0x3d4] sm:$0xf]
        %v3369 = vld [vmem:[%s426 + $0x3d8] sm:$0xf]
        %v3370 = vld [vmem:[%s426 + $0x3dc] sm:$0xf]
        %v3371 = vld [vmem:[%s426 + $0x3e0] sm:$0xf]
        %v3372 = vld [vmem:[%s426 + $0x3e4] sm:$0xf]
        %v3373 = vld [vmem:[%s426 + $0x3e8] sm:$0xf]
        %v3374 = vld [vmem:[%s426 + $0x3ec] sm:$0xf]
        %v3375 = vld [vmem:[%s426 + $0x3f0] sm:$0xf]
        %v3376 = vld [vmem:[%s426 + $0x3f4] sm:$0xf]
        %v3377 = vld [vmem:[%s426 + $0x3f8] sm:$0xf]
        %v3378 = vld [vmem:[%s426 + $0x3fc] sm:$0xf]
        %v3443 = vunpack.c.l.b16 %v3315
        %v3444 = vunpack.c.l.b16 %v3316
        %v3445 = vunpack.c.l.b16 %v3317
        %v3446 = vunpack.c.l.b16 %v3318
        %v3447 = vunpack.c.l.b16 %v3319
        %v3448 = vunpack.c.l.b16 %v3320
        %v3449 = vunpack.c.l.b16 %v3321
        %v3450 = vunpack.c.l.b16 %v3322
        %v3451 = vunpack.c.l.b16 %v3323
        %v3452 = vunpack.c.l.b16 %v3324
        %v3453 = vunpack.c.l.b16 %v3325
        %v3454 = vunpack.c.l.b16 %v3326
        %v3455 = vunpack.c.l.b16 %v3327
        %v3456 = vunpack.c.l.b16 %v3328
        %v3457 = vunpack.c.l.b16 %v3329
        %v3458 = vunpack.c.l.b16 %v3330
        %v3459 = vunpack.c.l.b16 %v3331
        %v3460 = vunpack.c.l.b16 %v3332
        %v3461 = vunpack.c.l.b16 %v3333
        %v3462 = vunpack.c.l.b16 %v3334
        %v3463 = vunpack.c.l.b16 %v3335
        %v3464 = vunpack.c.l.b16 %v3336
        %v3465 = vunpack.c.l.b16 %v3337
        %v3466 = vunpack.c.l.b16 %v3338
        %v3467 = vunpack.c.l.b16 %v3339
        %v3468 = vunpack.c.l.b16 %v3340
        %v3469 = vunpack.c.l.b16 %v3341
        %v3470 = vunpack.c.l.b16 %v3342
        %v3471 = vunpack.c.l.b16 %v3343
        %v3472 = vunpack.c.l.b16 %v3344
        %v3473 = vunpack.c.l.b16 %v3345
        %v3474 = vunpack.c.l.b16 %v3346
        %v3475 = vunpack.c.l.b16 %v3347
        %v3476 = vunpack.c.l.b16 %v3348
        %v3477 = vunpack.c.l.b16 %v3349
        %v3478 = vunpack.c.l.b16 %v3350
        %v3479 = vunpack.c.l.b16 %v3351
        %v3480 = vunpack.c.l.b16 %v3352
        %v3481 = vunpack.c.l.b16 %v3353
        %v3482 = vunpack.c.l.b16 %v3354
        %v3483 = vunpack.c.l.b16 %v3355
        %v3484 = vunpack.c.l.b16 %v3356
        %v3485 = vunpack.c.l.b16 %v3357
        %v3486 = vunpack.c.l.b16 %v3358
        %v3487 = vunpack.c.l.b16 %v3359
        %v3488 = vunpack.c.l.b16 %v3360
        %v3489 = vunpack.c.l.b16 %v3361
        %v3490 = vunpack.c.l.b16 %v3362
        %v3491 = vunpack.c.l.b16 %v3363
        %v3492 = vunpack.c.l.b16 %v3364
        %v3493 = vunpack.c.l.b16 %v3365
        %v3494 = vunpack.c.l.b16 %v3366
        %v3495 = vunpack.c.l.b16 %v3367
        %v3496 = vunpack.c.l.b16 %v3368
        %v3497 = vunpack.c.l.b16 %v3369
        %v3498 = vunpack.c.l.b16 %v3370
        %v3499 = vunpack.c.l.b16 %v3371
        %v3500 = vunpack.c.l.b16 %v3372
        %v3501 = vunpack.c.l.b16 %v3373
        %v3502 = vunpack.c.l.b16 %v3374
        %v3503 = vunpack.c.l.b16 %v3375
        %v3504 = vunpack.c.l.b16 %v3376
        %v3505 = vunpack.c.l.b16 %v3377
        %v3506 = vunpack.c.l.b16 %v3378
        %v3507 = vpack.c.b16 %v3444, %v3443
        %v3508 = vpack.c.b16 %v3446, %v3445
        %v3509 = vpack.c.b16 %v3448, %v3447
        %v3510 = vpack.c.b16 %v3450, %v3449
        %v3511 = vpack.c.b16 %v3452, %v3451
        %v3512 = vpack.c.b16 %v3454, %v3453
        %v3513 = vpack.c.b16 %v3456, %v3455
        %v3514 = vpack.c.b16 %v3458, %v3457
        %v3515 = vpack.c.b16 %v3460, %v3459
        %v3516 = vpack.c.b16 %v3462, %v3461
        %v3517 = vpack.c.b16 %v3464, %v3463
        %v3518 = vpack.c.b16 %v3466, %v3465
        %v3519 = vpack.c.b16 %v3468, %v3467
        %v3520 = vpack.c.b16 %v3470, %v3469
        %v3521 = vpack.c.b16 %v3472, %v3471
        %v3522 = vpack.c.b16 %v3474, %v3473
        %v3523 = vpack.c.b16 %v3476, %v3475
        %v3524 = vpack.c.b16 %v3478, %v3477
        %v3525 = vpack.c.b16 %v3480, %v3479
        %v3526 = vpack.c.b16 %v3482, %v3481
        %v3527 = vpack.c.b16 %v3484, %v3483
        %v3528 = vpack.c.b16 %v3486, %v3485
        %v3529 = vpack.c.b16 %v3488, %v3487
        %v3530 = vpack.c.b16 %v3490, %v3489
        %v3531 = vpack.c.b16 %v3492, %v3491
        %v3532 = vpack.c.b16 %v3494, %v3493
        %v3533 = vpack.c.b16 %v3496, %v3495
        %v3534 = vpack.c.b16 %v3498, %v3497
        %v3535 = vpack.c.b16 %v3500, %v3499
        %v3536 = vpack.c.b16 %v3502, %v3501
        %v3537 = vpack.c.b16 %v3504, %v3503
        %v3538 = vpack.c.b16 %v3506, %v3505
        %3571 = vmatprep.subr.bf16.mxu0 0
        %3572 = vmatpush1.bf16.msra.mxu0 %v3507
        %3573 = vmatprep.subr.bf16.mxu0 0
        %3574 = vmatpush1.bf16.msra.mxu0 %v3508
        %3575 = vmatprep.subr.bf16.mxu0 0
        %3576 = vmatpush1.bf16.msra.mxu0 %v3509
        %3577 = vmatprep.subr.bf16.mxu0 0
        %3578 = vmatpush1.bf16.msra.mxu0 %v3510
        %3579 = vmatprep.subr.bf16.mxu0 0
        %3580 = vmatpush1.bf16.msra.mxu0 %v3511
        %3581 = vmatprep.subr.bf16.mxu0 0
        %3582 = vmatpush1.bf16.msra.mxu0 %v3512
        %3583 = vmatprep.subr.bf16.mxu0 0
        %3584 = vmatpush1.bf16.msra.mxu0 %v3513
        %3585 = vmatprep.subr.bf16.mxu0 0
        %3586 = vmatpush1.bf16.msra.mxu0 %v3514
        %3587 = vmatprep.subr.bf16.mxu0 0
        %3588 = vmatpush1.bf16.msra.mxu0 %v3515
        %3589 = vmatprep.subr.bf16.mxu0 0
        %3590 = vmatpush1.bf16.msra.mxu0 %v3516
        %3591 = vmatprep.subr.bf16.mxu0 0
        %3592 = vmatpush1.bf16.msra.mxu0 %v3517
        %3593 = vmatprep.subr.bf16.mxu0 0
        %3594 = vmatpush1.bf16.msra.mxu0 %v3518
        %3595 = vmatprep.subr.bf16.mxu0 0
        %3596 = vmatpush1.bf16.msra.mxu0 %v3519
        %3597 = vmatprep.subr.bf16.mxu0 0
        %3598 = vmatpush1.bf16.msra.mxu0 %v3520
        %3599 = vmatprep.subr.bf16.mxu0 0
        %3600 = vmatpush1.bf16.msra.mxu0 %v3521
        %3601 = vmatprep.subr.bf16.mxu0 0
        %3602 = vmatpush1.bf16.msra.mxu0 %v3522
        %3603 = vmatprep.mubr.bf16.mxu0 %v3312
        %3604 = vmatmul.mubr.bf16.gmra.mrb[0].mxu0 %v3311
        %v3605 = vpop.f32.mrb[0].mxu0
        %v3606 = vadd.f32 0.0, %v3605
        %v3607 = vpop.f32.mrb[0].mxu0
        %v3608 = vpop.f32.mrb[0].mxu0
        %v3609 = vadd.f32 0.0, %v3608
        %v3610 = vpop.f32.mrb[0].mxu0
        %3611 = vdwg.mxu0
        %3612 = vmatprep.subr.bf16.mxu0 0
        %3613 = vmatpush1.bf16.msra.mxu0 %v3523
        %3614 = vmatprep.subr.bf16.mxu0 0
        %3615 = vmatpush1.bf16.msra.mxu0 %v3524
        %3616 = vmatprep.subr.bf16.mxu0 0
        %3617 = vmatpush1.bf16.msra.mxu0 %v3525
        %3618 = vmatprep.subr.bf16.mxu0 0
        %3619 = vmatpush1.bf16.msra.mxu0 %v3526
        %3620 = vmatprep.subr.bf16.mxu0 0
        %3621 = vmatpush1.bf16.msra.mxu0 %v3527
        %3622 = vmatprep.subr.bf16.mxu0 0
        %3623 = vmatpush1.bf16.msra.mxu0 %v3528
        %3624 = vmatprep.subr.bf16.mxu0 0
        %3625 = vmatpush1.bf16.msra.mxu0 %v3529
        %3626 = vmatprep.subr.bf16.mxu0 0
        %3627 = vmatpush1.bf16.msra.mxu0 %v3530
        %3628 = vmatprep.subr.bf16.mxu0 0
        %3629 = vmatpush1.bf16.msra.mxu0 %v3531
        %3630 = vmatprep.subr.bf16.mxu0 0
        %3631 = vmatpush1.bf16.msra.mxu0 %v3532
        %3632 = vmatprep.subr.bf16.mxu0 0
        %3633 = vmatpush1.bf16.msra.mxu0 %v3533
        %3634 = vmatprep.subr.bf16.mxu0 0
        %3635 = vmatpush1.bf16.msra.mxu0 %v3534
        %3636 = vmatprep.subr.bf16.mxu0 0
        %3637 = vmatpush1.bf16.msra.mxu0 %v3535
        %3638 = vmatprep.subr.bf16.mxu0 0
        %3639 = vmatpush1.bf16.msra.mxu0 %v3536
        %3640 = vmatprep.subr.bf16.mxu0 0
        %3641 = vmatpush1.bf16.msra.mxu0 %v3537
        %3642 = vmatprep.subr.bf16.mxu0 0
        %3643 = vmatpush1.bf16.msra.mxu0 %v3538
        %3644 = vmatprep.mubr.bf16.mxu0 %v3314
        %3645 = vmatmul.mubr.bf16.gmra.mrb[0].mxu0 %v3313
        %v3646 = vpop.f32.mrb[0].mxu0
        %v3647 = vadd.f32 %v3606, %v3646
        %v3648 = vpop.f32.mrb[0].mxu0
        %v3649 = vpop.f32.mrb[0].mxu0
        %v3650 = vadd.f32 %v3609, %v3649
        %v3651 = vpop.f32.mrb[0].mxu0
        %3652 = vdwg.mxu0
        %v3653 = vadd.f32 %v3145, %v3647
        %v3654 = vadd.f32 %v3146, %v3650
        %v3655 = vld [vmem:[%s412 + $0x3] sm:$0x1]
        %v3656 = vlaneseq
        %v3657 = vshrl.u32 %v3656, 7
        %v3658 = vsub.s32 0, %v3657
        %v3659 = vrot.slane %v3655, %v3658
        %v3660 = vadd.f32 %v3653, %v3659
        %v3661 = vadd.f32 %v3654, %v3659
        %v3662 = vadd.f32 %v1621, %v3660
        %v3663 = vadd.f32 %v1622, %v3661
        %v3664 = vld [vmem:[%s412 + $0x4] sm:$0x1]
        %v3665 = vld [vmem:[%s412 + $0x5] sm:$0x1]
        %v3666 = vsel %vm561, %v3662, 0.0
        %3667 = vadd.xlane.f32.xlu0 %v3666
        %v3668 = vpop.xlane.xlu0 %3667
        %v3669 = vsel %vm561, %v3663, 0.0
        %3670 = vadd.xlane.f32.xlu0 %v3669
        %v3671 = vpop.xlane.xlu0 %3670
        %v3672 = vmul.f32 %v3668, %v1590
        %v3673 = vmul.f32 %v3671, %v1590
        %v3674 = vsub.f32 %v3662, %v3672
        %v3675 = vsub.f32 %v3663, %v3673
        %v3676 = vmul.f32 %v3674, %v3674
        %v3677 = vmul.f32 %v3675, %v3675
        %v3678 = vsel %vm561, %v3676, 0.0
        %3679 = vadd.xlane.f32.xlu0 %v3678
        %v3680 = vpop.xlane.xlu0 %3679
        %v3681 = vsel %vm561, %v3677, 0.0
        %3682 = vadd.xlane.f32.xlu0 %v3681
        %v3683 = vpop.xlane.xlu0 %3682
        %v3684 = vmul.f32 %v3680, %v1590
        %v3685 = vmul.f32 %v3683, %v1590
        %v3686 = vadd.f32 %v3684, 1e-05
        %v3687 = vadd.f32 %v3685, 1e-05
        %v3688 = vrsqrt.pop %v3686
        %v3689 = vrsqrt.pop %v3687
        %v3690 = vmul.f32 %v3674, %v3688
        %v3691 = vmul.f32 %v3675, %v3689
        %v3692 = vlaneseq
        %v3693 = vshrl.u32 %v3692, 7
        %v3694 = vsub.s32 0, %v3693
        %v3695 = vrot.slane %v3664, %v3694
        %v3696 = vmul.f32 %v3690, %v3695
        %v3697 = vmul.f32 %v3691, %v3695
        %v3698 = vlaneseq
        %v3699 = vshrl.u32 %v3698, 7
        %v3700 = vsub.s32 0, %v3699
        %v3701 = vrot.slane %v3665, %v3700
        %v3702 = vadd.f32 %v3696, %v3701
        %v3703 = vadd.f32 %v3697, %v3701
        %3704 = vst.msk [vmem:[#allocation2] sm:$0xff] %vm561, %v3702
        %3705 = vst.msk [vmem:[#allocation2 + $0x8] sm:$0xff] %vm561, %v3703
        // Predicated region
        $region61: #{global_adaptive_tsm.1} parent=55 // pred_check
          %p3706 = pneg %p258
        $region62: #{global_adaptive_tsm.1} parent=55 // pred_check_branch
          %3708 = sbr.rel (%p3706) target = $region64
        $region63: #{global_adaptive_tsm.1} parent=55 // pred_region
          %s3710 = ssub.s32 256, 256
          %3711 = vsyncadd [#allocation3], %s3710
          %s3712 = sshll.u32 [#allocation2], 4
          %s3713 = int_to_ptr.vmem [resolvable:$true] %s3712
          %3718 = dma.vmem_to_hbm [thread:$0]  %s3713, 256, %s9, [#allocation3], 128, 128, 8
        $region64: #{global_adaptive_tsm.1} parent=55 // pred_fallthru
          _
        // Predicated region
        $region65: #{global_adaptive_tsm.1} parent=55 // pred_check
          %p3719 = pneg %p258
        $region66: #{global_adaptive_tsm.1} parent=55 // pred_check_branch
          %3721 = sbr.rel (%p3719) target = $region68
        $region67: #{global_adaptive_tsm.1} parent=55 // pred_region
          %3722 = dma.done [#allocation3], 256
        $region68: #{global_adaptive_tsm.1} parent=55 // pred_fallthru
          _
      $region56: #{global_adaptive_tsm.1} parent=5 // pred_fallthru
        _
      %p3723 = scmp.le.s32.totalorder 2, %s16
      // Predicated region
      $region69: #{global_adaptive_tsm.1} parent=5 // pred_check
        %p3724 = pneg %p3723
      $region70: #{global_adaptive_tsm.1} parent=5 // pred_check_branch
        %3726 = sbr.rel (%p3724) target = $region72
      $region71: #{global_adaptive_tsm.1} parent=5 // pred_region
        %s3727 = ssub.s32 %s16, 2
      $region72: #{global_adaptive_tsm.1} parent=5 // pred_fallthru
        _
    $region6: #{global_adaptive_tsm.1} parent=1 // loop_footer
      %s20 = sadd.s32 1, %s16
    $region7: #{global_adaptive_tsm.1} parent=1 // loop_footer_branch
      %15 = sbr.rel target = $region3
    $region8: #{global_adaptive_tsm.1} parent=1 // loop_exit
      _
    %3728 = vsyncpa [#allocation3], 1
    %s3729 = scalar_lea.sflag [#allocation3], 1
    %3730 = vsyncpa %s3729, 1

</llo_original>
